<compile_context>
chip_gen: v5e
topology: v5e:2x2
jax: 0.10.0
libtpu: 0.0.40
codegen_flags: <defaults>
</compile_context>

<pallas_src>
import functools
import math

import jax
import jax.numpy as jnp
from jax.experimental import pallas as pl
from jax.experimental.pallas import tpu as pltpu

_NEG = -1e30


# ---------------------------------------------------------------------------
# In-kernel helpers
# ---------------------------------------------------------------------------
def _layer_norm(x, gamma, beta, eps=1e-6):
    # x: (T, H) f32; gamma/beta: (1, H) f32  -> matches nn.LayerNorm(H, eps=1e-6)
    mean = jnp.mean(x, axis=-1, keepdims=True)
    var = jnp.mean((x - mean) ** 2, axis=-1, keepdims=True)
    return (x - mean) * jax.lax.rsqrt(var + eps) * gamma + beta


def _linear(x, w, b=None):
    # x: (T, in) bf16, w: (in, out) bf16 (pre-transposed on host), b: (1, out) f32
    y = jax.lax.dot_general(
        x, w, (((1,), (0,)), ((), ())), preferred_element_type=jnp.float32
    )
    if b is not None:
        y = y + b
    return y


def _mha(q, k, v, bias, num_heads, head_dim):
    # q: (T, H) f32, k/v: (S, H) f32, bias: (T, S) or (1, S) additive f32 mask.
    # 1/sqrt(head_dim) is already folded into Wq/bq on the host.
    T = q.shape[0]
    S = k.shape[0]
    qh = jnp.transpose(q.reshape(T, num_heads, head_dim), (1, 0, 2)).astype(jnp.bfloat16)
    kh = jnp.transpose(k.reshape(S, num_heads, head_dim), (1, 0, 2)).astype(jnp.bfloat16)
    vh = jnp.transpose(v.reshape(S, num_heads, head_dim), (1, 0, 2)).astype(jnp.bfloat16)

    scores = jnp.einsum("ntd,nsd->nts", qh, kh,
                        preferred_element_type=jnp.float32)        # (nh, T, S)
    scores = scores + bias[None]
    scores = scores - jnp.max(scores, axis=-1, keepdims=True)
    p = jnp.exp(scores)
    denom = jnp.sum(p, axis=-1, keepdims=True)
    p = p * pl.reciprocal(denom, approx=True)

    ctx = jnp.einsum("nts,nsd->ntd", p.astype(jnp.bfloat16), vh,
                     preferred_element_type=jnp.float32)           # (nh, T, hd)
    return jnp.transpose(ctx, (1, 0, 2)).reshape(T, num_heads * head_dim)


# ---------------------------------------------------------------------------
# Pallas kernels
# ---------------------------------------------------------------------------
def decoder_stack_kernel(
    x_ref, mem_ref, tpad_ref, spad_ref,
    ln1_ref, wq_s_ref, bq_s_ref, wk_s_ref, bk_s_ref, wv_s_ref, bv_s_ref,
    wo_s_ref, bo_s_ref,
    ln2_ref, wq_c_ref, bq_c_ref, wk_c_ref, bk_c_ref, wv_c_ref, bv_c_ref,
    wo_c_ref, bo_c_ref,
    ln3_ref, w1_ref, b1_ref, w2_ref, b2_ref,
    out_ref, *, num_heads, head_dim,
):
    layer = pl.program_id(1)

    # Layer 0: seed the resident residual stream.  The output block index is
    # constant along the layer axis, so it stays in VMEM until `b` changes.
    @pl.when(layer == 0)
    def _():
        out_ref[0] = x_ref[0]

    x = out_ref[0]                       # (T, H) f32 residual stream
    mem = mem_ref[0]                     # (S, H) bf16
    T = x.shape[0]

    # Additive attention biases built in-kernel (no O(B*T^2) HBM mask traffic).
    row = jax.lax.broadcasted_iota(jnp.int32, (T, T), 0)
    col = jax.lax.broadcasted_iota(jnp.int32, (T, T), 1)
    causal = jnp.where(col <= row, 0.0, _NEG).astype(jnp.float32)
    tbias = causal + tpad_ref[0]         # (T, T) + (1, T)
    sbias = spad_ref[0]                  # (1, S)

    # ---- masked target self-attention (pre-norm) + residual ----
    ln1 = ln1_ref[0]
    xn = _layer_norm(x, ln1[0:1, :], ln1[1:2, :]).astype(jnp.bfloat16)
    q = _linear(xn, wq_s_ref[0], bq_s_ref[0])    # scale folded into Wq/bq
    k = _linear(xn, wk_s_ref[0], bk_s_ref[0])
    v = _linear(xn, wv_s_ref[0], bv_s_ref[0])
    ctx = _mha(q, k, v, tbias, num_heads, head_dim)
    h1 = _linear(ctx.astype(jnp.bfloat16), wo_s_ref[0], bo_s_ref[0]) + x

    # ---- source-target attention (pre-norm) + residual ----
    ln2 = ln2_ref[0]
    h1n = _layer_norm(h1, ln2[0:1, :], ln2[1:2, :]).astype(jnp.bfloat16)
    q2 = _linear(h1n, wq_c_ref[0], bq_c_ref[0])
    k2 = _linear(mem, wk_c_ref[0], bk_c_ref[0])
    v2 = _linear(mem, wv_c_ref[0], bv_c_ref[0])
    ctx2 = _mha(q2, k2, v2, sbias, num_heads, head_dim)
    h2 = _linear(ctx2.astype(jnp.bfloat16), wo_c_ref[0], bo_c_ref[0]) + h1

    # ---- position-wise feed-forward (pre-norm) + residual ----
    ln3 = ln3_ref[0]
    h2n = _layer_norm(h2, ln3[0:1, :], ln3[1:2, :]).astype(jnp.bfloat16)
    ff = jnp.maximum(_linear(h2n, w1_ref[0], b1_ref[0]), 0.0)
    ff = _linear(ff.astype(jnp.bfloat16), w2_ref[0], b2_ref[0])

    out_ref[0] = ff + h2


def final_kernel(x_ref, ln_ref, wout_ref, logits_ref, xout_ref):
    x = x_ref[0]                          # (T, H) f32
    ln = ln_ref[...]                      # (2, H) f32
    xn = _layer_norm(x, ln[0:1, :], ln[1:2, :])
    xout_ref[0] = xn
    logits_ref[0] = jax.lax.dot_general(
        xn.astype(jnp.bfloat16), wout_ref[...], (((1,), (0,)), ((), ())),
        preferred_element_type=jnp.float32,
    )


# ---------------------------------------------------------------------------
# Wrappers (pallas_call plumbing)
# ---------------------------------------------------------------------------
_WEIGHT_NAMES = [
    "ln1", "wq_s", "bq_s", "wk_s", "bk_s", "wv_s", "bv_s", "wo_s", "bo_s",
    "ln2", "wq_c", "bq_c", "wk_c", "bk_c", "wv_c", "bv_c", "wo_c", "bo_c",
    "ln3", "w1", "b1", "w2", "b2",
]


def decoder_stack_call(x, memory, tpad, spad, packed, num_heads):
    B, T, H = x.shape
    S = memory.shape[1]
    L = packed["ln1"].shape[0]
    weights = [packed[n] for n in _WEIGHT_NAMES]

    def act_spec(tail):
        n = len(tail)
        return pl.BlockSpec((1,) + tuple(tail), lambda b, l, n=n: (b,) + (0,) * n)

    def wspec(arr):
        return pl.BlockSpec((1,) + tuple(arr.shape[1:]), lambda b, l: (l, 0, 0))

    in_specs = (
        [act_spec((T, H)), act_spec((S, H)), act_spec((1, T)), act_spec((1, S))]
        + [wspec(w) for w in weights]
    )

    # Explicit VMEM budget (default scoped limit is 16/32 MiB depending on chip).
    per_layer_w = sum(math.prod(w.shape[1:]) * w.dtype.itemsize for w in weights)
    act_bytes = (2 * T * H + S * H + T + S) * 4
    vmem_limit = int(min(4 * (per_layer_w + act_bytes) + (16 << 20), 40 << 20))

    kernel = functools.partial(
        decoder_stack_kernel, num_heads=num_heads, head_dim=H // num_heads
    )
    return pl.pallas_call(
        kernel,
        out_shape=jax.ShapeDtypeStruct((B, T, H), jnp.float32),
        grid=(B, L),
        in_specs=in_specs,
        out_specs=pl.BlockSpec((1, T, H), lambda b, l: (b, 0, 0)),
        compiler_params=pltpu.CompilerParams(
            dimension_semantics=("parallel", "arbitrary"),
            vmem_limit_bytes=vmem_limit,
        ),
    )(x, memory, tpad, spad, *weights)


def final_call(x, ln, w_out):
    B, T, H = x.shape
    V = w_out.shape[1]                    # w_out is (H, V), pre-transposed
    return pl.pallas_call(
        final_kernel,
        out_shape=(
            jax.ShapeDtypeStruct((B, T, V), jnp.float32),
            jax.ShapeDtypeStruct((B, T, H), jnp.float32),
        ),
        grid=(B,),
        in_specs=[
            pl.BlockSpec((1, T, H), lambda b: (b, 0, 0)),
            pl.BlockSpec(ln.shape, lambda b: (0, 0)),
            pl.BlockSpec(w_out.shape, lambda b: (0, 0)),
        ],
        out_specs=(
            pl.BlockSpec((1, T, V), lambda b: (b, 0, 0)),
            pl.BlockSpec((1, T, H), lambda b: (b, 0, 0)),
        ),
        compiler_params=pltpu.CompilerParams(dimension_semantics=("parallel",)),
    )(x, ln, w_out)


# ---------------------------------------------------------------------------
# Host-side parameter packing: stack over layers, transpose to (in, out),
# fold 1/sqrt(head_dim) into Wq/bq, cast matmul weights to bf16.
# ---------------------------------------------------------------------------
def pack_params(params, num_heads):
    H = params["layers"][0]["wq_s"].shape[0]
    scale = 1.0 / math.sqrt(H // num_heads)
    layers = params["layers"]

    def stack_ln(name):
        return jnp.stack([lp[name] for lp in layers]).astype(jnp.float32)

    def stack_w(name, s=1.0):
        # PyTorch (out, in) -> (in, out), optional scale fold, bf16 for the MXU.
        return jnp.stack([(lp[name].T * s).astype(jnp.bfloat16) for lp in layers])

    def stack_b(name, s=1.0):
        return jnp.stack([(lp[name] * s).astype(jnp.float32) for lp in layers])

    packed = dict(
        ln1=stack_ln("ln1"),
        wq_s=stack_w("wq_s", scale), bq_s=stack_b("bq_s", scale),
        wk_s=stack_w("wk_s"), bk_s=stack_b("bk_s"),
        wv_s=stack_w("wv_s"), bv_s=stack_b("bv_s"),
        wo_s=stack_w("wo_s"), bo_s=stack_b("bo_s"),
        ln2=stack_ln("ln2"),
        wq_c=stack_w("wq_c", scale), bq_c=stack_b("bq_c", scale),
        wk_c=stack_w("wk_c"), bk_c=stack_b("bk_c"),
        wv_c=stack_w("wv_c"), bv_c=stack_b("bv_c"),
        wo_c=stack_w("wo_c"), bo_c=stack_b("bo_c"),
        ln3=stack_ln("ln3"),
        w1=stack_w("w1"), b1=stack_b("b1"),
        w2=stack_w("w2"), b2=stack_b("b2"),
    )
    final = dict(
        final_ln=params["final_ln"].astype(jnp.float32),
        w_out=params["w_out"].T.astype(jnp.bfloat16),   # (H, V)
    )
    return packed, final


# ---------------------------------------------------------------------------
# Model glue (PE, mask prep, parameter init)
# ---------------------------------------------------------------------------
def positional_encoding(T, H):
    position = jnp.arange(T, dtype=jnp.float32)[:, None]
    div_term = jnp.exp(
        jnp.arange(0, H, 2, dtype=jnp.float32) * -(math.log(10000.0) / H)
    )
    pe = jnp.zeros((T, H), dtype=jnp.float32)
    pe = pe.at[:, 0::2].set(jnp.sin(position * div_term))
    pe = pe.at[:, 1::2].set(jnp.cos(position * div_term))
    return pe


def transformer_decoder_forward(trg_embed, encoder_output, src_mask, trg_mask,
                                params, num_heads):
    """Mirrors TransformerDecoder.forward (inference, dropout = identity)."""
    B, T, H = trg_embed.shape
    packed, final = pack_params(params, num_heads)

    # PositionalEncoding + emb_dropout (identity). Residual stream stays f32.
    x = (trg_embed + positional_encoding(T, H)[None]).astype(jnp.float32)
    mem = encoder_output.astype(jnp.bfloat16)

    # Only the small padding biases go to the kernel; the causal (subsequent)
    # mask is generated in-kernel with iota.
    tpad = jnp.where(trg_mask, 0.0, _NEG).astype(jnp.float32)   # (B, 1, T)
    spad = jnp.where(src_mask, 0.0, _NEG).astype(jnp.float32)   # (B, 1, S)

    x = decoder_stack_call(x, mem, tpad, spad, packed, num_heads)
    logits, x_norm = final_call(x, final["final_ln"], final["w_out"])
    return logits, x_norm, None, None


def init_params(key, num_layers, H, F, V):
    """PyTorch-layout parameters: Linear weights are (out_features, in_features)."""
    def nrm(k, shape):
        return 0.05 * jax.random.normal(k, shape, dtype=jnp.float32)

    ln_default = jnp.concatenate(
        [jnp.ones((1, H), jnp.float32), jnp.zeros((1, H), jnp.float32)], axis=0
    )
    layers = []
    keys = jax.random.split(key, num_layers + 1)
    for li in range(num_layers):
        ks = jax.random.split(keys[li], 20)
        layers.append(dict(
            ln1=ln_default, ln2=ln_default, ln3=ln_default,
            wq_s=nrm(ks[0], (H, H)), bq_s=nrm(ks[1], (1, H)),
            wk_s=nrm(ks[2], (H, H)), bk_s=nrm(ks[3], (1, H)),
            wv_s=nrm(ks[4], (H, H)), bv_s=nrm(ks[5], (1, H)),
            wo_s=nrm(ks[6], (H, H)), bo_s=nrm(ks[7], (1, H)),
            wq_c=nrm(ks[8], (H, H)), bq_c=nrm(ks[9], (1, H)),
            wk_c=nrm(ks[10], (H, H)), bk_c=nrm(ks[11], (1, H)),
            wv_c=nrm(ks[12], (H, H)), bv_c=nrm(ks[13], (1, H)),
            wo_c=nrm(ks[14], (H, H)), bo_c=nrm(ks[15], (1, H)),
            w1=nrm(ks[16], (F, H)), b1=nrm(ks[17], (1, F)),
            w2=nrm(ks[18], (H, F)), b2=nrm(ks[19], (1, H)),
        ))
    kout = jax.random.split(keys[-1], 1)[0]
    return dict(
        layers=layers,
        final_ln=ln_default,
        w_out=nrm(kout, (V, H)),   # nn.Linear(hidden, vocab, bias=False)
    )


# ---------------------------------------------------------------------------
# Demo
# ---------------------------------------------------------------------------
if __name__ == "__main__":
    B, T, S = 2, 8, 10                   # batch, target len, source len
    H, NH, F, V, L = 32, 4, 64, 16, 2    # hidden, heads, ff_size, vocab, layers

    key = jax.random.PRNGKey(0)
    k_emb, k_enc, k_par = jax.random.split(key, 3)

    trg_embed = jax.random.normal(k_emb, (B, T, H), dtype=jnp.float32)
    encoder_output = jax.random.normal(k_enc, (B, S, H), dtype=jnp.float32)

    # padding masks (True = keep), like PyTorch byte/bool masks
    trg_mask = jnp.ones((B, 1, T), dtype=bool)
    trg_mask = trg_mask.at[1, 0, T - 1:].set(False)      # last target pos padded in batch 1
    src_mask = jnp.ones((B, 1, S), dtype=bool)
    src_mask = src_mask.at[0, 0, S - 2:].set(False)      # last 2 source pos padded in batch 0

    params = init_params(k_par, L, H, F, V)

    logits, x_norm, _, _ = transformer_decoder_forward(
        trg_embed, encoder_output, src_mask, trg_mask, params, num_heads=NH
    )
    logits = jax.block_until_ready(logits)
    x_norm = jax.block_until_ready(x_norm)

    assert logits.shape == (B, T, V) and x_norm.shape == (B, T, H)
    assert bool(jnp.all(jnp.isfinite(logits))) and bool(jnp.all(jnp.isfinite(x_norm)))
    print("KERNEL_OK")
</pallas_src>

<mosaic_0001>
module attributes {stable_mosaic.version = 11 : i64} {
  func.func @decoder_stack_kernel(%arg0: i32, %arg1: i32, %arg2: memref<1x8x32xf32, #tpu.memory_space<vmem>>, %arg3: memref<1x10x32xbf16, #tpu.memory_space<vmem>>, %arg4: memref<1x1x8xf32, #tpu.memory_space<vmem>>, %arg5: memref<1x1x10xf32, #tpu.memory_space<vmem>>, %arg6: memref<1x2x32xf32, #tpu.memory_space<vmem>>, %arg7: memref<1x32x32xbf16, #tpu.memory_space<vmem>>, %arg8: memref<1x1x32xf32, #tpu.memory_space<vmem>>, %arg9: memref<1x32x32xbf16, #tpu.memory_space<vmem>>, %arg10: memref<1x1x32xf32, #tpu.memory_space<vmem>>, %arg11: memref<1x32x32xbf16, #tpu.memory_space<vmem>>, %arg12: memref<1x1x32xf32, #tpu.memory_space<vmem>>, %arg13: memref<1x32x32xbf16, #tpu.memory_space<vmem>>, %arg14: memref<1x1x32xf32, #tpu.memory_space<vmem>>, %arg15: memref<1x2x32xf32, #tpu.memory_space<vmem>>, %arg16: memref<1x32x32xbf16, #tpu.memory_space<vmem>>, %arg17: memref<1x1x32xf32, #tpu.memory_space<vmem>>, %arg18: memref<1x32x32xbf16, #tpu.memory_space<vmem>>, %arg19: memref<1x1x32xf32, #tpu.memory_space<vmem>>, %arg20: memref<1x32x32xbf16, #tpu.memory_space<vmem>>, %arg21: memref<1x1x32xf32, #tpu.memory_space<vmem>>, %arg22: memref<1x32x32xbf16, #tpu.memory_space<vmem>>, %arg23: memref<1x1x32xf32, #tpu.memory_space<vmem>>, %arg24: memref<1x2x32xf32, #tpu.memory_space<vmem>>, %arg25: memref<1x32x64xbf16, #tpu.memory_space<vmem>>, %arg26: memref<1x1x64xf32, #tpu.memory_space<vmem>>, %arg27: memref<1x64x32xbf16, #tpu.memory_space<vmem>>, %arg28: memref<1x1x32xf32, #tpu.memory_space<vmem>>, %arg29: memref<1x8x32xf32, #tpu.memory_space<vmem>>) attributes {dimension_semantics = [#tpu.dimension_semantics<parallel>, #tpu.dimension_semantics<arbitrary>], iteration_bounds = array<i64: 2, 2>, scalar_prefetch = 0 : i64, scratch_operands = 0 : i64, tpu.core_type = #tpu.core_type<tc>, window_params = [{transform_indices = @transform_0, window_bounds = array<i64: 1, 8, 32>}, {transform_indices = @transform_1, window_bounds = array<i64: 1, 10, 32>}, {transform_indices = @transform_2, window_bounds = array<i64: 1, 1, 8>}, {transform_indices = @transform_3, window_bounds = array<i64: 1, 1, 10>}, {transform_indices = @transform_4, window_bounds = array<i64: 1, 2, 32>}, {transform_indices = @transform_5, window_bounds = array<i64: 1, 32, 32>}, {transform_indices = @transform_6, window_bounds = array<i64: 1, 1, 32>}, {transform_indices = @transform_7, window_bounds = array<i64: 1, 32, 32>}, {transform_indices = @transform_8, window_bounds = array<i64: 1, 1, 32>}, {transform_indices = @transform_9, window_bounds = array<i64: 1, 32, 32>}, {transform_indices = @transform_10, window_bounds = array<i64: 1, 1, 32>}, {transform_indices = @transform_11, window_bounds = array<i64: 1, 32, 32>}, {transform_indices = @transform_12, window_bounds = array<i64: 1, 1, 32>}, {transform_indices = @transform_13, window_bounds = array<i64: 1, 2, 32>}, {transform_indices = @transform_14, window_bounds = array<i64: 1, 32, 32>}, {transform_indices = @transform_15, window_bounds = array<i64: 1, 1, 32>}, {transform_indices = @transform_16, window_bounds = array<i64: 1, 32, 32>}, {transform_indices = @transform_17, window_bounds = array<i64: 1, 1, 32>}, {transform_indices = @transform_18, window_bounds = array<i64: 1, 32, 32>}, {transform_indices = @transform_19, window_bounds = array<i64: 1, 1, 32>}, {transform_indices = @transform_20, window_bounds = array<i64: 1, 32, 32>}, {transform_indices = @transform_21, window_bounds = array<i64: 1, 1, 32>}, {transform_indices = @transform_22, window_bounds = array<i64: 1, 2, 32>}, {transform_indices = @transform_23, window_bounds = array<i64: 1, 32, 64>}, {transform_indices = @transform_24, window_bounds = array<i64: 1, 1, 64>}, {transform_indices = @transform_25, window_bounds = array<i64: 1, 64, 32>}, {transform_indices = @transform_26, window_bounds = array<i64: 1, 1, 32>}, {transform_indices = @transform_27, window_bounds = array<i64: 1, 8, 32>}]} {
    %c0_i32 = arith.constant 0 : i32
    %0 = arith.cmpi eq, %arg1, %c0_i32 : i32
    %1 = arith.extui %0 : i1 to i32
    %c0_i32_0 = arith.constant 0 : i32
    %2 = arith.cmpi ne, %1, %c0_i32_0 : i32
    scf.if %2 {
      %c0_119 = arith.constant 0 : index
      %c0_120 = arith.constant 0 : index
      %c0_121 = arith.constant 0 : index
      %235 = vector.load %arg2[%c0_119, %c0_120, %c0_121] : memref<1x8x32xf32, #tpu.memory_space<vmem>>, vector<1x8x32xf32>
      %236 = vector.shape_cast %235 : vector<1x8x32xf32> to vector<8x32xf32>
      %c0_122 = arith.constant 0 : index
      %c0_123 = arith.constant 0 : index
      %c0_124 = arith.constant 0 : index
      %237 = vector.load %arg29[%c0_122, %c0_123, %c0_124] : memref<1x8x32xf32, #tpu.memory_space<vmem>>, vector<1x8x32xf32>
      %238 = vector.shape_cast %237 : vector<1x8x32xf32> to vector<8x32xf32>
      %239 = vector.shape_cast %236 : vector<8x32xf32> to vector<1x8x32xf32>
      tpu.vector_store %arg29[%c0_122, %c0_123, %c0_124], %239 {strides = array<i32>} : memref<1x8x32xf32, #tpu.memory_space<vmem>>, vector<1x8x32xf32>,
    } else {
    }
    %c0 = arith.constant 0 : index
    %c0_1 = arith.constant 0 : index
    %c0_2 = arith.constant 0 : index
    %3 = vector.load %arg29[%c0, %c0_1, %c0_2] : memref<1x8x32xf32, #tpu.memory_space<vmem>>, vector<1x8x32xf32>
    %4 = vector.shape_cast %3 : vector<1x8x32xf32> to vector<8x32xf32>
    %c0_3 = arith.constant 0 : index
    %c0_4 = arith.constant 0 : index
    %c0_5 = arith.constant 0 : index
    %5 = vector.load %arg3[%c0_3, %c0_4, %c0_5] : memref<1x10x32xbf16, #tpu.memory_space<vmem>>, vector<1x10x32xbf16>
    %6 = vector.shape_cast %5 : vector<1x10x32xbf16> to vector<10x32xbf16>
    %7 = tpu.iota {dimensions = array<i32: 0>} : vector<8x8xi32>
    %8 = tpu.iota {dimensions = array<i32: 1>} : vector<8x8xi32>
    %9 = arith.cmpi sle, %8, %7 : vector<8x8xi32>
    %cst = arith.constant 0.000000e+00 : f32
    %cst_6 = arith.constant -1.000000e+30 : f32
    %10 = vector.broadcast %cst : f32 to vector<8x8xf32>
    %11 = vector.broadcast %cst_6 : f32 to vector<8x8xf32>
    %12 = arith.select %9, %10, %11 : vector<8x8xi1>, vector<8x8xf32>
    %c0_7 = arith.constant 0 : index
    %c0_8 = arith.constant 0 : index
    %c0_9 = arith.constant 0 : index
    %13 = vector.load %arg4[%c0_7, %c0_8, %c0_9] : memref<1x1x8xf32, #tpu.memory_space<vmem>>, vector<1x1x8xf32>
    %14 = vector.shape_cast %13 : vector<1x1x8xf32> to vector<1x8xf32>
    %15 = vector.broadcast %14 : vector<1x8xf32> to vector<8x8xf32>
    %16 = arith.addf %12, %15 : vector<8x8xf32>
    %c0_10 = arith.constant 0 : index
    %c0_11 = arith.constant 0 : index
    %c0_12 = arith.constant 0 : index
    %17 = vector.load %arg5[%c0_10, %c0_11, %c0_12] : memref<1x1x10xf32, #tpu.memory_space<vmem>>, vector<1x1x10xf32>
    %18 = vector.shape_cast %17 : vector<1x1x10xf32> to vector<1x10xf32>
    %c0_13 = arith.constant 0 : index
    %c0_14 = arith.constant 0 : index
    %c0_15 = arith.constant 0 : index
    %19 = vector.load %arg6[%c0_13, %c0_14, %c0_15] : memref<1x2x32xf32, #tpu.memory_space<vmem>>, vector<1x2x32xf32>
    %20 = vector.shape_cast %19 : vector<1x2x32xf32> to vector<2x32xf32>
    %21 = vector.extract_strided_slice %20 {offsets = [0, 0], sizes = [1, 32], strides = [1, 1]} : vector<2x32xf32> to vector<1x32xf32>
    %22 = vector.extract_strided_slice %20 {offsets = [1, 0], sizes = [1, 32], strides = [1, 1]} : vector<2x32xf32> to vector<1x32xf32>
    %cst_16 = arith.constant dense<0.000000e+00> : vector<8xf32>
    %23 = vector.multi_reduction <add>, %4, %cst_16 [1] : vector<8x32xf32> to vector<8xf32>
    %24 = vector.shape_cast %23 : vector<8xf32> to vector<8x1xf32>
    %cst_17 = arith.constant 3.200000e+01 : f32
    %25 = vector.broadcast %cst_17 : f32 to vector<8x1xf32>
    %26 = arith.divf %24, %25 : vector<8x1xf32>
    %27 = vector.broadcast %26 : vector<8x1xf32> to vector<8x32xf32>
    %28 = arith.subf %4, %27 : vector<8x32xf32>
    %29 = arith.mulf %28, %28 : vector<8x32xf32>
    %cst_18 = arith.constant dense<0.000000e+00> : vector<8xf32>
    %30 = vector.multi_reduction <add>, %29, %cst_18 [1] : vector<8x32xf32> to vector<8xf32>
    %31 = vector.shape_cast %30 : vector<8xf32> to vector<8x1xf32>
    %cst_19 = arith.constant 3.200000e+01 : f32
    %32 = vector.broadcast %cst_19 : f32 to vector<8x1xf32>
    %33 = arith.divf %31, %32 : vector<8x1xf32>
    %34 = vector.broadcast %26 : vector<8x1xf32> to vector<8x32xf32>
    %35 = arith.subf %4, %34 : vector<8x32xf32>
    %cst_20 = arith.constant 9.99999997E-7 : f32
    %36 = vector.broadcast %cst_20 : f32 to vector<8x1xf32>
    %37 = arith.addf %33, %36 : vector<8x1xf32>
    %38 = math.rsqrt %37 : vector<8x1xf32>
    %39 = vector.broadcast %38 : vector<8x1xf32> to vector<8x32xf32>
    %40 = arith.mulf %35, %39 : vector<8x32xf32>
    %41 = vector.broadcast %21 : vector<1x32xf32> to vector<8x32xf32>
    %42 = arith.mulf %40, %41 : vector<8x32xf32>
    %43 = vector.broadcast %22 : vector<1x32xf32> to vector<8x32xf32>
    %44 = arith.addf %42, %43 : vector<8x32xf32>
    %45 = arith.truncf %44 : vector<8x32xf32> to vector<8x32xbf16>
    %c0_21 = arith.constant 0 : index
    %c0_22 = arith.constant 0 : index
    %c0_23 = arith.constant 0 : index
    %46 = vector.load %arg7[%c0_21, %c0_22, %c0_23] : memref<1x32x32xbf16, #tpu.memory_space<vmem>>, vector<1x32x32xbf16>
    %47 = vector.shape_cast %46 : vector<1x32x32xbf16> to vector<32x32xbf16>
    %c0_24 = arith.constant 0 : index
    %c0_25 = arith.constant 0 : index
    %c0_26 = arith.constant 0 : index
    %48 = vector.load %arg8[%c0_24, %c0_25, %c0_26] : memref<1x1x32xf32, #tpu.memory_space<vmem>>, vector<1x1x32xf32>
    %49 = vector.shape_cast %48 : vector<1x1x32xf32> to vector<1x32xf32>
    %cst_27 = arith.constant dense<0.000000e+00> : vector<8x32xf32>
    %50 = tpu.matmul %45, %47, %cst_27 {dimension_numbers = #tpu.dot_dimension_numbers<[1], [0], [0], [1], [0, 0, 1, 1], [], []>} : vector<8x32xbf16>, vector<32x32xbf16>, vector<8x32xf32> -> vector<8x32xf32>
    %51 = vector.broadcast %49 : vector<1x32xf32> to vector<8x32xf32>
    %52 = arith.addf %50, %51 : vector<8x32xf32>
    %c0_28 = arith.constant 0 : index
    %c0_29 = arith.constant 0 : index
    %c0_30 = arith.constant 0 : index
    %53 = vector.load %arg9[%c0_28, %c0_29, %c0_30] : memref<1x32x32xbf16, #tpu.memory_space<vmem>>, vector<1x32x32xbf16>
    %54 = vector.shape_cast %53 : vector<1x32x32xbf16> to vector<32x32xbf16>
    %c0_31 = arith.constant 0 : index
    %c0_32 = arith.constant 0 : index
    %c0_33 = arith.constant 0 : index
    %55 = vector.load %arg10[%c0_31, %c0_32, %c0_33] : memref<1x1x32xf32, #tpu.memory_space<vmem>>, vector<1x1x32xf32>
    %56 = vector.shape_cast %55 : vector<1x1x32xf32> to vector<1x32xf32>
    %cst_34 = arith.constant dense<0.000000e+00> : vector<8x32xf32>
    %57 = tpu.matmul %45, %54, %cst_34 {dimension_numbers = #tpu.dot_dimension_numbers<[1], [0], [0], [1], [0, 0, 1, 1], [], []>} : vector<8x32xbf16>, vector<32x32xbf16>, vector<8x32xf32> -> vector<8x32xf32>
    %58 = vector.broadcast %56 : vector<1x32xf32> to vector<8x32xf32>
    %59 = arith.addf %57, %58 : vector<8x32xf32>
    %c0_35 = arith.constant 0 : index
    %c0_36 = arith.constant 0 : index
    %c0_37 = arith.constant 0 : index
    %60 = vector.load %arg11[%c0_35, %c0_36, %c0_37] : memref<1x32x32xbf16, #tpu.memory_space<vmem>>, vector<1x32x32xbf16>
    %61 = vector.shape_cast %60 : vector<1x32x32xbf16> to vector<32x32xbf16>
    %c0_38 = arith.constant 0 : index
    %c0_39 = arith.constant 0 : index
    %c0_40 = arith.constant 0 : index
    %62 = vector.load %arg12[%c0_38, %c0_39, %c0_40] : memref<1x1x32xf32, #tpu.memory_space<vmem>>, vector<1x1x32xf32>
    %63 = vector.shape_cast %62 : vector<1x1x32xf32> to vector<1x32xf32>
    %cst_41 = arith.constant dense<0.000000e+00> : vector<8x32xf32>
    %64 = tpu.matmul %45, %61, %cst_41 {dimension_numbers = #tpu.dot_dimension_numbers<[1], [0], [0], [1], [0, 0, 1, 1], [], []>} : vector<8x32xbf16>, vector<32x32xbf16>, vector<8x32xf32> -> vector<8x32xf32>
    %65 = vector.broadcast %63 : vector<1x32xf32> to vector<8x32xf32>
    %66 = arith.addf %64, %65 : vector<8x32xf32>
    %67 = vector.shape_cast %52 : vector<8x32xf32> to vector<8x4x8xf32>
    %68 = tpu.transpose %67, [1, 0, 2] : vector<8x4x8xf32> -> vector<4x8x8xf32>
    %69 = arith.truncf %68 : vector<4x8x8xf32> to vector<4x8x8xbf16>
    %70 = vector.shape_cast %59 : vector<8x32xf32> to vector<8x4x8xf32>
    %71 = tpu.transpose %70, [1, 0, 2] : vector<8x4x8xf32> -> vector<4x8x8xf32>
    %72 = arith.truncf %71 : vector<4x8x8xf32> to vector<4x8x8xbf16>
    %73 = vector.shape_cast %66 : vector<8x32xf32> to vector<8x4x8xf32>
    %74 = tpu.transpose %73, [1, 0, 2] : vector<8x4x8xf32> -> vector<4x8x8xf32>
    %75 = arith.truncf %74 : vector<4x8x8xf32> to vector<4x8x8xbf16>
    "tpu.trace_start"() <{level = 10 : i32, message = "ntd,nsd->nts"}> : () -> ()
    %cst_42 = arith.constant dense<0.000000e+00> : vector<4x8x8xf32>
    %76 = tpu.matmul %69, %72, %cst_42 {dimension_numbers = #tpu.dot_dimension_numbers<[2], [2], [1], [1], [0, 0, 0, 1, 1, 1], [0], [0]>} : vector<4x8x8xbf16>, vector<4x8x8xbf16>, vector<4x8x8xf32> -> vector<4x8x8xf32>
    "tpu.trace_stop"() : () -> ()
    %77 = vector.shape_cast %16 : vector<8x8xf32> to vector<1x8x8xf32>
    %78 = vector.broadcast %77 : vector<1x8x8xf32> to vector<4x8x8xf32>
    %79 = arith.addf %76, %78 : vector<4x8x8xf32>
    %cst_43 = arith.constant dense<0xFF800000> : vector<4x8xf32>
    %80 = vector.multi_reduction <maximumf>, %79, %cst_43 [2] : vector<4x8x8xf32> to vector<4x8xf32>
    %81 = vector.shape_cast %80 : vector<4x8xf32> to vector<4x8x1xf32>
    %82 = vector.broadcast %81 : vector<4x8x1xf32> to vector<4x8x8xf32>
    %83 = arith.subf %79, %82 : vector<4x8x8xf32>
    %84 = math.exp %83 : vector<4x8x8xf32>
    %cst_44 = arith.constant dense<0.000000e+00> : vector<4x8xf32>
    %85 = vector.multi_reduction <add>, %84, %cst_44 [2] : vector<4x8x8xf32> to vector<4x8xf32>
    %86 = vector.shape_cast %85 : vector<4x8xf32> to vector<4x8x1xf32>
    %87 = tpu.reciprocal %86 {approx = true} : vector<4x8x1xf32> -> vector<4x8x1xf32>
    %88 = vector.broadcast %87 : vector<4x8x1xf32> to vector<4x8x8xf32>
    %89 = arith.mulf %84, %88 : vector<4x8x8xf32>
    %90 = arith.truncf %89 : vector<4x8x8xf32> to vector<4x8x8xbf16>
    "tpu.trace_start"() <{level = 10 : i32, message = "nts,nsd->ntd"}> : () -> ()
    %cst_45 = arith.constant dense<0.000000e+00> : vector<4x8x8xf32>
    %91 = tpu.matmul %90, %75, %cst_45 {dimension_numbers = #tpu.dot_dimension_numbers<[2], [1], [1], [2], [0, 0, 0, 1, 1, 2], [0], [0]>} : vector<4x8x8xbf16>, vector<4x8x8xbf16>, vector<4x8x8xf32> -> vector<4x8x8xf32>
    "tpu.trace_stop"() : () -> ()
    %92 = tpu.transpose %91, [1, 0, 2] : vector<4x8x8xf32> -> vector<8x4x8xf32>
    %93 = vector.shape_cast %92 : vector<8x4x8xf32> to vector<8x32xf32>
    %94 = arith.truncf %93 : vector<8x32xf32> to vector<8x32xbf16>
    %c0_46 = arith.constant 0 : index
    %c0_47 = arith.constant 0 : index
    %c0_48 = arith.constant 0 : index
    %95 = vector.load %arg13[%c0_46, %c0_47, %c0_48] : memref<1x32x32xbf16, #tpu.memory_space<vmem>>, vector<1x32x32xbf16>
    %96 = vector.shape_cast %95 : vector<1x32x32xbf16> to vector<32x32xbf16>
    %c0_49 = arith.constant 0 : index
    %c0_50 = arith.constant 0 : index
    %c0_51 = arith.constant 0 : index
    %97 = vector.load %arg14[%c0_49, %c0_50, %c0_51] : memref<1x1x32xf32, #tpu.memory_space<vmem>>, vector<1x1x32xf32>
    %98 = vector.shape_cast %97 : vector<1x1x32xf32> to vector<1x32xf32>
    %cst_52 = arith.constant dense<0.000000e+00> : vector<8x32xf32>
    %99 = tpu.matmul %94, %96, %cst_52 {dimension_numbers = #tpu.dot_dimension_numbers<[1], [0], [0], [1], [0, 0, 1, 1], [], []>} : vector<8x32xbf16>, vector<32x32xbf16>, vector<8x32xf32> -> vector<8x32xf32>
    %100 = vector.broadcast %98 : vector<1x32xf32> to vector<8x32xf32>
    %101 = arith.addf %99, %100 : vector<8x32xf32>
    %102 = arith.addf %101, %4 : vector<8x32xf32>
    %c0_53 = arith.constant 0 : index
    %c0_54 = arith.constant 0 : index
    %c0_55 = arith.constant 0 : index
    %103 = vector.load %arg15[%c0_53, %c0_54, %c0_55] : memref<1x2x32xf32, #tpu.memory_space<vmem>>, vector<1x2x32xf32>
    %104 = vector.shape_cast %103 : vector<1x2x32xf32> to vector<2x32xf32>
    %105 = vector.extract_strided_slice %104 {offsets = [0, 0], sizes = [1, 32], strides = [1, 1]} : vector<2x32xf32> to vector<1x32xf32>
    %106 = vector.extract_strided_slice %104 {offsets = [1, 0], sizes = [1, 32], strides = [1, 1]} : vector<2x32xf32> to vector<1x32xf32>
    %cst_56 = arith.constant dense<0.000000e+00> : vector<8xf32>
    %107 = vector.multi_reduction <add>, %102, %cst_56 [1] : vector<8x32xf32> to vector<8xf32>
    %108 = vector.shape_cast %107 : vector<8xf32> to vector<8x1xf32>
    %cst_57 = arith.constant 3.200000e+01 : f32
    %109 = vector.broadcast %cst_57 : f32 to vector<8x1xf32>
    %110 = arith.divf %108, %109 : vector<8x1xf32>
    %111 = vector.broadcast %110 : vector<8x1xf32> to vector<8x32xf32>
    %112 = arith.subf %102, %111 : vector<8x32xf32>
    %113 = arith.mulf %112, %112 : vector<8x32xf32>
    %cst_58 = arith.constant dense<0.000000e+00> : vector<8xf32>
    %114 = vector.multi_reduction <add>, %113, %cst_58 [1] : vector<8x32xf32> to vector<8xf32>
    %115 = vector.shape_cast %114 : vector<8xf32> to vector<8x1xf32>
    %cst_59 = arith.constant 3.200000e+01 : f32
    %116 = vector.broadcast %cst_59 : f32 to vector<8x1xf32>
    %117 = arith.divf %115, %116 : vector<8x1xf32>
    %118 = vector.broadcast %110 : vector<8x1xf32> to vector<8x32xf32>
    %119 = arith.subf %102, %118 : vector<8x32xf32>
    %cst_60 = arith.constant 9.99999997E-7 : f32
    %120 = vector.broadcast %cst_60 : f32 to vector<8x1xf32>
    %121 = arith.addf %117, %120 : vector<8x1xf32>
    %122 = math.rsqrt %121 : vector<8x1xf32>
    %123 = vector.broadcast %122 : vector<8x1xf32> to vector<8x32xf32>
    %124 = arith.mulf %119, %123 : vector<8x32xf32>
    %125 = vector.broadcast %105 : vector<1x32xf32> to vector<8x32xf32>
    %126 = arith.mulf %124, %125 : vector<8x32xf32>
    %127 = vector.broadcast %106 : vector<1x32xf32> to vector<8x32xf32>
    %128 = arith.addf %126, %127 : vector<8x32xf32>
    %129 = arith.truncf %128 : vector<8x32xf32> to vector<8x32xbf16>
    %c0_61 = arith.constant 0 : index
    %c0_62 = arith.constant 0 : index
    %c0_63 = arith.constant 0 : index
    %130 = vector.load %arg16[%c0_61, %c0_62, %c0_63] : memref<1x32x32xbf16, #tpu.memory_space<vmem>>, vector<1x32x32xbf16>
    %131 = vector.shape_cast %130 : vector<1x32x32xbf16> to vector<32x32xbf16>
    %c0_64 = arith.constant 0 : index
    %c0_65 = arith.constant 0 : index
    %c0_66 = arith.constant 0 : index
    %132 = vector.load %arg17[%c0_64, %c0_65, %c0_66] : memref<1x1x32xf32, #tpu.memory_space<vmem>>, vector<1x1x32xf32>
    %133 = vector.shape_cast %132 : vector<1x1x32xf32> to vector<1x32xf32>
    %cst_67 = arith.constant dense<0.000000e+00> : vector<8x32xf32>
    %134 = tpu.matmul %129, %131, %cst_67 {dimension_numbers = #tpu.dot_dimension_numbers<[1], [0], [0], [1], [0, 0, 1, 1], [], []>} : vector<8x32xbf16>, vector<32x32xbf16>, vector<8x32xf32> -> vector<8x32xf32>
    %135 = vector.broadcast %133 : vector<1x32xf32> to vector<8x32xf32>
    %136 = arith.addf %134, %135 : vector<8x32xf32>
    %c0_68 = arith.constant 0 : index
    %c0_69 = arith.constant 0 : index
    %c0_70 = arith.constant 0 : index
    %137 = vector.load %arg18[%c0_68, %c0_69, %c0_70] : memref<1x32x32xbf16, #tpu.memory_space<vmem>>, vector<1x32x32xbf16>
    %138 = vector.shape_cast %137 : vector<1x32x32xbf16> to vector<32x32xbf16>
    %c0_71 = arith.constant 0 : index
    %c0_72 = arith.constant 0 : index
    %c0_73 = arith.constant 0 : index
    %139 = vector.load %arg19[%c0_71, %c0_72, %c0_73] : memref<1x1x32xf32, #tpu.memory_space<vmem>>, vector<1x1x32xf32>
    %140 = vector.shape_cast %139 : vector<1x1x32xf32> to vector<1x32xf32>
    %cst_74 = arith.constant dense<0.000000e+00> : vector<10x32xf32>
    %141 = tpu.matmul %6, %138, %cst_74 {dimension_numbers = #tpu.dot_dimension_numbers<[1], [0], [0], [1], [0, 0, 1, 1], [], []>} : vector<10x32xbf16>, vector<32x32xbf16>, vector<10x32xf32> -> vector<10x32xf32>
    %142 = vector.broadcast %140 : vector<1x32xf32> to vector<10x32xf32>
    %143 = arith.addf %141, %142 : vector<10x32xf32>
    %c0_75 = arith.constant 0 : index
    %c0_76 = arith.constant 0 : index
    %c0_77 = arith.constant 0 : index
    %144 = vector.load %arg20[%c0_75, %c0_76, %c0_77] : memref<1x32x32xbf16, #tpu.memory_space<vmem>>, vector<1x32x32xbf16>
    %145 = vector.shape_cast %144 : vector<1x32x32xbf16> to vector<32x32xbf16>
    %c0_78 = arith.constant 0 : index
    %c0_79 = arith.constant 0 : index
    %c0_80 = arith.constant 0 : index
    %146 = vector.load %arg21[%c0_78, %c0_79, %c0_80] : memref<1x1x32xf32, #tpu.memory_space<vmem>>, vector<1x1x32xf32>
    %147 = vector.shape_cast %146 : vector<1x1x32xf32> to vector<1x32xf32>
    %cst_81 = arith.constant dense<0.000000e+00> : vector<10x32xf32>
    %148 = tpu.matmul %6, %145, %cst_81 {dimension_numbers = #tpu.dot_dimension_numbers<[1], [0], [0], [1], [0, 0, 1, 1], [], []>} : vector<10x32xbf16>, vector<32x32xbf16>, vector<10x32xf32> -> vector<10x32xf32>
    %149 = vector.broadcast %147 : vector<1x32xf32> to vector<10x32xf32>
    %150 = arith.addf %148, %149 : vector<10x32xf32>
    %151 = vector.shape_cast %136 : vector<8x32xf32> to vector<8x4x8xf32>
    %152 = tpu.transpose %151, [1, 0, 2] : vector<8x4x8xf32> -> vector<4x8x8xf32>
    %153 = arith.truncf %152 : vector<4x8x8xf32> to vector<4x8x8xbf16>
    %154 = vector.shape_cast %143 : vector<10x32xf32> to vector<10x4x8xf32>
    %155 = tpu.transpose %154, [1, 0, 2] : vector<10x4x8xf32> -> vector<4x10x8xf32>
    %156 = arith.truncf %155 : vector<4x10x8xf32> to vector<4x10x8xbf16>
    %157 = vector.shape_cast %150 : vector<10x32xf32> to vector<10x4x8xf32>
    %158 = tpu.transpose %157, [1, 0, 2] : vector<10x4x8xf32> -> vector<4x10x8xf32>
    %159 = arith.truncf %158 : vector<4x10x8xf32> to vector<4x10x8xbf16>
    "tpu.trace_start"() <{level = 10 : i32, message = "ntd,nsd->nts"}> : () -> ()
    %cst_82 = arith.constant dense<0.000000e+00> : vector<4x8x10xf32>
    %160 = tpu.matmul %153, %156, %cst_82 {dimension_numbers = #tpu.dot_dimension_numbers<[2], [2], [1], [1], [0, 0, 0, 1, 1, 1], [0], [0]>} : vector<4x8x8xbf16>, vector<4x10x8xbf16>, vector<4x8x10xf32> -> vector<4x8x10xf32>
    "tpu.trace_stop"() : () -> ()
    %161 = vector.shape_cast %18 : vector<1x10xf32> to vector<1x1x10xf32>
    %162 = vector.broadcast %161 : vector<1x1x10xf32> to vector<4x8x10xf32>
    %163 = arith.addf %160, %162 : vector<4x8x10xf32>
    %cst_83 = arith.constant dense<0xFF800000> : vector<4x8xf32>
    %164 = vector.multi_reduction <maximumf>, %163, %cst_83 [2] : vector<4x8x10xf32> to vector<4x8xf32>
    %165 = vector.shape_cast %164 : vector<4x8xf32> to vector<4x8x1xf32>
    %166 = vector.broadcast %165 : vector<4x8x1xf32> to vector<4x8x10xf32>
    %167 = arith.subf %163, %166 : vector<4x8x10xf32>
    %168 = math.exp %167 : vector<4x8x10xf32>
    %cst_84 = arith.constant dense<0.000000e+00> : vector<4x8xf32>
    %169 = vector.multi_reduction <add>, %168, %cst_84 [2] : vector<4x8x10xf32> to vector<4x8xf32>
    %170 = vector.shape_cast %169 : vector<4x8xf32> to vector<4x8x1xf32>
    %171 = tpu.reciprocal %170 {approx = true} : vector<4x8x1xf32> -> vector<4x8x1xf32>
    %172 = vector.broadcast %171 : vector<4x8x1xf32> to vector<4x8x10xf32>
    %173 = arith.mulf %168, %172 : vector<4x8x10xf32>
    %174 = arith.truncf %173 : vector<4x8x10xf32> to vector<4x8x10xbf16>
    "tpu.trace_start"() <{level = 10 : i32, message = "nts,nsd->ntd"}> : () -> ()
    %cst_85 = arith.constant dense<0.000000e+00> : vector<4x8x8xf32>
    %175 = tpu.matmul %174, %159, %cst_85 {dimension_numbers = #tpu.dot_dimension_numbers<[2], [1], [1], [2], [0, 0, 0, 1, 1, 2], [0], [0]>} : vector<4x8x10xbf16>, vector<4x10x8xbf16>, vector<4x8x8xf32> -> vector<4x8x8xf32>
    "tpu.trace_stop"() : () -> ()
    %176 = tpu.transpose %175, [1, 0, 2] : vector<4x8x8xf32> -> vector<8x4x8xf32>
    %177 = vector.shape_cast %176 : vector<8x4x8xf32> to vector<8x32xf32>
    %178 = arith.truncf %177 : vector<8x32xf32> to vector<8x32xbf16>
    %c0_86 = arith.constant 0 : index
    %c0_87 = arith.constant 0 : index
    %c0_88 = arith.constant 0 : index
    %179 = vector.load %arg22[%c0_86, %c0_87, %c0_88] : memref<1x32x32xbf16, #tpu.memory_space<vmem>>, vector<1x32x32xbf16>
    %180 = vector.shape_cast %179 : vector<1x32x32xbf16> to vector<32x32xbf16>
    %c0_89 = arith.constant 0 : index
    %c0_90 = arith.constant 0 : index
    %c0_91 = arith.constant 0 : index
    %181 = vector.load %arg23[%c0_89, %c0_90, %c0_91] : memref<1x1x32xf32, #tpu.memory_space<vmem>>, vector<1x1x32xf32>
    %182 = vector.shape_cast %181 : vector<1x1x32xf32> to vector<1x32xf32>
    %cst_92 = arith.constant dense<0.000000e+00> : vector<8x32xf32>
    %183 = tpu.matmul %178, %180, %cst_92 {dimension_numbers = #tpu.dot_dimension_numbers<[1], [0], [0], [1], [0, 0, 1, 1], [], []>} : vector<8x32xbf16>, vector<32x32xbf16>, vector<8x32xf32> -> vector<8x32xf32>
    %184 = vector.broadcast %182 : vector<1x32xf32> to vector<8x32xf32>
    %185 = arith.addf %183, %184 : vector<8x32xf32>
    %186 = arith.addf %185, %102 : vector<8x32xf32>
    %c0_93 = arith.constant 0 : index
    %c0_94 = arith.constant 0 : index
    %c0_95 = arith.constant 0 : index
    %187 = vector.load %arg24[%c0_93, %c0_94, %c0_95] : memref<1x2x32xf32, #tpu.memory_space<vmem>>, vector<1x2x32xf32>
    %188 = vector.shape_cast %187 : vector<1x2x32xf32> to vector<2x32xf32>
    %189 = vector.extract_strided_slice %188 {offsets = [0, 0], sizes = [1, 32], strides = [1, 1]} : vector<2x32xf32> to vector<1x32xf32>
    %190 = vector.extract_strided_slice %188 {offsets = [1, 0], sizes = [1, 32], strides = [1, 1]} : vector<2x32xf32> to vector<1x32xf32>
    %cst_96 = arith.constant dense<0.000000e+00> : vector<8xf32>
    %191 = vector.multi_reduction <add>, %186, %cst_96 [1] : vector<8x32xf32> to vector<8xf32>
    %192 = vector.shape_cast %191 : vector<8xf32> to vector<8x1xf32>
    %cst_97 = arith.constant 3.200000e+01 : f32
    %193 = vector.broadcast %cst_97 : f32 to vector<8x1xf32>
    %194 = arith.divf %192, %193 : vector<8x1xf32>
    %195 = vector.broadcast %194 : vector<8x1xf32> to vector<8x32xf32>
    %196 = arith.subf %186, %195 : vector<8x32xf32>
    %197 = arith.mulf %196, %196 : vector<8x32xf32>
    %cst_98 = arith.constant dense<0.000000e+00> : vector<8xf32>
    %198 = vector.multi_reduction <add>, %197, %cst_98 [1] : vector<8x32xf32> to vector<8xf32>
    %199 = vector.shape_cast %198 : vector<8xf32> to vector<8x1xf32>
    %cst_99 = arith.constant 3.200000e+01 : f32
    %200 = vector.broadcast %cst_99 : f32 to vector<8x1xf32>
    %201 = arith.divf %199, %200 : vector<8x1xf32>
    %202 = vector.broadcast %194 : vector<8x1xf32> to vector<8x32xf32>
    %203 = arith.subf %186, %202 : vector<8x32xf32>
    %cst_100 = arith.constant 9.99999997E-7 : f32
    %204 = vector.broadcast %cst_100 : f32 to vector<8x1xf32>
    %205 = arith.addf %201, %204 : vector<8x1xf32>
    %206 = math.rsqrt %205 : vector<8x1xf32>
    %207 = vector.broadcast %206 : vector<8x1xf32> to vector<8x32xf32>
    %208 = arith.mulf %203, %207 : vector<8x32xf32>
    %209 = vector.broadcast %189 : vector<1x32xf32> to vector<8x32xf32>
    %210 = arith.mulf %208, %209 : vector<8x32xf32>
    %211 = vector.broadcast %190 : vector<1x32xf32> to vector<8x32xf32>
    %212 = arith.addf %210, %211 : vector<8x32xf32>
    %213 = arith.truncf %212 : vector<8x32xf32> to vector<8x32xbf16>
    %c0_101 = arith.constant 0 : index
    %c0_102 = arith.constant 0 : index
    %c0_103 = arith.constant 0 : index
    %214 = vector.load %arg25[%c0_101, %c0_102, %c0_103] : memref<1x32x64xbf16, #tpu.memory_space<vmem>>, vector<1x32x64xbf16>
    %215 = vector.shape_cast %214 : vector<1x32x64xbf16> to vector<32x64xbf16>
    %c0_104 = arith.constant 0 : index
    %c0_105 = arith.constant 0 : index
    %c0_106 = arith.constant 0 : index
    %216 = vector.load %arg26[%c0_104, %c0_105, %c0_106] : memref<1x1x64xf32, #tpu.memory_space<vmem>>, vector<1x1x64xf32>
    %217 = vector.shape_cast %216 : vector<1x1x64xf32> to vector<1x64xf32>
    %cst_107 = arith.constant dense<0.000000e+00> : vector<8x64xf32>
    %218 = tpu.matmul %213, %215, %cst_107 {dimension_numbers = #tpu.dot_dimension_numbers<[1], [0], [0], [1], [0, 0, 1, 1], [], []>} : vector<8x32xbf16>, vector<32x64xbf16>, vector<8x64xf32> -> vector<8x64xf32>
    %219 = vector.broadcast %217 : vector<1x64xf32> to vector<8x64xf32>
    %220 = arith.addf %218, %219 : vector<8x64xf32>
    %cst_108 = arith.constant 0.000000e+00 : f32
    %221 = vector.broadcast %cst_108 : f32 to vector<8x64xf32>
    %222 = arith.maximumf %220, %221 : vector<8x64xf32>
    %223 = arith.truncf %222 : vector<8x64xf32> to vector<8x64xbf16>
    %c0_109 = arith.constant 0 : index
    %c0_110 = arith.constant 0 : index
    %c0_111 = arith.constant 0 : index
    %224 = vector.load %arg27[%c0_109, %c0_110, %c0_111] : memref<1x64x32xbf16, #tpu.memory_space<vmem>>, vector<1x64x32xbf16>
    %225 = vector.shape_cast %224 : vector<1x64x32xbf16> to vector<64x32xbf16>
    %c0_112 = arith.constant 0 : index
    %c0_113 = arith.constant 0 : index
    %c0_114 = arith.constant 0 : index
    %226 = vector.load %arg28[%c0_112, %c0_113, %c0_114] : memref<1x1x32xf32, #tpu.memory_space<vmem>>, vector<1x1x32xf32>
    %227 = vector.shape_cast %226 : vector<1x1x32xf32> to vector<1x32xf32>
    %cst_115 = arith.constant dense<0.000000e+00> : vector<8x32xf32>
    %228 = tpu.matmul %223, %225, %cst_115 {dimension_numbers = #tpu.dot_dimension_numbers<[1], [0], [0], [1], [0, 0, 1, 1], [], []>} : vector<8x64xbf16>, vector<64x32xbf16>, vector<8x32xf32> -> vector<8x32xf32>
    %229 = vector.broadcast %227 : vector<1x32xf32> to vector<8x32xf32>
    %230 = arith.addf %228, %229 : vector<8x32xf32>
    %231 = arith.addf %230, %186 : vector<8x32xf32>
    %c0_116 = arith.constant 0 : index
    %c0_117 = arith.constant 0 : index
    %c0_118 = arith.constant 0 : index
    %232 = vector.load %arg29[%c0_116, %c0_117, %c0_118] : memref<1x8x32xf32, #tpu.memory_space<vmem>>, vector<1x8x32xf32>
    %233 = vector.shape_cast %232 : vector<1x8x32xf32> to vector<8x32xf32>
    %234 = vector.shape_cast %231 : vector<8x32xf32> to vector<1x8x32xf32>
    tpu.vector_store %arg29[%c0_116, %c0_117, %c0_118], %234 {strides = array<i32>} : memref<1x8x32xf32, #tpu.memory_space<vmem>>, vector<1x8x32xf32>,
    return
  }
  func.func @transform_0(%arg0: i32, %arg1: i32) -> (i32, i32, i32) {
    %c0_i32 = arith.constant 0 : i32
    %c0_i32_0 = arith.constant 0 : i32
    %c0_i32_1 = arith.constant 0 : i32
    return %arg0, %c0_i32, %c0_i32_0 : i32, i32, i32
  }
  func.func @transform_1(%arg0: i32, %arg1: i32) -> (i32, i32, i32) {
    %c0_i32 = arith.constant 0 : i32
    %c0_i32_0 = arith.constant 0 : i32
    %c0_i32_1 = arith.constant 0 : i32
    return %arg0, %c0_i32, %c0_i32_0 : i32, i32, i32
  }
  func.func @transform_2(%arg0: i32, %arg1: i32) -> (i32, i32, i32) {
    %c0_i32 = arith.constant 0 : i32
    %c0_i32_0 = arith.constant 0 : i32
    %c0_i32_1 = arith.constant 0 : i32
    return %arg0, %c0_i32, %c0_i32_0 : i32, i32, i32
  }
  func.func @transform_3(%arg0: i32, %arg1: i32) -> (i32, i32, i32) {
    %c0_i32 = arith.constant 0 : i32
    %c0_i32_0 = arith.constant 0 : i32
    %c0_i32_1 = arith.constant 0 : i32
    return %arg0, %c0_i32, %c0_i32_0 : i32, i32, i32
  }
  func.func @transform_4(%arg0: i32, %arg1: i32) -> (i32, i32, i32) {
    %c0_i32 = arith.constant 0 : i32
    %c0_i32_0 = arith.constant 0 : i32
    %c0_i32_1 = arith.constant 0 : i32
    return %arg1, %c0_i32, %c0_i32_0 : i32, i32, i32
  }
  func.func @transform_5(%arg0: i32, %arg1: i32) -> (i32, i32, i32) {
    %c0_i32 = arith.constant 0 : i32
    %c0_i32_0 = arith.constant 0 : i32
    %c0_i32_1 = arith.constant 0 : i32
    return %arg1, %c0_i32, %c0_i32_0 : i32, i32, i32
  }
  func.func @transform_6(%arg0: i32, %arg1: i32) -> (i32, i32, i32) {
    %c0_i32 = arith.constant 0 : i32
    %c0_i32_0 = arith.constant 0 : i32
    %c0_i32_1 = arith.constant 0 : i32
    return %arg1, %c0_i32, %c0_i32_0 : i32, i32, i32
  }
  func.func @transform_7(%arg0: i32, %arg1: i32) -> (i32, i32, i32) {
    %c0_i32 = arith.constant 0 : i32
    %c0_i32_0 = arith.constant 0 : i32
    %c0_i32_1 = arith.constant 0 : i32
    return %arg1, %c0_i32, %c0_i32_0 : i32, i32, i32
  }
  func.func @transform_8(%arg0: i32, %arg1: i32) -> (i32, i32, i32) {
    %c0_i32 = arith.constant 0 : i32
    %c0_i32_0 = arith.constant 0 : i32
    %c0_i32_1 = arith.constant 0 : i32
    return %arg1, %c0_i32, %c0_i32_0 : i32, i32, i32
  }
  func.func @transform_9(%arg0: i32, %arg1: i32) -> (i32, i32, i32) {
    %c0_i32 = arith.constant 0 : i32
    %c0_i32_0 = arith.constant 0 : i32
    %c0_i32_1 = arith.constant 0 : i32
    return %arg1, %c0_i32, %c0_i32_0 : i32, i32, i32
  }
  func.func @transform_10(%arg0: i32, %arg1: i32) -> (i32, i32, i32) {
    %c0_i32 = arith.constant 0 : i32
    %c0_i32_0 = arith.constant 0 : i32
    %c0_i32_1 = arith.constant 0 : i32
    return %arg1, %c0_i32, %c0_i32_0 : i32, i32, i32
  }
  func.func @transform_11(%arg0: i32, %arg1: i32) -> (i32, i32, i32) {
    %c0_i32 = arith.constant 0 : i32
    %c0_i32_0 = arith.constant 0 : i32
    %c0_i32_1 = arith.constant 0 : i32
    return %arg1, %c0_i32, %c0_i32_0 : i32, i32, i32
  }
  func.func @transform_12(%arg0: i32, %arg1: i32) -> (i32, i32, i32) {
    %c0_i32 = arith.constant 0 : i32
    %c0_i32_0 = arith.constant 0 : i32
    %c0_i32_1 = arith.constant 0 : i32
    return %arg1, %c0_i32, %c0_i32_0 : i32, i32, i32
  }
  func.func @transform_13(%arg0: i32, %arg1: i32) -> (i32, i32, i32) {
    %c0_i32 = arith.constant 0 : i32
    %c0_i32_0 = arith.constant 0 : i32
    %c0_i32_1 = arith.constant 0 : i32
    return %arg1, %c0_i32, %c0_i32_0 : i32, i32, i32
  }
  func.func @transform_14(%arg0: i32, %arg1: i32) -> (i32, i32, i32) {
    %c0_i32 = arith.constant 0 : i32
    %c0_i32_0 = arith.constant 0 : i32
    %c0_i32_1 = arith.constant 0 : i32
    return %arg1, %c0_i32, %c0_i32_0 : i32, i32, i32
  }
  func.func @transform_15(%arg0: i32, %arg1: i32) -> (i32, i32, i32) {
    %c0_i32 = arith.constant 0 : i32
    %c0_i32_0 = arith.constant 0 : i32
    %c0_i32_1 = arith.constant 0 : i32
    return %arg1, %c0_i32, %c0_i32_0 : i32, i32, i32
  }
  func.func @transform_16(%arg0: i32, %arg1: i32) -> (i32, i32, i32) {
    %c0_i32 = arith.constant 0 : i32
    %c0_i32_0 = arith.constant 0 : i32
    %c0_i32_1 = arith.constant 0 : i32
    return %arg1, %c0_i32, %c0_i32_0 : i32, i32, i32
  }
  func.func @transform_17(%arg0: i32, %arg1: i32) -> (i32, i32, i32) {
    %c0_i32 = arith.constant 0 : i32
    %c0_i32_0 = arith.constant 0 : i32
    %c0_i32_1 = arith.constant 0 : i32
    return %arg1, %c0_i32, %c0_i32_0 : i32, i32, i32
  }
  func.func @transform_18(%arg0: i32, %arg1: i32) -> (i32, i32, i32) {
    %c0_i32 = arith.constant 0 : i32
    %c0_i32_0 = arith.constant 0 : i32
    %c0_i32_1 = arith.constant 0 : i32
    return %arg1, %c0_i32, %c0_i32_0 : i32, i32, i32
  }
  func.func @transform_19(%arg0: i32, %arg1: i32) -> (i32, i32, i32) {
    %c0_i32 = arith.constant 0 : i32
    %c0_i32_0 = arith.constant 0 : i32
    %c0_i32_1 = arith.constant 0 : i32
    return %arg1, %c0_i32, %c0_i32_0 : i32, i32, i32
  }
  func.func @transform_20(%arg0: i32, %arg1: i32) -> (i32, i32, i32) {
    %c0_i32 = arith.constant 0 : i32
    %c0_i32_0 = arith.constant 0 : i32
    %c0_i32_1 = arith.constant 0 : i32
    return %arg1, %c0_i32, %c0_i32_0 : i32, i32, i32
  }
  func.func @transform_21(%arg0: i32, %arg1: i32) -> (i32, i32, i32) {
    %c0_i32 = arith.constant 0 : i32
    %c0_i32_0 = arith.constant 0 : i32
    %c0_i32_1 = arith.constant 0 : i32
    return %arg1, %c0_i32, %c0_i32_0 : i32, i32, i32
  }
  func.func @transform_22(%arg0: i32, %arg1: i32) -> (i32, i32, i32) {
    %c0_i32 = arith.constant 0 : i32
    %c0_i32_0 = arith.constant 0 : i32
    %c0_i32_1 = arith.constant 0 : i32
    return %arg1, %c0_i32, %c0_i32_0 : i32, i32, i32
  }
  func.func @transform_23(%arg0: i32, %arg1: i32) -> (i32, i32, i32) {
    %c0_i32 = arith.constant 0 : i32
    %c0_i32_0 = arith.constant 0 : i32
    %c0_i32_1 = arith.constant 0 : i32
    return %arg1, %c0_i32, %c0_i32_0 : i32, i32, i32
  }
  func.func @transform_24(%arg0: i32, %arg1: i32) -> (i32, i32, i32) {
    %c0_i32 = arith.constant 0 : i32
    %c0_i32_0 = arith.constant 0 : i32
    %c0_i32_1 = arith.constant 0 : i32
    return %arg1, %c0_i32, %c0_i32_0 : i32, i32, i32
  }
  func.func @transform_25(%arg0: i32, %arg1: i32) -> (i32, i32, i32) {
    %c0_i32 = arith.constant 0 : i32
    %c0_i32_0 = arith.constant 0 : i32
    %c0_i32_1 = arith.constant 0 : i32
    return %arg1, %c0_i32, %c0_i32_0 : i32, i32, i32
  }
  func.func @transform_26(%arg0: i32, %arg1: i32) -> (i32, i32, i32) {
    %c0_i32 = arith.constant 0 : i32
    %c0_i32_0 = arith.constant 0 : i32
    %c0_i32_1 = arith.constant 0 : i32
    return %arg1, %c0_i32, %c0_i32_0 : i32, i32, i32
  }
  func.func @transform_27(%arg0: i32, %arg1: i32) -> (i32, i32, i32) {
    %c0_i32 = arith.constant 0 : i32
    %c0_i32_0 = arith.constant 0 : i32
    %c0_i32_1 = arith.constant 0 : i32
    return %arg0, %c0_i32, %c0_i32_0 : i32, i32, i32
  }
}

</mosaic_0001>

<llo_original>
// kernel: tpu_custom_call.1
$region0: #{tpu_custom_call.1}
  #allocation0 [shape = 'u32[]', space=smem, size = 0x4, offset = 0x4, fixed_abs, tag = 'smem constant byte address 0x4 - core index']
  #allocation1 [shape = 'u32[72,128]{1,0:T(1,128)}', space=vmem, size = 0x9000, scoped, tag = 'internal scratch']
  %s0 = inlined_call_operand.vmem [shape: f32[2,8,32], index: 0, kind: input, shape index: {}]
  %s1 = inlined_call_operand.vmem [shape: bf16[2,10,32], index: 1, kind: input, shape index: {}]
  %s2 = inlined_call_operand.vmem [shape: f32[2,1,8], index: 2, kind: input, shape index: {}]
  %s3 = inlined_call_operand.hbm [shape: f32[2,1,10], index: 3, kind: input, shape index: {}]
  %s4 = inlined_call_operand.hbm [shape: f32[2,2,32], index: 4, kind: input, shape index: {}]
  %s5 = inlined_call_operand.vmem [shape: bf16[2,32,32], index: 5, kind: input, shape index: {}]
  %s6 = inlined_call_operand.hbm [shape: f32[2,1,32], index: 6, kind: input, shape index: {}]
  %s7 = inlined_call_operand.vmem [shape: bf16[2,32,32], index: 7, kind: input, shape index: {}]
  %s8 = inlined_call_operand.hbm [shape: f32[2,1,32], index: 8, kind: input, shape index: {}]
  %s9 = inlined_call_operand.vmem [shape: bf16[2,32,32], index: 9, kind: input, shape index: {}]
  %s10 = inlined_call_operand.hbm [shape: f32[2,1,32], index: 10, kind: input, shape index: {}]
  %s11 = inlined_call_operand.hbm [shape: bf16[2,32,32], index: 11, kind: input, shape index: {}]
  %s12 = inlined_call_operand.hbm [shape: f32[2,1,32], index: 12, kind: input, shape index: {}]
  %s13 = inlined_call_operand.hbm [shape: f32[2,2,32], index: 13, kind: input, shape index: {}]
  %s14 = inlined_call_operand.hbm [shape: bf16[2,32,32], index: 14, kind: input, shape index: {}]
  %s15 = inlined_call_operand.hbm [shape: f32[2,1,32], index: 15, kind: input, shape index: {}]
  %s16 = inlined_call_operand.hbm [shape: bf16[2,32,32], index: 16, kind: input, shape index: {}]
  %s17 = inlined_call_operand.hbm [shape: f32[2,1,32], index: 17, kind: input, shape index: {}]
  %s18 = inlined_call_operand.hbm [shape: bf16[2,32,32], index: 18, kind: input, shape index: {}]
  %s19 = inlined_call_operand.hbm [shape: f32[2,1,32], index: 19, kind: input, shape index: {}]
  %s20 = inlined_call_operand.hbm [shape: bf16[2,32,32], index: 20, kind: input, shape index: {}]
  %s21 = inlined_call_operand.hbm [shape: f32[2,1,32], index: 21, kind: input, shape index: {}]
  %s22 = inlined_call_operand.hbm [shape: f32[2,2,32], index: 22, kind: input, shape index: {}]
  %s23 = inlined_call_operand.hbm [shape: bf16[2,32,64], index: 23, kind: input, shape index: {}]
  %s24 = inlined_call_operand.hbm [shape: f32[2,1,64], index: 24, kind: input, shape index: {}]
  %s25 = inlined_call_operand.vmem [shape: bf16[2,64,32], index: 25, kind: input, shape index: {}]
  %s26 = inlined_call_operand.hbm [shape: f32[2,1,32], index: 26, kind: input, shape index: {}]
  %s27 = inlined_call_operand.hbm [shape: f32[2,8,32], index: 27, kind: output, shape index: {}]
  %s28 = sld [smem:[#allocation0]]
  $region225: #{tpu_custom_call.1} parent=0
    _
  %s30 = ssub.s32 1, %s28
  %s31 = scalar_select 0, %s30, %s28
  $region1: #{tpu_custom_call.1} parent=0
    #allocation2 [shape = 'u8[1024]{0}', space=vmem, size = 0x400, scoped, tag = 'input window, operand 3']
    #allocation3 [shape = 's32[2]{0}', space=sflag, size = 0x8, scoped, tag = 'scoped memory for tpu_custom_call.1']
    #allocation4 [shape = 's32[2]{0}', space=sflag, size = 0x8, scoped, tag = 'scoped memory for tpu_custom_call.1']
    #allocation5 [shape = 'u8[2048]{0}', space=vmem, size = 0x800, scoped, tag = 'input window, operand 4']
    #allocation6 [shape = 's32[2]{0}', space=sflag, size = 0x8, scoped, tag = 'scoped memory for tpu_custom_call.1']
    #allocation7 [shape = 'u8[1024]{0}', space=vmem, size = 0x400, scoped, tag = 'input window, operand 6']
    #allocation8 [shape = 'u8[1024]{0}', space=vmem, size = 0x400, scoped, tag = 'input window, operand 8']
    #allocation9 [shape = 's32[2]{0}', space=sflag, size = 0x8, scoped, tag = 'scoped memory for tpu_custom_call.1']
    #allocation10 [shape = 'u8[1024]{0}', space=vmem, size = 0x400, scoped, tag = 'input window, operand 10']
    #allocation11 [shape = 'u8[16384]{0}', space=vmem, size = 0x4000, scoped, tag = 'input window, operand 11']
    #allocation12 [shape = 's32[2]{0}', space=sflag, size = 0x8, scoped, tag = 'scoped memory for tpu_custom_call.1']
    #allocation13 [shape = 'u8[1024]{0}', space=vmem, size = 0x400, scoped, tag = 'input window, operand 12']
    #allocation14 [shape = 'u8[2048]{0}', space=vmem, size = 0x800, scoped, tag = 'input window, operand 13']
    #allocation15 [shape = 's32[2]{0}', space=sflag, size = 0x8, scoped, tag = 'scoped memory for tpu_custom_call.1']
    #allocation16 [shape = 'u8[16384]{0}', space=vmem, size = 0x4000, scoped, tag = 'input window, operand 14']
    #allocation17 [shape = 'u8[1024]{0}', space=vmem, size = 0x400, scoped, tag = 'input window, operand 15']
    #allocation18 [shape = 's32[2]{0}', space=sflag, size = 0x8, scoped, tag = 'scoped memory for tpu_custom_call.1']
    #allocation19 [shape = 'u8[16384]{0}', space=vmem, size = 0x4000, scoped, tag = 'input window, operand 16']
    #allocation20 [shape = 'u8[1024]{0}', space=vmem, size = 0x400, scoped, tag = 'input window, operand 17']
    #allocation21 [shape = 's32[2]{0}', space=sflag, size = 0x8, scoped, tag = 'scoped memory for tpu_custom_call.1']
    #allocation22 [shape = 'u8[16384]{0}', space=vmem, size = 0x4000, scoped, tag = 'input window, operand 18']
    #allocation23 [shape = 'u8[1024]{0}', space=vmem, size = 0x400, scoped, tag = 'input window, operand 19']
    #allocation24 [shape = 's32[2]{0}', space=sflag, size = 0x8, scoped, tag = 'scoped memory for tpu_custom_call.1']
    #allocation25 [shape = 'u8[16384]{0}', space=vmem, size = 0x4000, scoped, tag = 'input window, operand 20']
    #allocation26 [shape = 'u8[1024]{0}', space=vmem, size = 0x400, scoped, tag = 'input window, operand 21']
    #allocation27 [shape = 's32[2]{0}', space=sflag, size = 0x8, scoped, tag = 'scoped memory for tpu_custom_call.1']
    #allocation28 [shape = 'u8[2048]{0}', space=vmem, size = 0x800, scoped, tag = 'input window, operand 22']
    #allocation29 [shape = 'u8[16384]{0}', space=vmem, size = 0x4000, scoped, tag = 'input window, operand 23']
    #allocation30 [shape = 's32[2]{0}', space=sflag, size = 0x8, scoped, tag = 'scoped memory for tpu_custom_call.1']
    #allocation31 [shape = 'u8[1024]{0}', space=vmem, size = 0x400, scoped, tag = 'input window, operand 24']
    #allocation32 [shape = 'u8[1024]{0}', space=vmem, size = 0x400, scoped, tag = 'input window, operand 26']
    #allocation33 [shape = 's32[2]{0}', space=sflag, size = 0x8, scoped, tag = 'scoped memory for tpu_custom_call.1']
    #allocation34 [shape = 'u8[8192]{0}', space=vmem, size = 0x2000, scoped, tag = 'output window, operand 0']
    %32 = vsyncpa [#allocation3], 0
    %s33 = scalar_lea.sflag [#allocation3], 1
    %34 = vsyncpa %s33, 0
    %35 = vsyncpa [#allocation6], 0
    %s36 = scalar_lea.sflag [#allocation6], 1
    %37 = vsyncpa %s36, 0
    %38 = vsyncpa [#allocation9], 0
    %s39 = scalar_lea.sflag [#allocation9], 1
    %40 = vsyncpa %s39, 0
    %41 = vsyncpa [#allocation12], 0
    %s42 = scalar_lea.sflag [#allocation12], 1
    %43 = vsyncpa %s42, 0
    %44 = vsyncpa [#allocation15], 0
    %s45 = scalar_lea.sflag [#allocation15], 1
    %46 = vsyncpa %s45, 0
    %47 = vsyncpa [#allocation18], 0
    %s48 = scalar_lea.sflag [#allocation18], 1
    %49 = vsyncpa %s48, 0
    %50 = vsyncpa [#allocation21], 0
    %s51 = scalar_lea.sflag [#allocation21], 1
    %52 = vsyncpa %s51, 0
    %53 = vsyncpa [#allocation24], 0
    %s54 = scalar_lea.sflag [#allocation24], 1
    %55 = vsyncpa %s54, 0
    %56 = vsyncpa [#allocation27], 0
    %s57 = scalar_lea.sflag [#allocation27], 1
    %58 = vsyncpa %s57, 0
    %59 = vsyncpa [#allocation30], 0
    %s60 = scalar_lea.sflag [#allocation30], 1
    %61 = vsyncpa %s60, 0
    %62 = vsyncpa [#allocation33], 0
    %s63 = scalar_lea.sflag [#allocation33], 1
    %64 = vsyncpa %s63, 0
    %65 = vsyncpa [#allocation4], 0
    %s66 = scalar_lea.sflag [#allocation4], 1
    %67 = vsyncpa %s66, 0
    loop: start=0, step=1, limit=6
    $region2: #{tpu_custom_call.1} parent=1 // loop_pre_header
      _
    $region3: #{tpu_custom_call.1} parent=1 // loop_header
      %s69 = sphi 0, %s73
      %p70 = scmp.ge.s32.totalorder %s69, 6
      %s76 = sphi 0, %s88
      %s77 = sphi 0, %s84
      %s78 = sphi 0, %s76
      %s79 = sphi 0, %s77
      %s80 = sphi 0, %s78
      %s81 = sphi 0, %s79
      %s91 = sphi 0, %s93
      %s94 = sphi 0, %s91
      %s95 = sphi 0, %s94
      %s111 = sphi 0, %s95
      %s117 = sphi 0, %s119
      %s120 = sphi 0, %s117
      %s121 = sphi 0, %s120
      %s137 = sphi 0, %s121
      %s143 = sphi 0, %s145
      %s146 = sphi 0, %s143
      %s147 = sphi 0, %s146
      %s163 = sphi 0, %s147
      %s169 = sphi 0, %s171
      %s172 = sphi 0, %s169
      %s173 = sphi 0, %s172
      %s189 = sphi 0, %s173
      %s195 = sphi 0, %s197
      %s198 = sphi 0, %s195
      %s199 = sphi 0, %s198
      %s215 = sphi 0, %s199
      %s221 = sphi 0, %s223
      %s224 = sphi 0, %s221
      %s225 = sphi 0, %s224
      %s241 = sphi 0, %s225
      %s247 = sphi 0, %s249
      %s250 = sphi 0, %s247
      %s251 = sphi 0, %s250
      %s267 = sphi 0, %s251
      %s273 = sphi 0, %s275
      %s276 = sphi 0, %s273
      %s277 = sphi 0, %s276
      %s293 = sphi 0, %s277
      %s299 = sphi 0, %s301
      %s302 = sphi 0, %s299
      %s303 = sphi 0, %s302
      %s319 = sphi 0, %s303
      %s325 = sphi 0, %s327
      %s328 = sphi 0, %s325
      %s329 = sphi 0, %s328
      %s345 = sphi 0, %s329
      %s351 = sphi 0, %s353
      %s354 = sphi 0, %s351
      %s355 = sphi 0, %s354
      %s371 = sphi 0, %s355
      %s377 = sphi 0, %s379
      %s380 = sphi 0, %s377
      %s381 = sphi 0, %s380
      %s397 = sphi 0, %s381
      %s403 = sphi 0, %s405
      %s406 = sphi 0, %s403
      %s407 = sphi 0, %s406
      %s423 = sphi 0, %s407
      %s429 = sphi 0, %s431
      %s432 = sphi 0, %s429
      %s433 = sphi 0, %s432
      %s449 = sphi 0, %s433
      %s455 = sphi 0, %s457
      %s458 = sphi 0, %s455
      %s459 = sphi 0, %s458
      %s475 = sphi 0, %s459
      %s481 = sphi 0, %s483
      %s484 = sphi 0, %s481
      %s485 = sphi 0, %s484
      %s501 = sphi 0, %s485
      %s507 = sphi 0, %s509
      %s510 = sphi 0, %s507
      %s511 = sphi 0, %s510
      %s527 = sphi 0, %s511
      %s533 = sphi 0, %s535
      %s536 = sphi 0, %s533
      %s537 = sphi 0, %s536
      %s553 = sphi 0, %s537
      %s559 = sphi 0, %s561
      %s562 = sphi 0, %s559
      %s563 = sphi 0, %s562
      %s579 = sphi 0, %s563
      %s585 = sphi 0, %s587
      %s588 = sphi 0, %s585
      %s589 = sphi 0, %s588
      %s605 = sphi 0, %s589
      %s611 = sphi 0, %s613
      %s614 = sphi 0, %s611
      %s615 = sphi 0, %s614
      %s631 = sphi 0, %s615
      %s637 = sphi 0, %s639
      %s640 = sphi 0, %s637
      %s641 = sphi 0, %s640
      %s657 = sphi 0, %s641
      %s663 = sphi 0, %s665
      %s666 = sphi 0, %s663
      %s667 = sphi 0, %s666
      %s683 = sphi 0, %s667
      %s689 = sphi 0, %s691
      %s692 = sphi 0, %s689
      %s693 = sphi 0, %s692
      %s709 = sphi 0, %s693
      %s715 = sphi 0, %s717
      %s718 = sphi 0, %s715
      %s719 = sphi 0, %s718
      %s735 = sphi 0, %s719
      %s741 = sphi 0, %s743
      %s744 = sphi 0, %s741
      %s745 = sphi 0, %s744
      %s761 = sphi 0, %s745
      %s767 = sphi 0, %s769
      %s770 = sphi 0, %s767
      %s771 = sphi 0, %s770
      %s787 = sphi 0, %s771
      %s793 = sphi 0, %s795
      %s796 = sphi 0, %s793
      %s797 = sphi 0, %s796
      %s813 = sphi 0, %s797
    $region4: #{tpu_custom_call.1} parent=1 // loop_header_branch
      %72 = sbr.rel (%p70) target = $region8
    $region5: #{tpu_custom_call.1} parent=1 // loop_body
      %s74 = ssub.s32 %s69, 1
      %s75 = ssub.s32 %s69, 2
      %s82 = sadd.s32 1, %s77
      %p83 = scmp.ge.s32.totalorder %s82, 2
      %s84 = scalar_select %p83, 0, %s82
      %s85 = sadd.s32 1, %s76
      %s86 = scalar_select %p83, %s85, %s76
      %p87 = scmp.ge.s32.totalorder %s86, 2
      %s88 = scalar_select %p87, 0, %s86
      %s89 = ssub.s32 %s76, %s88
      %p90 = scmp.eq.s32.totalorder %s89, 0
      %s92 = sadd.s32 %s91, 1
      %s93 = scalar_select %p90, %s91, %s92
      %p96 = pneg %p90
      %p97 = scmp.eq.s32.totalorder %s69, 3
      %p98 = por %p96, %p97
      %p99 = scmp.ne.s32.totalorder %s91, %s94
      %p100 = scmp.eq.s32.totalorder %s69, 0
      %p101 = por %p99, %p100
      %p102 = scmp.ne.s32.totalorder %s91, %s94
      %p103 = scmp.eq.s32.totalorder %s74, 3
      %p104 = por %p102, %p103
      %p105 = scmp.ne.s32.totalorder %s94, %s95
      %p106 = scmp.eq.s32.totalorder %s74, 0
      %p107 = por %p105, %p106
      %p108 = scmp.ne.s32.totalorder %s94, %s95
      %p109 = scmp.eq.s32.totalorder %s75, 3
      %p110 = por %p108, %p109
      %p112 = scmp.ne.s32.totalorder %s95, %s111
      %p113 = scmp.eq.s32.totalorder %s75, 0
      %p114 = por %p112, %p113
      %s115 = ssub.s32 %s76, %s88
      %p116 = scmp.eq.s32.totalorder %s115, 0
      %s118 = sadd.s32 %s117, 1
      %s119 = scalar_select %p116, %s117, %s118
      %p122 = pneg %p116
      %p123 = scmp.eq.s32.totalorder %s69, 3
      %p124 = por %p122, %p123
      %p125 = scmp.ne.s32.totalorder %s117, %s120
      %p126 = scmp.eq.s32.totalorder %s69, 0
      %p127 = por %p125, %p126
      %p128 = scmp.ne.s32.totalorder %s117, %s120
      %p129 = scmp.eq.s32.totalorder %s74, 3
      %p130 = por %p128, %p129
      %p131 = scmp.ne.s32.totalorder %s120, %s121
      %p132 = scmp.eq.s32.totalorder %s74, 0
      %p133 = por %p131, %p132
      %p134 = scmp.ne.s32.totalorder %s120, %s121
      %p135 = scmp.eq.s32.totalorder %s75, 3
      %p136 = por %p134, %p135
      %p138 = scmp.ne.s32.totalorder %s121, %s137
      %p139 = scmp.eq.s32.totalorder %s75, 0
      %p140 = por %p138, %p139
      %s141 = ssub.s32 %s76, %s88
      %p142 = scmp.eq.s32.totalorder %s141, 0
      %s144 = sadd.s32 %s143, 1
      %s145 = scalar_select %p142, %s143, %s144
      %p148 = pneg %p142
      %p149 = scmp.eq.s32.totalorder %s69, 3
      %p150 = por %p148, %p149
      %p151 = scmp.ne.s32.totalorder %s143, %s146
      %p152 = scmp.eq.s32.totalorder %s69, 0
      %p153 = por %p151, %p152
      %p154 = scmp.ne.s32.totalorder %s143, %s146
      %p155 = scmp.eq.s32.totalorder %s74, 3
      %p156 = por %p154, %p155
      %p157 = scmp.ne.s32.totalorder %s146, %s147
      %p158 = scmp.eq.s32.totalorder %s74, 0
      %p159 = por %p157, %p158
      %p160 = scmp.ne.s32.totalorder %s146, %s147
      %p161 = scmp.eq.s32.totalorder %s75, 3
      %p162 = por %p160, %p161
      %p164 = scmp.ne.s32.totalorder %s147, %s163
      %p165 = scmp.eq.s32.totalorder %s75, 0
      %p166 = por %p164, %p165
      %s167 = ssub.s32 %s76, %s88
      %p168 = scmp.eq.s32.totalorder %s167, 0
      %s170 = sadd.s32 %s169, 1
      %s171 = scalar_select %p168, %s169, %s170
      %p174 = pneg %p168
      %p175 = scmp.eq.s32.totalorder %s69, 3
      %p176 = por %p174, %p175
      %p177 = scmp.ne.s32.totalorder %s169, %s172
      %p178 = scmp.eq.s32.totalorder %s69, 0
      %p179 = por %p177, %p178
      %p180 = scmp.ne.s32.totalorder %s169, %s172
      %p181 = scmp.eq.s32.totalorder %s74, 3
      %p182 = por %p180, %p181
      %p183 = scmp.ne.s32.totalorder %s172, %s173
      %p184 = scmp.eq.s32.totalorder %s74, 0
      %p185 = por %p183, %p184
      %p186 = scmp.ne.s32.totalorder %s172, %s173
      %p187 = scmp.eq.s32.totalorder %s75, 3
      %p188 = por %p186, %p187
      %p190 = scmp.ne.s32.totalorder %s173, %s189
      %p191 = scmp.eq.s32.totalorder %s75, 0
      %p192 = por %p190, %p191
      %s193 = ssub.s32 %s77, %s84
      %p194 = scmp.eq.s32.totalorder %s193, 0
      %s196 = sadd.s32 %s195, 1
      %s197 = scalar_select %p194, %s195, %s196
      %p200 = pneg %p194
      %p201 = scmp.eq.s32.totalorder %s69, 3
      %p202 = por %p200, %p201
      %p203 = scmp.ne.s32.totalorder %s195, %s198
      %p204 = scmp.eq.s32.totalorder %s69, 0
      %p205 = por %p203, %p204
      %p206 = scmp.ne.s32.totalorder %s195, %s198
      %p207 = scmp.eq.s32.totalorder %s74, 3
      %p208 = por %p206, %p207
      %p209 = scmp.ne.s32.totalorder %s198, %s199
      %p210 = scmp.eq.s32.totalorder %s74, 0
      %p211 = por %p209, %p210
      %p212 = scmp.ne.s32.totalorder %s198, %s199
      %p213 = scmp.eq.s32.totalorder %s75, 3
      %p214 = por %p212, %p213
      %p216 = scmp.ne.s32.totalorder %s199, %s215
      %p217 = scmp.eq.s32.totalorder %s75, 0
      %p218 = por %p216, %p217
      %s219 = ssub.s32 %s77, %s84
      %p220 = scmp.eq.s32.totalorder %s219, 0
      %s222 = sadd.s32 %s221, 1
      %s223 = scalar_select %p220, %s221, %s222
      %p226 = pneg %p220
      %p227 = scmp.eq.s32.totalorder %s69, 3
      %p228 = por %p226, %p227
      %p229 = scmp.ne.s32.totalorder %s221, %s224
      %p230 = scmp.eq.s32.totalorder %s69, 0
      %p231 = por %p229, %p230
      %p232 = scmp.ne.s32.totalorder %s221, %s224
      %p233 = scmp.eq.s32.totalorder %s74, 3
      %p234 = por %p232, %p233
      %p235 = scmp.ne.s32.totalorder %s224, %s225
      %p236 = scmp.eq.s32.totalorder %s74, 0
      %p237 = por %p235, %p236
      %p238 = scmp.ne.s32.totalorder %s224, %s225
      %p239 = scmp.eq.s32.totalorder %s75, 3
      %p240 = por %p238, %p239
      %p242 = scmp.ne.s32.totalorder %s225, %s241
      %p243 = scmp.eq.s32.totalorder %s75, 0
      %p244 = por %p242, %p243
      %s245 = ssub.s32 %s77, %s84
      %p246 = scmp.eq.s32.totalorder %s245, 0
      %s248 = sadd.s32 %s247, 1
      %s249 = scalar_select %p246, %s247, %s248
      %p252 = pneg %p246
      %p253 = scmp.eq.s32.totalorder %s69, 3
      %p254 = por %p252, %p253
      %p255 = scmp.ne.s32.totalorder %s247, %s250
      %p256 = scmp.eq.s32.totalorder %s69, 0
      %p257 = por %p255, %p256
      %p258 = scmp.ne.s32.totalorder %s247, %s250
      %p259 = scmp.eq.s32.totalorder %s74, 3
      %p260 = por %p258, %p259
      %p261 = scmp.ne.s32.totalorder %s250, %s251
      %p262 = scmp.eq.s32.totalorder %s74, 0
      %p263 = por %p261, %p262
      %p264 = scmp.ne.s32.totalorder %s250, %s251
      %p265 = scmp.eq.s32.totalorder %s75, 3
      %p266 = por %p264, %p265
      %p268 = scmp.ne.s32.totalorder %s251, %s267
      %p269 = scmp.eq.s32.totalorder %s75, 0
      %p270 = por %p268, %p269
      %s271 = ssub.s32 %s77, %s84
      %p272 = scmp.eq.s32.totalorder %s271, 0
      %s274 = sadd.s32 %s273, 1
      %s275 = scalar_select %p272, %s273, %s274
      %p278 = pneg %p272
      %p279 = scmp.eq.s32.totalorder %s69, 3
      %p280 = por %p278, %p279
      %p281 = scmp.ne.s32.totalorder %s273, %s276
      %p282 = scmp.eq.s32.totalorder %s69, 0
      %p283 = por %p281, %p282
      %p284 = scmp.ne.s32.totalorder %s273, %s276
      %p285 = scmp.eq.s32.totalorder %s74, 3
      %p286 = por %p284, %p285
      %p287 = scmp.ne.s32.totalorder %s276, %s277
      %p288 = scmp.eq.s32.totalorder %s74, 0
      %p289 = por %p287, %p288
      %p290 = scmp.ne.s32.totalorder %s276, %s277
      %p291 = scmp.eq.s32.totalorder %s75, 3
      %p292 = por %p290, %p291
      %p294 = scmp.ne.s32.totalorder %s277, %s293
      %p295 = scmp.eq.s32.totalorder %s75, 0
      %p296 = por %p294, %p295
      %s297 = ssub.s32 %s77, %s84
      %p298 = scmp.eq.s32.totalorder %s297, 0
      %s300 = sadd.s32 %s299, 1
      %s301 = scalar_select %p298, %s299, %s300
      %p304 = pneg %p298
      %p305 = scmp.eq.s32.totalorder %s69, 3
      %p306 = por %p304, %p305
      %p307 = scmp.ne.s32.totalorder %s299, %s302
      %p308 = scmp.eq.s32.totalorder %s69, 0
      %p309 = por %p307, %p308
      %p310 = scmp.ne.s32.totalorder %s299, %s302
      %p311 = scmp.eq.s32.totalorder %s74, 3
      %p312 = por %p310, %p311
      %p313 = scmp.ne.s32.totalorder %s302, %s303
      %p314 = scmp.eq.s32.totalorder %s74, 0
      %p315 = por %p313, %p314
      %p316 = scmp.ne.s32.totalorder %s302, %s303
      %p317 = scmp.eq.s32.totalorder %s75, 3
      %p318 = por %p316, %p317
      %p320 = scmp.ne.s32.totalorder %s303, %s319
      %p321 = scmp.eq.s32.totalorder %s75, 0
      %p322 = por %p320, %p321
      %s323 = ssub.s32 %s77, %s84
      %p324 = scmp.eq.s32.totalorder %s323, 0
      %s326 = sadd.s32 %s325, 1
      %s327 = scalar_select %p324, %s325, %s326
      %p330 = pneg %p324
      %p331 = scmp.eq.s32.totalorder %s69, 3
      %p332 = por %p330, %p331
      %p333 = scmp.ne.s32.totalorder %s325, %s328
      %p334 = scmp.eq.s32.totalorder %s69, 0
      %p335 = por %p333, %p334
      %p336 = scmp.ne.s32.totalorder %s325, %s328
      %p337 = scmp.eq.s32.totalorder %s74, 3
      %p338 = por %p336, %p337
      %p339 = scmp.ne.s32.totalorder %s328, %s329
      %p340 = scmp.eq.s32.totalorder %s74, 0
      %p341 = por %p339, %p340
      %p342 = scmp.ne.s32.totalorder %s328, %s329
      %p343 = scmp.eq.s32.totalorder %s75, 3
      %p344 = por %p342, %p343
      %p346 = scmp.ne.s32.totalorder %s329, %s345
      %p347 = scmp.eq.s32.totalorder %s75, 0
      %p348 = por %p346, %p347
      %s349 = ssub.s32 %s77, %s84
      %p350 = scmp.eq.s32.totalorder %s349, 0
      %s352 = sadd.s32 %s351, 1
      %s353 = scalar_select %p350, %s351, %s352
      %p356 = pneg %p350
      %p357 = scmp.eq.s32.totalorder %s69, 3
      %p358 = por %p356, %p357
      %p359 = scmp.ne.s32.totalorder %s351, %s354
      %p360 = scmp.eq.s32.totalorder %s69, 0
      %p361 = por %p359, %p360
      %p362 = scmp.ne.s32.totalorder %s351, %s354
      %p363 = scmp.eq.s32.totalorder %s74, 3
      %p364 = por %p362, %p363
      %p365 = scmp.ne.s32.totalorder %s354, %s355
      %p366 = scmp.eq.s32.totalorder %s74, 0
      %p367 = por %p365, %p366
      %p368 = scmp.ne.s32.totalorder %s354, %s355
      %p369 = scmp.eq.s32.totalorder %s75, 3
      %p370 = por %p368, %p369
      %p372 = scmp.ne.s32.totalorder %s355, %s371
      %p373 = scmp.eq.s32.totalorder %s75, 0
      %p374 = por %p372, %p373
      %s375 = ssub.s32 %s77, %s84
      %p376 = scmp.eq.s32.totalorder %s375, 0
      %s378 = sadd.s32 %s377, 1
      %s379 = scalar_select %p376, %s377, %s378
      %p382 = pneg %p376
      %p383 = scmp.eq.s32.totalorder %s69, 3
      %p384 = por %p382, %p383
      %p385 = scmp.ne.s32.totalorder %s377, %s380
      %p386 = scmp.eq.s32.totalorder %s69, 0
      %p387 = por %p385, %p386
      %p388 = scmp.ne.s32.totalorder %s377, %s380
      %p389 = scmp.eq.s32.totalorder %s74, 3
      %p390 = por %p388, %p389
      %p391 = scmp.ne.s32.totalorder %s380, %s381
      %p392 = scmp.eq.s32.totalorder %s74, 0
      %p393 = por %p391, %p392
      %p394 = scmp.ne.s32.totalorder %s380, %s381
      %p395 = scmp.eq.s32.totalorder %s75, 3
      %p396 = por %p394, %p395
      %p398 = scmp.ne.s32.totalorder %s381, %s397
      %p399 = scmp.eq.s32.totalorder %s75, 0
      %p400 = por %p398, %p399
      %s401 = ssub.s32 %s77, %s84
      %p402 = scmp.eq.s32.totalorder %s401, 0
      %s404 = sadd.s32 %s403, 1
      %s405 = scalar_select %p402, %s403, %s404
      %p408 = pneg %p402
      %p409 = scmp.eq.s32.totalorder %s69, 3
      %p410 = por %p408, %p409
      %p411 = scmp.ne.s32.totalorder %s403, %s406
      %p412 = scmp.eq.s32.totalorder %s69, 0
      %p413 = por %p411, %p412
      %p414 = scmp.ne.s32.totalorder %s403, %s406
      %p415 = scmp.eq.s32.totalorder %s74, 3
      %p416 = por %p414, %p415
      %p417 = scmp.ne.s32.totalorder %s406, %s407
      %p418 = scmp.eq.s32.totalorder %s74, 0
      %p419 = por %p417, %p418
      %p420 = scmp.ne.s32.totalorder %s406, %s407
      %p421 = scmp.eq.s32.totalorder %s75, 3
      %p422 = por %p420, %p421
      %p424 = scmp.ne.s32.totalorder %s407, %s423
      %p425 = scmp.eq.s32.totalorder %s75, 0
      %p426 = por %p424, %p425
      %s427 = ssub.s32 %s77, %s84
      %p428 = scmp.eq.s32.totalorder %s427, 0
      %s430 = sadd.s32 %s429, 1
      %s431 = scalar_select %p428, %s429, %s430
      %p434 = pneg %p428
      %p435 = scmp.eq.s32.totalorder %s69, 3
      %p436 = por %p434, %p435
      %p437 = scmp.ne.s32.totalorder %s429, %s432
      %p438 = scmp.eq.s32.totalorder %s69, 0
      %p439 = por %p437, %p438
      %p440 = scmp.ne.s32.totalorder %s429, %s432
      %p441 = scmp.eq.s32.totalorder %s74, 3
      %p442 = por %p440, %p441
      %p443 = scmp.ne.s32.totalorder %s432, %s433
      %p444 = scmp.eq.s32.totalorder %s74, 0
      %p445 = por %p443, %p444
      %p446 = scmp.ne.s32.totalorder %s432, %s433
      %p447 = scmp.eq.s32.totalorder %s75, 3
      %p448 = por %p446, %p447
      %p450 = scmp.ne.s32.totalorder %s433, %s449
      %p451 = scmp.eq.s32.totalorder %s75, 0
      %p452 = por %p450, %p451
      %s453 = ssub.s32 %s77, %s84
      %p454 = scmp.eq.s32.totalorder %s453, 0
      %s456 = sadd.s32 %s455, 1
      %s457 = scalar_select %p454, %s455, %s456
      %p460 = pneg %p454
      %p461 = scmp.eq.s32.totalorder %s69, 3
      %p462 = por %p460, %p461
      %p463 = scmp.ne.s32.totalorder %s455, %s458
      %p464 = scmp.eq.s32.totalorder %s69, 0
      %p465 = por %p463, %p464
      %p466 = scmp.ne.s32.totalorder %s455, %s458
      %p467 = scmp.eq.s32.totalorder %s74, 3
      %p468 = por %p466, %p467
      %p469 = scmp.ne.s32.totalorder %s458, %s459
      %p470 = scmp.eq.s32.totalorder %s74, 0
      %p471 = por %p469, %p470
      %p472 = scmp.ne.s32.totalorder %s458, %s459
      %p473 = scmp.eq.s32.totalorder %s75, 3
      %p474 = por %p472, %p473
      %p476 = scmp.ne.s32.totalorder %s459, %s475
      %p477 = scmp.eq.s32.totalorder %s75, 0
      %p478 = por %p476, %p477
      %s479 = ssub.s32 %s77, %s84
      %p480 = scmp.eq.s32.totalorder %s479, 0
      %s482 = sadd.s32 %s481, 1
      %s483 = scalar_select %p480, %s481, %s482
      %p486 = pneg %p480
      %p487 = scmp.eq.s32.totalorder %s69, 3
      %p488 = por %p486, %p487
      %p489 = scmp.ne.s32.totalorder %s481, %s484
      %p490 = scmp.eq.s32.totalorder %s69, 0
      %p491 = por %p489, %p490
      %p492 = scmp.ne.s32.totalorder %s481, %s484
      %p493 = scmp.eq.s32.totalorder %s74, 3
      %p494 = por %p492, %p493
      %p495 = scmp.ne.s32.totalorder %s484, %s485
      %p496 = scmp.eq.s32.totalorder %s74, 0
      %p497 = por %p495, %p496
      %p498 = scmp.ne.s32.totalorder %s484, %s485
      %p499 = scmp.eq.s32.totalorder %s75, 3
      %p500 = por %p498, %p499
      %p502 = scmp.ne.s32.totalorder %s485, %s501
      %p503 = scmp.eq.s32.totalorder %s75, 0
      %p504 = por %p502, %p503
      %s505 = ssub.s32 %s77, %s84
      %p506 = scmp.eq.s32.totalorder %s505, 0
      %s508 = sadd.s32 %s507, 1
      %s509 = scalar_select %p506, %s507, %s508
      %p512 = pneg %p506
      %p513 = scmp.eq.s32.totalorder %s69, 3
      %p514 = por %p512, %p513
      %p515 = scmp.ne.s32.totalorder %s507, %s510
      %p516 = scmp.eq.s32.totalorder %s69, 0
      %p517 = por %p515, %p516
      %p518 = scmp.ne.s32.totalorder %s507, %s510
      %p519 = scmp.eq.s32.totalorder %s74, 3
      %p520 = por %p518, %p519
      %p521 = scmp.ne.s32.totalorder %s510, %s511
      %p522 = scmp.eq.s32.totalorder %s74, 0
      %p523 = por %p521, %p522
      %p524 = scmp.ne.s32.totalorder %s510, %s511
      %p525 = scmp.eq.s32.totalorder %s75, 3
      %p526 = por %p524, %p525
      %p528 = scmp.ne.s32.totalorder %s511, %s527
      %p529 = scmp.eq.s32.totalorder %s75, 0
      %p530 = por %p528, %p529
      %s531 = ssub.s32 %s77, %s84
      %p532 = scmp.eq.s32.totalorder %s531, 0
      %s534 = sadd.s32 %s533, 1
      %s535 = scalar_select %p532, %s533, %s534
      %p538 = pneg %p532
      %p539 = scmp.eq.s32.totalorder %s69, 3
      %p540 = por %p538, %p539
      %p541 = scmp.ne.s32.totalorder %s533, %s536
      %p542 = scmp.eq.s32.totalorder %s69, 0
      %p543 = por %p541, %p542
      %p544 = scmp.ne.s32.totalorder %s533, %s536
      %p545 = scmp.eq.s32.totalorder %s74, 3
      %p546 = por %p544, %p545
      %p547 = scmp.ne.s32.totalorder %s536, %s537
      %p548 = scmp.eq.s32.totalorder %s74, 0
      %p549 = por %p547, %p548
      %p550 = scmp.ne.s32.totalorder %s536, %s537
      %p551 = scmp.eq.s32.totalorder %s75, 3
      %p552 = por %p550, %p551
      %p554 = scmp.ne.s32.totalorder %s537, %s553
      %p555 = scmp.eq.s32.totalorder %s75, 0
      %p556 = por %p554, %p555
      %s557 = ssub.s32 %s77, %s84
      %p558 = scmp.eq.s32.totalorder %s557, 0
      %s560 = sadd.s32 %s559, 1
      %s561 = scalar_select %p558, %s559, %s560
      %p564 = pneg %p558
      %p565 = scmp.eq.s32.totalorder %s69, 3
      %p566 = por %p564, %p565
      %p567 = scmp.ne.s32.totalorder %s559, %s562
      %p568 = scmp.eq.s32.totalorder %s69, 0
      %p569 = por %p567, %p568
      %p570 = scmp.ne.s32.totalorder %s559, %s562
      %p571 = scmp.eq.s32.totalorder %s74, 3
      %p572 = por %p570, %p571
      %p573 = scmp.ne.s32.totalorder %s562, %s563
      %p574 = scmp.eq.s32.totalorder %s74, 0
      %p575 = por %p573, %p574
      %p576 = scmp.ne.s32.totalorder %s562, %s563
      %p577 = scmp.eq.s32.totalorder %s75, 3
      %p578 = por %p576, %p577
      %p580 = scmp.ne.s32.totalorder %s563, %s579
      %p581 = scmp.eq.s32.totalorder %s75, 0
      %p582 = por %p580, %p581
      %s583 = ssub.s32 %s77, %s84
      %p584 = scmp.eq.s32.totalorder %s583, 0
      %s586 = sadd.s32 %s585, 1
      %s587 = scalar_select %p584, %s585, %s586
      %p590 = pneg %p584
      %p591 = scmp.eq.s32.totalorder %s69, 3
      %p592 = por %p590, %p591
      %p593 = scmp.ne.s32.totalorder %s585, %s588
      %p594 = scmp.eq.s32.totalorder %s69, 0
      %p595 = por %p593, %p594
      %p596 = scmp.ne.s32.totalorder %s585, %s588
      %p597 = scmp.eq.s32.totalorder %s74, 3
      %p598 = por %p596, %p597
      %p599 = scmp.ne.s32.totalorder %s588, %s589
      %p600 = scmp.eq.s32.totalorder %s74, 0
      %p601 = por %p599, %p600
      %p602 = scmp.ne.s32.totalorder %s588, %s589
      %p603 = scmp.eq.s32.totalorder %s75, 3
      %p604 = por %p602, %p603
      %p606 = scmp.ne.s32.totalorder %s589, %s605
      %p607 = scmp.eq.s32.totalorder %s75, 0
      %p608 = por %p606, %p607
      %s609 = ssub.s32 %s77, %s84
      %p610 = scmp.eq.s32.totalorder %s609, 0
      %s612 = sadd.s32 %s611, 1
      %s613 = scalar_select %p610, %s611, %s612
      %p616 = pneg %p610
      %p617 = scmp.eq.s32.totalorder %s69, 3
      %p618 = por %p616, %p617
      %p619 = scmp.ne.s32.totalorder %s611, %s614
      %p620 = scmp.eq.s32.totalorder %s69, 0
      %p621 = por %p619, %p620
      %p622 = scmp.ne.s32.totalorder %s611, %s614
      %p623 = scmp.eq.s32.totalorder %s74, 3
      %p624 = por %p622, %p623
      %p625 = scmp.ne.s32.totalorder %s614, %s615
      %p626 = scmp.eq.s32.totalorder %s74, 0
      %p627 = por %p625, %p626
      %p628 = scmp.ne.s32.totalorder %s614, %s615
      %p629 = scmp.eq.s32.totalorder %s75, 3
      %p630 = por %p628, %p629
      %p632 = scmp.ne.s32.totalorder %s615, %s631
      %p633 = scmp.eq.s32.totalorder %s75, 0
      %p634 = por %p632, %p633
      %s635 = ssub.s32 %s77, %s84
      %p636 = scmp.eq.s32.totalorder %s635, 0
      %s638 = sadd.s32 %s637, 1
      %s639 = scalar_select %p636, %s637, %s638
      %p642 = pneg %p636
      %p643 = scmp.eq.s32.totalorder %s69, 3
      %p644 = por %p642, %p643
      %p645 = scmp.ne.s32.totalorder %s637, %s640
      %p646 = scmp.eq.s32.totalorder %s69, 0
      %p647 = por %p645, %p646
      %p648 = scmp.ne.s32.totalorder %s637, %s640
      %p649 = scmp.eq.s32.totalorder %s74, 3
      %p650 = por %p648, %p649
      %p651 = scmp.ne.s32.totalorder %s640, %s641
      %p652 = scmp.eq.s32.totalorder %s74, 0
      %p653 = por %p651, %p652
      %p654 = scmp.ne.s32.totalorder %s640, %s641
      %p655 = scmp.eq.s32.totalorder %s75, 3
      %p656 = por %p654, %p655
      %p658 = scmp.ne.s32.totalorder %s641, %s657
      %p659 = scmp.eq.s32.totalorder %s75, 0
      %p660 = por %p658, %p659
      %s661 = ssub.s32 %s77, %s84
      %p662 = scmp.eq.s32.totalorder %s661, 0
      %s664 = sadd.s32 %s663, 1
      %s665 = scalar_select %p662, %s663, %s664
      %p668 = pneg %p662
      %p669 = scmp.eq.s32.totalorder %s69, 3
      %p670 = por %p668, %p669
      %p671 = scmp.ne.s32.totalorder %s663, %s666
      %p672 = scmp.eq.s32.totalorder %s69, 0
      %p673 = por %p671, %p672
      %p674 = scmp.ne.s32.totalorder %s663, %s666
      %p675 = scmp.eq.s32.totalorder %s74, 3
      %p676 = por %p674, %p675
      %p677 = scmp.ne.s32.totalorder %s666, %s667
      %p678 = scmp.eq.s32.totalorder %s74, 0
      %p679 = por %p677, %p678
      %p680 = scmp.ne.s32.totalorder %s666, %s667
      %p681 = scmp.eq.s32.totalorder %s75, 3
      %p682 = por %p680, %p681
      %p684 = scmp.ne.s32.totalorder %s667, %s683
      %p685 = scmp.eq.s32.totalorder %s75, 0
      %p686 = por %p684, %p685
      %s687 = ssub.s32 %s77, %s84
      %p688 = scmp.eq.s32.totalorder %s687, 0
      %s690 = sadd.s32 %s689, 1
      %s691 = scalar_select %p688, %s689, %s690
      %p694 = pneg %p688
      %p695 = scmp.eq.s32.totalorder %s69, 3
      %p696 = por %p694, %p695
      %p697 = scmp.ne.s32.totalorder %s689, %s692
      %p698 = scmp.eq.s32.totalorder %s69, 0
      %p699 = por %p697, %p698
      %p700 = scmp.ne.s32.totalorder %s689, %s692
      %p701 = scmp.eq.s32.totalorder %s74, 3
      %p702 = por %p700, %p701
      %p703 = scmp.ne.s32.totalorder %s692, %s693
      %p704 = scmp.eq.s32.totalorder %s74, 0
      %p705 = por %p703, %p704
      %p706 = scmp.ne.s32.totalorder %s692, %s693
      %p707 = scmp.eq.s32.totalorder %s75, 3
      %p708 = por %p706, %p707
      %p710 = scmp.ne.s32.totalorder %s693, %s709
      %p711 = scmp.eq.s32.totalorder %s75, 0
      %p712 = por %p710, %p711
      %s713 = ssub.s32 %s77, %s84
      %p714 = scmp.eq.s32.totalorder %s713, 0
      %s716 = sadd.s32 %s715, 1
      %s717 = scalar_select %p714, %s715, %s716
      %p720 = pneg %p714
      %p721 = scmp.eq.s32.totalorder %s69, 3
      %p722 = por %p720, %p721
      %p723 = scmp.ne.s32.totalorder %s715, %s718
      %p724 = scmp.eq.s32.totalorder %s69, 0
      %p725 = por %p723, %p724
      %p726 = scmp.ne.s32.totalorder %s715, %s718
      %p727 = scmp.eq.s32.totalorder %s74, 3
      %p728 = por %p726, %p727
      %p729 = scmp.ne.s32.totalorder %s718, %s719
      %p730 = scmp.eq.s32.totalorder %s74, 0
      %p731 = por %p729, %p730
      %p732 = scmp.ne.s32.totalorder %s718, %s719
      %p733 = scmp.eq.s32.totalorder %s75, 3
      %p734 = por %p732, %p733
      %p736 = scmp.ne.s32.totalorder %s719, %s735
      %p737 = scmp.eq.s32.totalorder %s75, 0
      %p738 = por %p736, %p737
      %s739 = ssub.s32 %s77, %s84
      %p740 = scmp.eq.s32.totalorder %s739, 0
      %s742 = sadd.s32 %s741, 1
      %s743 = scalar_select %p740, %s741, %s742
      %p746 = pneg %p740
      %p747 = scmp.eq.s32.totalorder %s69, 3
      %p748 = por %p746, %p747
      %p749 = scmp.ne.s32.totalorder %s741, %s744
      %p750 = scmp.eq.s32.totalorder %s69, 0
      %p751 = por %p749, %p750
      %p752 = scmp.ne.s32.totalorder %s741, %s744
      %p753 = scmp.eq.s32.totalorder %s74, 3
      %p754 = por %p752, %p753
      %p755 = scmp.ne.s32.totalorder %s744, %s745
      %p756 = scmp.eq.s32.totalorder %s74, 0
      %p757 = por %p755, %p756
      %p758 = scmp.ne.s32.totalorder %s744, %s745
      %p759 = scmp.eq.s32.totalorder %s75, 3
      %p760 = por %p758, %p759
      %p762 = scmp.ne.s32.totalorder %s745, %s761
      %p763 = scmp.eq.s32.totalorder %s75, 0
      %p764 = por %p762, %p763
      %s765 = ssub.s32 %s77, %s84
      %p766 = scmp.eq.s32.totalorder %s765, 0
      %s768 = sadd.s32 %s767, 1
      %s769 = scalar_select %p766, %s767, %s768
      %p772 = pneg %p766
      %p773 = scmp.eq.s32.totalorder %s69, 3
      %p774 = por %p772, %p773
      %p775 = scmp.ne.s32.totalorder %s767, %s770
      %p776 = scmp.eq.s32.totalorder %s69, 0
      %p777 = por %p775, %p776
      %p778 = scmp.ne.s32.totalorder %s767, %s770
      %p779 = scmp.eq.s32.totalorder %s74, 3
      %p780 = por %p778, %p779
      %p781 = scmp.ne.s32.totalorder %s770, %s771
      %p782 = scmp.eq.s32.totalorder %s74, 0
      %p783 = por %p781, %p782
      %p784 = scmp.ne.s32.totalorder %s770, %s771
      %p785 = scmp.eq.s32.totalorder %s75, 3
      %p786 = por %p784, %p785
      %p788 = scmp.ne.s32.totalorder %s771, %s787
      %p789 = scmp.eq.s32.totalorder %s75, 0
      %p790 = por %p788, %p789
      %s791 = ssub.s32 %s76, %s88
      %p792 = scmp.eq.s32.totalorder %s791, 0
      %s794 = sadd.s32 %s793, 1
      %s795 = scalar_select %p792, %s793, %s794
      %p798 = pneg %p792
      %p799 = scmp.eq.s32.totalorder %s69, 3
      %p800 = por %p798, %p799
      %p801 = scmp.ne.s32.totalorder %s793, %s796
      %p802 = scmp.eq.s32.totalorder %s69, 0
      %p803 = por %p801, %p802
      %p804 = scmp.ne.s32.totalorder %s793, %s796
      %p805 = scmp.eq.s32.totalorder %s74, 3
      %p806 = por %p804, %p805
      %p807 = scmp.ne.s32.totalorder %s796, %s797
      %p808 = scmp.eq.s32.totalorder %s74, 0
      %p809 = por %p807, %p808
      %p810 = scmp.ne.s32.totalorder %s796, %s797
      %p811 = scmp.eq.s32.totalorder %s75, 3
      %p812 = por %p810, %p811
      %p814 = scmp.ne.s32.totalorder %s797, %s813
      %p815 = scmp.eq.s32.totalorder %s75, 0
      %p816 = por %p814, %p815
      %p817 = scmp.le.s32.totalorder 1, %s69
      %p818 = scmp.lt.s32.totalorder %s69, 5
      %p819 = pnand %p817, %p818
      %p820 = pneg %p819
      // Predicated region
      $region9: #{tpu_custom_call.1} parent=5 // pred_check
        _
      $region10: #{tpu_custom_call.1} parent=5 // pred_check_branch
        %822 = sbr.rel (%p819) target = $region12
      $region11: #{tpu_custom_call.1} parent=5 // pred_region
        %s823 = ssub.s32 %s69, 1
      $region12: #{tpu_custom_call.1} parent=5 // pred_fallthru
        _
      %p824 = scmp.lt.s32.totalorder %s69, 4
      // Predicated region
      $region13: #{tpu_custom_call.1} parent=5 // pred_check
        %p825 = pneg %p824
      $region14: #{tpu_custom_call.1} parent=5 // pred_check_branch
        %827 = sbr.rel (%p825) target = $region16
      $region15: #{tpu_custom_call.1} parent=5 // pred_region
        // Predicated region
        $region17: #{tpu_custom_call.1} parent=15 // pred_check
          %p828 = pneg %p101
        $region18: #{tpu_custom_call.1} parent=15 // pred_check_branch
          %830 = sbr.rel (%p828) target = $region20
        $region19: #{tpu_custom_call.1} parent=15 // pred_region
          %p831 = scmp.lt.s32.totalorder %s76, 1
          %s832 = scalar_select %p831, %s76, 1
          %s833 = smul.addr %s832, 8
          %s834 = scalar_lea.vmem %s0, %s833
        $region20: #{tpu_custom_call.1} parent=15 // pred_fallthru
          _
        // Predicated region
        $region21: #{tpu_custom_call.1} parent=15 // pred_check
          %p835 = pneg %p127
        $region22: #{tpu_custom_call.1} parent=15 // pred_check_branch
          %837 = sbr.rel (%p835) target = $region24
        $region23: #{tpu_custom_call.1} parent=15 // pred_region
          %p838 = scmp.lt.s32.totalorder %s76, 1
          %s839 = scalar_select %p838, %s76, 1
          %s840 = smul.addr %s839, 2
          %s841 = smul.addr %s840, 4
          %s842 = scalar_lea.vmem %s1, %s841
        $region24: #{tpu_custom_call.1} parent=15 // pred_fallthru
          _
        // Predicated region
        $region25: #{tpu_custom_call.1} parent=15 // pred_check
          %p843 = pneg %p153
        $region26: #{tpu_custom_call.1} parent=15 // pred_check_branch
          %845 = sbr.rel (%p843) target = $region28
        $region27: #{tpu_custom_call.1} parent=15 // pred_region
          %p846 = scmp.lt.s32.totalorder %s76, 1
          %s847 = scalar_select %p846, %s76, 1
          %s848 = scalar_lea.vmem %s2, %s847
        $region28: #{tpu_custom_call.1} parent=15 // pred_fallthru
          _
        // Predicated region
        $region29: #{tpu_custom_call.1} parent=15 // pred_check
          %p849 = pneg %p179
        $region30: #{tpu_custom_call.1} parent=15 // pred_check_branch
          %851 = sbr.rel (%p849) target = $region32
        $region31: #{tpu_custom_call.1} parent=15 // pred_region
          %s852 = sand.u32 %s169, 1
          %s853 = scalar_lea.sflag [#allocation3], %s852
          %s854 = sand.u32 %s169, 1
          %s855 = scalar_lea.vmem [#allocation2], %s854
          %857 = vsyncadd %s853, 0
          %s858 = scalar_lea.hbm %s3, %s76
          %s860 = sshll.u32 %s858, 4
          %s861 = int_to_ptr.hbm [resolvable:$true] %s860
          %s862 = sshll.u32 %s855, 4
          %s863 = int_to_ptr.vmem [resolvable:$true] %s862
          %865 = dma.hbm_to_vmem [thread:$0]  %s861, 16, %s863, %s853
        $region32: #{tpu_custom_call.1} parent=15 // pred_fallthru
          _
        // Predicated region
        $region33: #{tpu_custom_call.1} parent=15 // pred_check
          %p866 = pneg %p205
        $region34: #{tpu_custom_call.1} parent=15 // pred_check_branch
          %868 = sbr.rel (%p866) target = $region36
        $region35: #{tpu_custom_call.1} parent=15 // pred_region
          %s869 = sand.u32 %s69, 1
          %s870 = scalar_lea.sflag [#allocation6], %s869
          %s871 = sand.u32 %s195, 1
          %s872 = smul.addr %s871, 2
          %s873 = scalar_lea.vmem [#allocation5], %s872
          %875 = vsyncadd %s870, 0
          %s876 = smul.addr %s77, 2
          %s877 = scalar_lea.hbm %s4, %s876
          %s879 = sshll.u32 %s877, 4
          %s880 = int_to_ptr.hbm [resolvable:$true] %s879
          %s881 = sshll.u32 %s873, 4
          %s882 = int_to_ptr.vmem [resolvable:$true] %s881
          %884 = dma.hbm_to_vmem [thread:$0]  %s880, 32, %s882, %s870
        $region36: #{tpu_custom_call.1} parent=15 // pred_fallthru
          _
        // Predicated region
        $region37: #{tpu_custom_call.1} parent=15 // pred_check
          %p885 = pneg %p231
        $region38: #{tpu_custom_call.1} parent=15 // pred_check_branch
          %887 = sbr.rel (%p885) target = $region40
        $region39: #{tpu_custom_call.1} parent=15 // pred_region
          %p888 = scmp.lt.s32.totalorder %s77, 1
          %s889 = scalar_select %p888, %s77, 1
          %s890 = smul.addr %s889, 4
          %s891 = smul.addr %s890, 4
          %s892 = scalar_lea.vmem %s5, %s891
        $region40: #{tpu_custom_call.1} parent=15 // pred_fallthru
          _
        // Predicated region
        $region41: #{tpu_custom_call.1} parent=15 // pred_check
          %p893 = pneg %p257
        $region42: #{tpu_custom_call.1} parent=15 // pred_check_branch
          %895 = sbr.rel (%p893) target = $region44
        $region43: #{tpu_custom_call.1} parent=15 // pred_region
          %s896 = sand.u32 %s69, 1
          %s897 = scalar_lea.sflag [#allocation6], %s896
          %s898 = sand.u32 %s247, 1
          %s899 = scalar_lea.vmem [#allocation7], %s898
          %901 = vsyncadd %s897, 0
          %s902 = scalar_lea.hbm %s6, %s77
          %s904 = sshll.u32 %s902, 4
          %s905 = int_to_ptr.hbm [resolvable:$true] %s904
          %s906 = sshll.u32 %s899, 4
          %s907 = int_to_ptr.vmem [resolvable:$true] %s906
          %909 = dma.hbm_to_vmem [thread:$0]  %s905, 16, %s907, %s897
        $region44: #{tpu_custom_call.1} parent=15 // pred_fallthru
          _
        // Predicated region
        $region45: #{tpu_custom_call.1} parent=15 // pred_check
          %p910 = pneg %p283
        $region46: #{tpu_custom_call.1} parent=15 // pred_check_branch
          %912 = sbr.rel (%p910) target = $region48
        $region47: #{tpu_custom_call.1} parent=15 // pred_region
          %p913 = scmp.lt.s32.totalorder %s77, 1
          %s914 = scalar_select %p913, %s77, 1
          %s915 = smul.addr %s914, 4
          %s916 = smul.addr %s915, 4
          %s917 = scalar_lea.vmem %s7, %s916
        $region48: #{tpu_custom_call.1} parent=15 // pred_fallthru
          _
        // Predicated region
        $region49: #{tpu_custom_call.1} parent=15 // pred_check
          %p918 = pneg %p309
        $region50: #{tpu_custom_call.1} parent=15 // pred_check_branch
          %920 = sbr.rel (%p918) target = $region52
        $region51: #{tpu_custom_call.1} parent=15 // pred_region
          %s921 = sand.u32 %s69, 1
          %s922 = scalar_lea.sflag [#allocation9], %s921
          %s923 = sand.u32 %s299, 1
          %s924 = scalar_lea.vmem [#allocation8], %s923
          %926 = vsyncadd %s922, 0
          %s927 = scalar_lea.hbm %s8, %s77
          %s929 = sshll.u32 %s927, 4
          %s930 = int_to_ptr.hbm [resolvable:$true] %s929
          %s931 = sshll.u32 %s924, 4
          %s932 = int_to_ptr.vmem [resolvable:$true] %s931
          %934 = dma.hbm_to_vmem [thread:$0]  %s930, 16, %s932, %s922
        $region52: #{tpu_custom_call.1} parent=15 // pred_fallthru
          _
        // Predicated region
        $region53: #{tpu_custom_call.1} parent=15 // pred_check
          %p935 = pneg %p335
        $region54: #{tpu_custom_call.1} parent=15 // pred_check_branch
          %937 = sbr.rel (%p935) target = $region56
        $region55: #{tpu_custom_call.1} parent=15 // pred_region
          %p938 = scmp.lt.s32.totalorder %s77, 1
          %s939 = scalar_select %p938, %s77, 1
          %s940 = smul.addr %s939, 4
          %s941 = smul.addr %s940, 4
          %s942 = scalar_lea.vmem %s9, %s941
        $region56: #{tpu_custom_call.1} parent=15 // pred_fallthru
          _
        // Predicated region
        $region57: #{tpu_custom_call.1} parent=15 // pred_check
          %p943 = pneg %p361
        $region58: #{tpu_custom_call.1} parent=15 // pred_check_branch
          %945 = sbr.rel (%p943) target = $region60
        $region59: #{tpu_custom_call.1} parent=15 // pred_region
          %s946 = sand.u32 %s69, 1
          %s947 = scalar_lea.sflag [#allocation9], %s946
          %s948 = sand.u32 %s351, 1
          %s949 = scalar_lea.vmem [#allocation10], %s948
          %951 = vsyncadd %s947, 0
          %s952 = scalar_lea.hbm %s10, %s77
          %s954 = sshll.u32 %s952, 4
          %s955 = int_to_ptr.hbm [resolvable:$true] %s954
          %s956 = sshll.u32 %s949, 4
          %s957 = int_to_ptr.vmem [resolvable:$true] %s956
          %959 = dma.hbm_to_vmem [thread:$0]  %s955, 16, %s957, %s947
        $region60: #{tpu_custom_call.1} parent=15 // pred_fallthru
          _
        // Predicated region
        $region61: #{tpu_custom_call.1} parent=15 // pred_check
          %p960 = pneg %p387
        $region62: #{tpu_custom_call.1} parent=15 // pred_check_branch
          %962 = sbr.rel (%p960) target = $region64
        $region63: #{tpu_custom_call.1} parent=15 // pred_region
          %s963 = sand.u32 %s69, 1
          %s964 = scalar_lea.sflag [#allocation12], %s963
          %s965 = sand.u32 %s377, 1
          %s966 = smul.addr %s965, 16
          %s967 = scalar_lea.vmem [#allocation11], %s966
          %969 = vsyncadd %s964, 0
          %s970 = smul.addr %s77, 4
          %s971 = smul.addr %s970, 4
          %s972 = scalar_lea.hbm %s11, %s971
          %s973 = sshll.u32 %s972, 4
          %s974 = int_to_ptr.hbm [resolvable:$true] %s973
          %s975 = sshll.u32 %s967, 4
          %s976 = int_to_ptr.vmem [resolvable:$true] %s975
          %981 = dma.hbm_to_vmem [thread:$0]  %s974, 256, %s976, %s964, 64, 64, 4
        $region64: #{tpu_custom_call.1} parent=15 // pred_fallthru
          _
        // Predicated region
        $region65: #{tpu_custom_call.1} parent=15 // pred_check
          %p982 = pneg %p413
        $region66: #{tpu_custom_call.1} parent=15 // pred_check_branch
          %984 = sbr.rel (%p982) target = $region68
        $region67: #{tpu_custom_call.1} parent=15 // pred_region
          %s985 = sand.u32 %s69, 1
          %s986 = scalar_lea.sflag [#allocation12], %s985
          %s987 = sand.u32 %s403, 1
          %s988 = scalar_lea.vmem [#allocation13], %s987
          %990 = vsyncadd %s986, 0
          %s991 = scalar_lea.hbm %s12, %s77
          %s993 = sshll.u32 %s991, 4
          %s994 = int_to_ptr.hbm [resolvable:$true] %s993
          %s995 = sshll.u32 %s988, 4
          %s996 = int_to_ptr.vmem [resolvable:$true] %s995
          %998 = dma.hbm_to_vmem [thread:$0]  %s994, 16, %s996, %s986
        $region68: #{tpu_custom_call.1} parent=15 // pred_fallthru
          _
        // Predicated region
        $region69: #{tpu_custom_call.1} parent=15 // pred_check
          %p999 = pneg %p439
        $region70: #{tpu_custom_call.1} parent=15 // pred_check_branch
          %1001 = sbr.rel (%p999) target = $region72
        $region71: #{tpu_custom_call.1} parent=15 // pred_region
          %s1002 = sand.u32 %s69, 1
          %s1003 = scalar_lea.sflag [#allocation15], %s1002
          %s1004 = sand.u32 %s429, 1
          %s1005 = smul.addr %s1004, 2
          %s1006 = scalar_lea.vmem [#allocation14], %s1005
          %1008 = vsyncadd %s1003, 0
          %s1009 = smul.addr %s77, 2
          %s1010 = scalar_lea.hbm %s13, %s1009
          %s1012 = sshll.u32 %s1010, 4
          %s1013 = int_to_ptr.hbm [resolvable:$true] %s1012
          %s1014 = sshll.u32 %s1006, 4
          %s1015 = int_to_ptr.vmem [resolvable:$true] %s1014
          %1017 = dma.hbm_to_vmem [thread:$0]  %s1013, 32, %s1015, %s1003
        $region72: #{tpu_custom_call.1} parent=15 // pred_fallthru
          _
        // Predicated region
        $region73: #{tpu_custom_call.1} parent=15 // pred_check
          %p1018 = pneg %p465
        $region74: #{tpu_custom_call.1} parent=15 // pred_check_branch
          %1020 = sbr.rel (%p1018) target = $region76
        $region75: #{tpu_custom_call.1} parent=15 // pred_region
          %s1021 = sand.u32 %s69, 1
          %s1022 = scalar_lea.sflag [#allocation15], %s1021
          %s1023 = sand.u32 %s455, 1
          %s1024 = smul.addr %s1023, 16
          %s1025 = scalar_lea.vmem [#allocation16], %s1024
          %1027 = vsyncadd %s1022, 0
          %s1028 = smul.addr %s77, 4
          %s1029 = smul.addr %s1028, 4
          %s1030 = scalar_lea.hbm %s14, %s1029
          %s1031 = sshll.u32 %s1030, 4
          %s1032 = int_to_ptr.hbm [resolvable:$true] %s1031
          %s1033 = sshll.u32 %s1025, 4
          %s1034 = int_to_ptr.vmem [resolvable:$true] %s1033
          %1039 = dma.hbm_to_vmem [thread:$0]  %s1032, 256, %s1034, %s1022, 64, 64, 4
        $region76: #{tpu_custom_call.1} parent=15 // pred_fallthru
          _
        // Predicated region
        $region77: #{tpu_custom_call.1} parent=15 // pred_check
          %p1040 = pneg %p491
        $region78: #{tpu_custom_call.1} parent=15 // pred_check_branch
          %1042 = sbr.rel (%p1040) target = $region80
        $region79: #{tpu_custom_call.1} parent=15 // pred_region
          %s1043 = sand.u32 %s69, 1
          %s1044 = scalar_lea.sflag [#allocation18], %s1043
          %s1045 = sand.u32 %s481, 1
          %s1046 = scalar_lea.vmem [#allocation17], %s1045
          %1048 = vsyncadd %s1044, 0
          %s1049 = scalar_lea.hbm %s15, %s77
          %s1051 = sshll.u32 %s1049, 4
          %s1052 = int_to_ptr.hbm [resolvable:$true] %s1051
          %s1053 = sshll.u32 %s1046, 4
          %s1054 = int_to_ptr.vmem [resolvable:$true] %s1053
          %1056 = dma.hbm_to_vmem [thread:$0]  %s1052, 16, %s1054, %s1044
        $region80: #{tpu_custom_call.1} parent=15 // pred_fallthru
          _
        // Predicated region
        $region81: #{tpu_custom_call.1} parent=15 // pred_check
          %p1057 = pneg %p517
        $region82: #{tpu_custom_call.1} parent=15 // pred_check_branch
          %1059 = sbr.rel (%p1057) target = $region84
        $region83: #{tpu_custom_call.1} parent=15 // pred_region
          %s1060 = sand.u32 %s69, 1
          %s1061 = scalar_lea.sflag [#allocation18], %s1060
          %s1062 = sand.u32 %s507, 1
          %s1063 = smul.addr %s1062, 16
          %s1064 = scalar_lea.vmem [#allocation19], %s1063
          %1066 = vsyncadd %s1061, 0
          %s1067 = smul.addr %s77, 4
          %s1068 = smul.addr %s1067, 4
          %s1069 = scalar_lea.hbm %s16, %s1068
          %s1070 = sshll.u32 %s1069, 4
          %s1071 = int_to_ptr.hbm [resolvable:$true] %s1070
          %s1072 = sshll.u32 %s1064, 4
          %s1073 = int_to_ptr.vmem [resolvable:$true] %s1072
          %1078 = dma.hbm_to_vmem [thread:$0]  %s1071, 256, %s1073, %s1061, 64, 64, 4
        $region84: #{tpu_custom_call.1} parent=15 // pred_fallthru
          _
        // Predicated region
        $region85: #{tpu_custom_call.1} parent=15 // pred_check
          %p1079 = pneg %p543
        $region86: #{tpu_custom_call.1} parent=15 // pred_check_branch
          %1081 = sbr.rel (%p1079) target = $region88
        $region87: #{tpu_custom_call.1} parent=15 // pred_region
          %s1082 = sand.u32 %s69, 1
          %s1083 = scalar_lea.sflag [#allocation21], %s1082
          %s1084 = sand.u32 %s533, 1
          %s1085 = scalar_lea.vmem [#allocation20], %s1084
          %1087 = vsyncadd %s1083, 0
          %s1088 = scalar_lea.hbm %s17, %s77
          %s1090 = sshll.u32 %s1088, 4
          %s1091 = int_to_ptr.hbm [resolvable:$true] %s1090
          %s1092 = sshll.u32 %s1085, 4
          %s1093 = int_to_ptr.vmem [resolvable:$true] %s1092
          %1095 = dma.hbm_to_vmem [thread:$0]  %s1091, 16, %s1093, %s1083
        $region88: #{tpu_custom_call.1} parent=15 // pred_fallthru
          _
        // Predicated region
        $region89: #{tpu_custom_call.1} parent=15 // pred_check
          %p1096 = pneg %p569
        $region90: #{tpu_custom_call.1} parent=15 // pred_check_branch
          %1098 = sbr.rel (%p1096) target = $region92
        $region91: #{tpu_custom_call.1} parent=15 // pred_region
          %s1099 = sand.u32 %s69, 1
          %s1100 = scalar_lea.sflag [#allocation21], %s1099
          %s1101 = sand.u32 %s559, 1
          %s1102 = smul.addr %s1101, 16
          %s1103 = scalar_lea.vmem [#allocation22], %s1102
          %1105 = vsyncadd %s1100, 0
          %s1106 = smul.addr %s77, 4
          %s1107 = smul.addr %s1106, 4
          %s1108 = scalar_lea.hbm %s18, %s1107
          %s1109 = sshll.u32 %s1108, 4
          %s1110 = int_to_ptr.hbm [resolvable:$true] %s1109
          %s1111 = sshll.u32 %s1103, 4
          %s1112 = int_to_ptr.vmem [resolvable:$true] %s1111
          %1117 = dma.hbm_to_vmem [thread:$0]  %s1110, 256, %s1112, %s1100, 64, 64, 4
        $region92: #{tpu_custom_call.1} parent=15 // pred_fallthru
          _
        // Predicated region
        $region93: #{tpu_custom_call.1} parent=15 // pred_check
          %p1118 = pneg %p595
        $region94: #{tpu_custom_call.1} parent=15 // pred_check_branch
          %1120 = sbr.rel (%p1118) target = $region96
        $region95: #{tpu_custom_call.1} parent=15 // pred_region
          %s1121 = sand.u32 %s69, 1
          %s1122 = scalar_lea.sflag [#allocation24], %s1121
          %s1123 = sand.u32 %s585, 1
          %s1124 = scalar_lea.vmem [#allocation23], %s1123
          %1126 = vsyncadd %s1122, 0
          %s1127 = scalar_lea.hbm %s19, %s77
          %s1129 = sshll.u32 %s1127, 4
          %s1130 = int_to_ptr.hbm [resolvable:$true] %s1129
          %s1131 = sshll.u32 %s1124, 4
          %s1132 = int_to_ptr.vmem [resolvable:$true] %s1131
          %1134 = dma.hbm_to_vmem [thread:$0]  %s1130, 16, %s1132, %s1122
        $region96: #{tpu_custom_call.1} parent=15 // pred_fallthru
          _
        // Predicated region
        $region97: #{tpu_custom_call.1} parent=15 // pred_check
          %p1135 = pneg %p621
        $region98: #{tpu_custom_call.1} parent=15 // pred_check_branch
          %1137 = sbr.rel (%p1135) target = $region100
        $region99: #{tpu_custom_call.1} parent=15 // pred_region
          %s1138 = sand.u32 %s69, 1
          %s1139 = scalar_lea.sflag [#allocation24], %s1138
          %s1140 = sand.u32 %s611, 1
          %s1141 = smul.addr %s1140, 16
          %s1142 = scalar_lea.vmem [#allocation25], %s1141
          %1144 = vsyncadd %s1139, 0
          %s1145 = smul.addr %s77, 4
          %s1146 = smul.addr %s1145, 4
          %s1147 = scalar_lea.hbm %s20, %s1146
          %s1148 = sshll.u32 %s1147, 4
          %s1149 = int_to_ptr.hbm [resolvable:$true] %s1148
          %s1150 = sshll.u32 %s1142, 4
          %s1151 = int_to_ptr.vmem [resolvable:$true] %s1150
          %1156 = dma.hbm_to_vmem [thread:$0]  %s1149, 256, %s1151, %s1139, 64, 64, 4
        $region100: #{tpu_custom_call.1} parent=15 // pred_fallthru
          _
        // Predicated region
        $region101: #{tpu_custom_call.1} parent=15 // pred_check
          %p1157 = pneg %p647
        $region102: #{tpu_custom_call.1} parent=15 // pred_check_branch
          %1159 = sbr.rel (%p1157) target = $region104
        $region103: #{tpu_custom_call.1} parent=15 // pred_region
          %s1160 = sand.u32 %s69, 1
          %s1161 = scalar_lea.sflag [#allocation27], %s1160
          %s1162 = sand.u32 %s637, 1
          %s1163 = scalar_lea.vmem [#allocation26], %s1162
          %1165 = vsyncadd %s1161, 0
          %s1166 = scalar_lea.hbm %s21, %s77
          %s1168 = sshll.u32 %s1166, 4
          %s1169 = int_to_ptr.hbm [resolvable:$true] %s1168
          %s1170 = sshll.u32 %s1163, 4
          %s1171 = int_to_ptr.vmem [resolvable:$true] %s1170
          %1173 = dma.hbm_to_vmem [thread:$0]  %s1169, 16, %s1171, %s1161
        $region104: #{tpu_custom_call.1} parent=15 // pred_fallthru
          _
        // Predicated region
        $region105: #{tpu_custom_call.1} parent=15 // pred_check
          %p1174 = pneg %p673
        $region106: #{tpu_custom_call.1} parent=15 // pred_check_branch
          %1176 = sbr.rel (%p1174) target = $region108
        $region107: #{tpu_custom_call.1} parent=15 // pred_region
          %s1177 = sand.u32 %s69, 1
          %s1178 = scalar_lea.sflag [#allocation27], %s1177
          %s1179 = sand.u32 %s663, 1
          %s1180 = smul.addr %s1179, 2
          %s1181 = scalar_lea.vmem [#allocation28], %s1180
          %1183 = vsyncadd %s1178, 0
          %s1184 = smul.addr %s77, 2
          %s1185 = scalar_lea.hbm %s22, %s1184
          %s1187 = sshll.u32 %s1185, 4
          %s1188 = int_to_ptr.hbm [resolvable:$true] %s1187
          %s1189 = sshll.u32 %s1181, 4
          %s1190 = int_to_ptr.vmem [resolvable:$true] %s1189
          %1192 = dma.hbm_to_vmem [thread:$0]  %s1188, 32, %s1190, %s1178
        $region108: #{tpu_custom_call.1} parent=15 // pred_fallthru
          _
        // Predicated region
        $region109: #{tpu_custom_call.1} parent=15 // pred_check
          %p1193 = pneg %p699
        $region110: #{tpu_custom_call.1} parent=15 // pred_check_branch
          %1195 = sbr.rel (%p1193) target = $region112
        $region111: #{tpu_custom_call.1} parent=15 // pred_region
          %s1196 = sand.u32 %s69, 1
          %s1197 = scalar_lea.sflag [#allocation30], %s1196
          %s1198 = sand.u32 %s689, 1
          %s1199 = smul.addr %s1198, 16
          %s1200 = scalar_lea.vmem [#allocation29], %s1199
          %1202 = vsyncadd %s1197, 0
          %s1203 = smul.addr %s77, 4
          %s1204 = smul.addr %s1203, 4
          %s1205 = scalar_lea.hbm %s23, %s1204
          %s1206 = sshll.u32 %s1205, 4
          %s1207 = int_to_ptr.hbm [resolvable:$true] %s1206
          %s1208 = sshll.u32 %s1200, 4
          %s1209 = int_to_ptr.vmem [resolvable:$true] %s1208
          %1214 = dma.hbm_to_vmem [thread:$0]  %s1207, 256, %s1209, %s1197, 64, 64, 4
        $region112: #{tpu_custom_call.1} parent=15 // pred_fallthru
          _
        // Predicated region
        $region113: #{tpu_custom_call.1} parent=15 // pred_check
          %p1215 = pneg %p725
        $region114: #{tpu_custom_call.1} parent=15 // pred_check_branch
          %1217 = sbr.rel (%p1215) target = $region116
        $region115: #{tpu_custom_call.1} parent=15 // pred_region
          %s1218 = sand.u32 %s69, 1
          %s1219 = scalar_lea.sflag [#allocation30], %s1218
          %s1220 = sand.u32 %s715, 1
          %s1221 = scalar_lea.vmem [#allocation31], %s1220
          %1223 = vsyncadd %s1219, 0
          %s1224 = scalar_lea.hbm %s24, %s77
          %s1226 = sshll.u32 %s1224, 4
          %s1227 = int_to_ptr.hbm [resolvable:$true] %s1226
          %s1228 = sshll.u32 %s1221, 4
          %s1229 = int_to_ptr.vmem [resolvable:$true] %s1228
          %1231 = dma.hbm_to_vmem [thread:$0]  %s1227, 16, %s1229, %s1219
        $region116: #{tpu_custom_call.1} parent=15 // pred_fallthru
          _
        // Predicated region
        $region117: #{tpu_custom_call.1} parent=15 // pred_check
          %p1232 = pneg %p751
        $region118: #{tpu_custom_call.1} parent=15 // pred_check_branch
          %1234 = sbr.rel (%p1232) target = $region120
        $region119: #{tpu_custom_call.1} parent=15 // pred_region
          %p1235 = scmp.lt.s32.totalorder %s77, 1
          %s1236 = scalar_select %p1235, %s77, 1
          %s1237 = smul.addr %s1236, 8
          %s1238 = smul.addr %s1237, 4
          %s1239 = scalar_lea.vmem %s25, %s1238
        $region120: #{tpu_custom_call.1} parent=15 // pred_fallthru
          _
        // Predicated region
        $region121: #{tpu_custom_call.1} parent=15 // pred_check
          %p1240 = pneg %p777
        $region122: #{tpu_custom_call.1} parent=15 // pred_check_branch
          %1242 = sbr.rel (%p1240) target = $region124
        $region123: #{tpu_custom_call.1} parent=15 // pred_region
          %s1243 = sand.u32 %s767, 1
          %s1244 = scalar_lea.sflag [#allocation33], %s1243
          %s1245 = sand.u32 %s767, 1
          %s1246 = scalar_lea.vmem [#allocation32], %s1245
          %1248 = vsyncadd %s1244, 0
          %s1249 = scalar_lea.hbm %s26, %s77
          %s1251 = sshll.u32 %s1249, 4
          %s1252 = int_to_ptr.hbm [resolvable:$true] %s1251
          %s1253 = sshll.u32 %s1246, 4
          %s1254 = int_to_ptr.vmem [resolvable:$true] %s1253
          %1256 = dma.hbm_to_vmem [thread:$0]  %s1252, 16, %s1254, %s1244
        $region124: #{tpu_custom_call.1} parent=15 // pred_fallthru
          _
      $region16: #{tpu_custom_call.1} parent=5 // pred_fallthru
        _
      %p1257 = scmp.le.s32.totalorder 1, %s69
      %p1258 = scmp.lt.s32.totalorder %s69, 5
      %p1259 = pnand %p1257, %p1258
      %p1260 = pneg %p1259
      // Predicated region
      $region125: #{tpu_custom_call.1} parent=5 // pred_check
        _
      $region126: #{tpu_custom_call.1} parent=5 // pred_check_branch
        %1262 = sbr.rel (%p1259) target = $region128
      $region127: #{tpu_custom_call.1} parent=5 // pred_region
        %s1263 = ssub.s32 %s69, 1
        %s1264 = sand.u32 %s172, 1
        %s1265 = scalar_lea.sflag [#allocation3], %s1264
        %s1266 = sand.u32 %s172, 1
        %s1267 = scalar_lea.vmem [#allocation2], %s1266
        // Predicated region
        $region129: #{tpu_custom_call.1} parent=127 // pred_check
          %p1268 = pneg %p185
        $region130: #{tpu_custom_call.1} parent=127 // pred_check_branch
          %1270 = sbr.rel (%p1268) target = $region132
        $region131: #{tpu_custom_call.1} parent=127 // pred_region
          %1272 = dma.done %s1265, 16
        $region132: #{tpu_custom_call.1} parent=127 // pred_fallthru
          _
        %s1273 = sand.u32 %s74, 1
        %s1274 = scalar_lea.sflag [#allocation6], %s1273
        %s1275 = sand.u32 %s198, 1
        %s1276 = smul.addr %s1275, 2
        %s1277 = scalar_lea.vmem [#allocation5], %s1276
        // Predicated region
        $region133: #{tpu_custom_call.1} parent=127 // pred_check
          %p1278 = pneg %p211
        $region134: #{tpu_custom_call.1} parent=127 // pred_check_branch
          %1280 = sbr.rel (%p1278) target = $region136
        $region135: #{tpu_custom_call.1} parent=127 // pred_region
          %1282 = dma.done %s1274, 32
        $region136: #{tpu_custom_call.1} parent=127 // pred_fallthru
          _
        %s1283 = sand.u32 %s74, 1
        %s1284 = scalar_lea.sflag [#allocation6], %s1283
        %s1285 = sand.u32 %s250, 1
        %s1286 = scalar_lea.vmem [#allocation7], %s1285
        // Predicated region
        $region137: #{tpu_custom_call.1} parent=127 // pred_check
          %p1287 = pneg %p263
        $region138: #{tpu_custom_call.1} parent=127 // pred_check_branch
          %1289 = sbr.rel (%p1287) target = $region140
        $region139: #{tpu_custom_call.1} parent=127 // pred_region
          %1291 = dma.done %s1284, 16
        $region140: #{tpu_custom_call.1} parent=127 // pred_fallthru
          _
        %s1292 = sand.u32 %s74, 1
        %s1293 = scalar_lea.sflag [#allocation9], %s1292
        %s1294 = sand.u32 %s302, 1
        %s1295 = scalar_lea.vmem [#allocation8], %s1294
        // Predicated region
        $region141: #{tpu_custom_call.1} parent=127 // pred_check
          %p1296 = pneg %p315
        $region142: #{tpu_custom_call.1} parent=127 // pred_check_branch
          %1298 = sbr.rel (%p1296) target = $region144
        $region143: #{tpu_custom_call.1} parent=127 // pred_region
          %1300 = dma.done %s1293, 16
        $region144: #{tpu_custom_call.1} parent=127 // pred_fallthru
          _
        %s1301 = sand.u32 %s74, 1
        %s1302 = scalar_lea.sflag [#allocation9], %s1301
        %s1303 = sand.u32 %s354, 1
        %s1304 = scalar_lea.vmem [#allocation10], %s1303
        // Predicated region
        $region145: #{tpu_custom_call.1} parent=127 // pred_check
          %p1305 = pneg %p367
        $region146: #{tpu_custom_call.1} parent=127 // pred_check_branch
          %1307 = sbr.rel (%p1305) target = $region148
        $region147: #{tpu_custom_call.1} parent=127 // pred_region
          %1309 = dma.done %s1302, 16
        $region148: #{tpu_custom_call.1} parent=127 // pred_fallthru
          _
        %s1310 = sand.u32 %s74, 1
        %s1311 = scalar_lea.sflag [#allocation12], %s1310
        %s1312 = sand.u32 %s380, 1
        %s1313 = smul.addr %s1312, 16
        %s1314 = scalar_lea.vmem [#allocation11], %s1313
        // Predicated region
        $region149: #{tpu_custom_call.1} parent=127 // pred_check
          %p1315 = pneg %p393
        $region150: #{tpu_custom_call.1} parent=127 // pred_check_branch
          %1317 = sbr.rel (%p1315) target = $region152
        $region151: #{tpu_custom_call.1} parent=127 // pred_region
          %1319 = dma.done %s1311, 256
        $region152: #{tpu_custom_call.1} parent=127 // pred_fallthru
          _
        %s1320 = sand.u32 %s74, 1
        %s1321 = scalar_lea.sflag [#allocation12], %s1320
        %s1322 = sand.u32 %s406, 1
        %s1323 = scalar_lea.vmem [#allocation13], %s1322
        // Predicated region
        $region153: #{tpu_custom_call.1} parent=127 // pred_check
          %p1324 = pneg %p419
        $region154: #{tpu_custom_call.1} parent=127 // pred_check_branch
          %1326 = sbr.rel (%p1324) target = $region156
        $region155: #{tpu_custom_call.1} parent=127 // pred_region
          %1328 = dma.done %s1321, 16
        $region156: #{tpu_custom_call.1} parent=127 // pred_fallthru
          _
        %s1329 = sand.u32 %s74, 1
        %s1330 = scalar_lea.sflag [#allocation15], %s1329
        %s1331 = sand.u32 %s432, 1
        %s1332 = smul.addr %s1331, 2
        %s1333 = scalar_lea.vmem [#allocation14], %s1332
        // Predicated region
        $region157: #{tpu_custom_call.1} parent=127 // pred_check
          %p1334 = pneg %p445
        $region158: #{tpu_custom_call.1} parent=127 // pred_check_branch
          %1336 = sbr.rel (%p1334) target = $region160
        $region159: #{tpu_custom_call.1} parent=127 // pred_region
          %1338 = dma.done %s1330, 32
        $region160: #{tpu_custom_call.1} parent=127 // pred_fallthru
          _
        %s1339 = sand.u32 %s74, 1
        %s1340 = scalar_lea.sflag [#allocation15], %s1339
        %s1341 = sand.u32 %s458, 1
        %s1342 = smul.addr %s1341, 16
        %s1343 = scalar_lea.vmem [#allocation16], %s1342
        // Predicated region
        $region161: #{tpu_custom_call.1} parent=127 // pred_check
          %p1344 = pneg %p471
        $region162: #{tpu_custom_call.1} parent=127 // pred_check_branch
          %1346 = sbr.rel (%p1344) target = $region164
        $region163: #{tpu_custom_call.1} parent=127 // pred_region
          %1348 = dma.done %s1340, 256
        $region164: #{tpu_custom_call.1} parent=127 // pred_fallthru
          _
        %s1349 = sand.u32 %s74, 1
        %s1350 = scalar_lea.sflag [#allocation18], %s1349
        %s1351 = sand.u32 %s484, 1
        %s1352 = scalar_lea.vmem [#allocation17], %s1351
        // Predicated region
        $region165: #{tpu_custom_call.1} parent=127 // pred_check
          %p1353 = pneg %p497
        $region166: #{tpu_custom_call.1} parent=127 // pred_check_branch
          %1355 = sbr.rel (%p1353) target = $region168
        $region167: #{tpu_custom_call.1} parent=127 // pred_region
          %1357 = dma.done %s1350, 16
        $region168: #{tpu_custom_call.1} parent=127 // pred_fallthru
          _
        %s1358 = sand.u32 %s74, 1
        %s1359 = scalar_lea.sflag [#allocation18], %s1358
        %s1360 = sand.u32 %s510, 1
        %s1361 = smul.addr %s1360, 16
        %s1362 = scalar_lea.vmem [#allocation19], %s1361
        // Predicated region
        $region169: #{tpu_custom_call.1} parent=127 // pred_check
          %p1363 = pneg %p523
        $region170: #{tpu_custom_call.1} parent=127 // pred_check_branch
          %1365 = sbr.rel (%p1363) target = $region172
        $region171: #{tpu_custom_call.1} parent=127 // pred_region
          %1367 = dma.done %s1359, 256
        $region172: #{tpu_custom_call.1} parent=127 // pred_fallthru
          _
        %s1368 = sand.u32 %s74, 1
        %s1369 = scalar_lea.sflag [#allocation21], %s1368
        %s1370 = sand.u32 %s536, 1
        %s1371 = scalar_lea.vmem [#allocation20], %s1370
        // Predicated region
        $region173: #{tpu_custom_call.1} parent=127 // pred_check
          %p1372 = pneg %p549
        $region174: #{tpu_custom_call.1} parent=127 // pred_check_branch
          %1374 = sbr.rel (%p1372) target = $region176
        $region175: #{tpu_custom_call.1} parent=127 // pred_region
          %1376 = dma.done %s1369, 16
        $region176: #{tpu_custom_call.1} parent=127 // pred_fallthru
          _
        %s1377 = sand.u32 %s74, 1
        %s1378 = scalar_lea.sflag [#allocation21], %s1377
        %s1379 = sand.u32 %s562, 1
        %s1380 = smul.addr %s1379, 16
        %s1381 = scalar_lea.vmem [#allocation22], %s1380
        // Predicated region
        $region177: #{tpu_custom_call.1} parent=127 // pred_check
          %p1382 = pneg %p575
        $region178: #{tpu_custom_call.1} parent=127 // pred_check_branch
          %1384 = sbr.rel (%p1382) target = $region180
        $region179: #{tpu_custom_call.1} parent=127 // pred_region
          %1386 = dma.done %s1378, 256
        $region180: #{tpu_custom_call.1} parent=127 // pred_fallthru
          _
        %s1387 = sand.u32 %s74, 1
        %s1388 = scalar_lea.sflag [#allocation24], %s1387
        %s1389 = sand.u32 %s588, 1
        %s1390 = scalar_lea.vmem [#allocation23], %s1389
        // Predicated region
        $region181: #{tpu_custom_call.1} parent=127 // pred_check
          %p1391 = pneg %p601
        $region182: #{tpu_custom_call.1} parent=127 // pred_check_branch
          %1393 = sbr.rel (%p1391) target = $region184
        $region183: #{tpu_custom_call.1} parent=127 // pred_region
          %1395 = dma.done %s1388, 16
        $region184: #{tpu_custom_call.1} parent=127 // pred_fallthru
          _
        %s1396 = sand.u32 %s74, 1
        %s1397 = scalar_lea.sflag [#allocation24], %s1396
        %s1398 = sand.u32 %s614, 1
        %s1399 = smul.addr %s1398, 16
        %s1400 = scalar_lea.vmem [#allocation25], %s1399
        // Predicated region
        $region185: #{tpu_custom_call.1} parent=127 // pred_check
          %p1401 = pneg %p627
        $region186: #{tpu_custom_call.1} parent=127 // pred_check_branch
          %1403 = sbr.rel (%p1401) target = $region188
        $region187: #{tpu_custom_call.1} parent=127 // pred_region
          %1405 = dma.done %s1397, 256
        $region188: #{tpu_custom_call.1} parent=127 // pred_fallthru
          _
        %s1406 = sand.u32 %s74, 1
        %s1407 = scalar_lea.sflag [#allocation27], %s1406
        %s1408 = sand.u32 %s640, 1
        %s1409 = scalar_lea.vmem [#allocation26], %s1408
        // Predicated region
        $region189: #{tpu_custom_call.1} parent=127 // pred_check
          %p1410 = pneg %p653
        $region190: #{tpu_custom_call.1} parent=127 // pred_check_branch
          %1412 = sbr.rel (%p1410) target = $region192
        $region191: #{tpu_custom_call.1} parent=127 // pred_region
          %1414 = dma.done %s1407, 16
        $region192: #{tpu_custom_call.1} parent=127 // pred_fallthru
          _
        %s1415 = sand.u32 %s74, 1
        %s1416 = scalar_lea.sflag [#allocation27], %s1415
        %s1417 = sand.u32 %s666, 1
        %s1418 = smul.addr %s1417, 2
        %s1419 = scalar_lea.vmem [#allocation28], %s1418
        // Predicated region
        $region193: #{tpu_custom_call.1} parent=127 // pred_check
          %p1420 = pneg %p679
        $region194: #{tpu_custom_call.1} parent=127 // pred_check_branch
          %1422 = sbr.rel (%p1420) target = $region196
        $region195: #{tpu_custom_call.1} parent=127 // pred_region
          %1424 = dma.done %s1416, 32
        $region196: #{tpu_custom_call.1} parent=127 // pred_fallthru
          _
        %s1425 = sand.u32 %s74, 1
        %s1426 = scalar_lea.sflag [#allocation30], %s1425
        %s1427 = sand.u32 %s692, 1
        %s1428 = smul.addr %s1427, 16
        %s1429 = scalar_lea.vmem [#allocation29], %s1428
        // Predicated region
        $region197: #{tpu_custom_call.1} parent=127 // pred_check
          %p1430 = pneg %p705
        $region198: #{tpu_custom_call.1} parent=127 // pred_check_branch
          %1432 = sbr.rel (%p1430) target = $region200
        $region199: #{tpu_custom_call.1} parent=127 // pred_region
          %1434 = dma.done %s1426, 256
        $region200: #{tpu_custom_call.1} parent=127 // pred_fallthru
          _
        %s1435 = sand.u32 %s74, 1
        %s1436 = scalar_lea.sflag [#allocation30], %s1435
        %s1437 = sand.u32 %s718, 1
        %s1438 = scalar_lea.vmem [#allocation31], %s1437
        // Predicated region
        $region201: #{tpu_custom_call.1} parent=127 // pred_check
          %p1439 = pneg %p731
        $region202: #{tpu_custom_call.1} parent=127 // pred_check_branch
          %1441 = sbr.rel (%p1439) target = $region204
        $region203: #{tpu_custom_call.1} parent=127 // pred_region
          %1443 = dma.done %s1436, 16
        $region204: #{tpu_custom_call.1} parent=127 // pred_fallthru
          _
        %s1444 = sand.u32 %s770, 1
        %s1445 = scalar_lea.sflag [#allocation33], %s1444
        %s1446 = sand.u32 %s770, 1
        %s1447 = scalar_lea.vmem [#allocation32], %s1446
        // Predicated region
        $region205: #{tpu_custom_call.1} parent=127 // pred_check
          %p1448 = pneg %p783
        $region206: #{tpu_custom_call.1} parent=127 // pred_check_branch
          %1450 = sbr.rel (%p1448) target = $region208
        $region207: #{tpu_custom_call.1} parent=127 // pred_region
          %1452 = dma.done %s1445, 16
        $region208: #{tpu_custom_call.1} parent=127 // pred_fallthru
          _
        %p1453 = scmp.lt.s32.totalorder %s78, 1
        %s1454 = scalar_select %p1453, %s78, 1
        %s1455 = smul.addr %s1454, 8
        %s1456 = scalar_lea.vmem %s0, %s1455
        %p1457 = pneg %p107
        %p1458 = pneg %p104
        %p1459 = scmp.lt.s32.totalorder %s78, 1
        %s1460 = scalar_select %p1459, %s78, 1
        %s1461 = smul.addr %s1460, 2
        %s1462 = smul.addr %s1461, 4
        %s1463 = scalar_lea.vmem %s1, %s1462
        %p1464 = pneg %p133
        %p1465 = pneg %p130
        %p1466 = scmp.lt.s32.totalorder %s78, 1
        %s1467 = scalar_select %p1466, %s78, 1
        %s1468 = scalar_lea.vmem %s2, %s1467
        %p1469 = pneg %p159
        %p1470 = pneg %p156
        %s1471 = sand.u32 %s172, 1
        %s1472 = scalar_lea.sflag [#allocation3], %s1471
        %s1473 = sand.u32 %s172, 1
        %s1474 = scalar_lea.vmem [#allocation2], %s1473
        %p1475 = pneg %p185
        %p1476 = pneg %p182
        %s1477 = sand.u32 %s74, 1
        %s1478 = scalar_lea.sflag [#allocation6], %s1477
        %s1479 = sand.u32 %s198, 1
        %s1480 = smul.addr %s1479, 2
        %s1481 = scalar_lea.vmem [#allocation5], %s1480
        %p1482 = pneg %p211
        %p1483 = pneg %p208
        %p1484 = scmp.lt.s32.totalorder %s79, 1
        %s1485 = scalar_select %p1484, %s79, 1
        %s1486 = smul.addr %s1485, 4
        %s1487 = smul.addr %s1486, 4
        %s1488 = scalar_lea.vmem %s5, %s1487
        %p1489 = pneg %p237
        %p1490 = pneg %p234
        %s1491 = sand.u32 %s74, 1
        %s1492 = scalar_lea.sflag [#allocation6], %s1491
        %s1493 = sand.u32 %s250, 1
        %s1494 = scalar_lea.vmem [#allocation7], %s1493
        %p1495 = pneg %p263
        %p1496 = pneg %p260
        %p1497 = scmp.lt.s32.totalorder %s79, 1
        %s1498 = scalar_select %p1497, %s79, 1
        %s1499 = smul.addr %s1498, 4
        %s1500 = smul.addr %s1499, 4
        %s1501 = scalar_lea.vmem %s7, %s1500
        %p1502 = pneg %p289
        %p1503 = pneg %p286
        %s1504 = sand.u32 %s74, 1
        %s1505 = scalar_lea.sflag [#allocation9], %s1504
        %s1506 = sand.u32 %s302, 1
        %s1507 = scalar_lea.vmem [#allocation8], %s1506
        %p1508 = pneg %p315
        %p1509 = pneg %p312
        %p1510 = scmp.lt.s32.totalorder %s79, 1
        %s1511 = scalar_select %p1510, %s79, 1
        %s1512 = smul.addr %s1511, 4
        %s1513 = smul.addr %s1512, 4
        %s1514 = scalar_lea.vmem %s9, %s1513
        %p1515 = pneg %p341
        %p1516 = pneg %p338
        %s1517 = sand.u32 %s74, 1
        %s1518 = scalar_lea.sflag [#allocation9], %s1517
        %s1519 = sand.u32 %s354, 1
        %s1520 = scalar_lea.vmem [#allocation10], %s1519
        %p1521 = pneg %p367
        %p1522 = pneg %p364
        %s1523 = sand.u32 %s74, 1
        %s1524 = scalar_lea.sflag [#allocation12], %s1523
        %s1525 = sand.u32 %s380, 1
        %s1526 = smul.addr %s1525, 16
        %s1527 = scalar_lea.vmem [#allocation11], %s1526
        %p1528 = pneg %p393
        %p1529 = pneg %p390
        %s1530 = sand.u32 %s74, 1
        %s1531 = scalar_lea.sflag [#allocation12], %s1530
        %s1532 = sand.u32 %s406, 1
        %s1533 = scalar_lea.vmem [#allocation13], %s1532
        %p1534 = pneg %p419
        %p1535 = pneg %p416
        %s1536 = sand.u32 %s74, 1
        %s1537 = scalar_lea.sflag [#allocation15], %s1536
        %s1538 = sand.u32 %s432, 1
        %s1539 = smul.addr %s1538, 2
        %s1540 = scalar_lea.vmem [#allocation14], %s1539
        %p1541 = pneg %p445
        %p1542 = pneg %p442
        %s1543 = sand.u32 %s74, 1
        %s1544 = scalar_lea.sflag [#allocation15], %s1543
        %s1545 = sand.u32 %s458, 1
        %s1546 = smul.addr %s1545, 16
        %s1547 = scalar_lea.vmem [#allocation16], %s1546
        %p1548 = pneg %p471
        %p1549 = pneg %p468
        %s1550 = sand.u32 %s74, 1
        %s1551 = scalar_lea.sflag [#allocation18], %s1550
        %s1552 = sand.u32 %s484, 1
        %s1553 = scalar_lea.vmem [#allocation17], %s1552
        %p1554 = pneg %p497
        %p1555 = pneg %p494
        %s1556 = sand.u32 %s74, 1
        %s1557 = scalar_lea.sflag [#allocation18], %s1556
        %s1558 = sand.u32 %s510, 1
        %s1559 = smul.addr %s1558, 16
        %s1560 = scalar_lea.vmem [#allocation19], %s1559
        %p1561 = pneg %p523
        %p1562 = pneg %p520
        %s1563 = sand.u32 %s74, 1
        %s1564 = scalar_lea.sflag [#allocation21], %s1563
        %s1565 = sand.u32 %s536, 1
        %s1566 = scalar_lea.vmem [#allocation20], %s1565
        %p1567 = pneg %p549
        %p1568 = pneg %p546
        %s1569 = sand.u32 %s74, 1
        %s1570 = scalar_lea.sflag [#allocation21], %s1569
        %s1571 = sand.u32 %s562, 1
        %s1572 = smul.addr %s1571, 16
        %s1573 = scalar_lea.vmem [#allocation22], %s1572
        %p1574 = pneg %p575
        %p1575 = pneg %p572
        %s1576 = sand.u32 %s74, 1
        %s1577 = scalar_lea.sflag [#allocation24], %s1576
        %s1578 = sand.u32 %s588, 1
        %s1579 = scalar_lea.vmem [#allocation23], %s1578
        %p1580 = pneg %p601
        %p1581 = pneg %p598
        %s1582 = sand.u32 %s74, 1
        %s1583 = scalar_lea.sflag [#allocation24], %s1582
        %s1584 = sand.u32 %s614, 1
        %s1585 = smul.addr %s1584, 16
        %s1586 = scalar_lea.vmem [#allocation25], %s1585
        %p1587 = pneg %p627
        %p1588 = pneg %p624
        %s1589 = sand.u32 %s74, 1
        %s1590 = scalar_lea.sflag [#allocation27], %s1589
        %s1591 = sand.u32 %s640, 1
        %s1592 = scalar_lea.vmem [#allocation26], %s1591
        %p1593 = pneg %p653
        %p1594 = pneg %p650
        %s1595 = sand.u32 %s74, 1
        %s1596 = scalar_lea.sflag [#allocation27], %s1595
        %s1597 = sand.u32 %s666, 1
        %s1598 = smul.addr %s1597, 2
        %s1599 = scalar_lea.vmem [#allocation28], %s1598
        %p1600 = pneg %p679
        %p1601 = pneg %p676
        %s1602 = sand.u32 %s74, 1
        %s1603 = scalar_lea.sflag [#allocation30], %s1602
        %s1604 = sand.u32 %s692, 1
        %s1605 = smul.addr %s1604, 16
        %s1606 = scalar_lea.vmem [#allocation29], %s1605
        %p1607 = pneg %p705
        %p1608 = pneg %p702
        %s1609 = sand.u32 %s74, 1
        %s1610 = scalar_lea.sflag [#allocation30], %s1609
        %s1611 = sand.u32 %s718, 1
        %s1612 = scalar_lea.vmem [#allocation31], %s1611
        %p1613 = pneg %p731
        %p1614 = pneg %p728
        %p1615 = scmp.lt.s32.totalorder %s79, 1
        %s1616 = scalar_select %p1615, %s79, 1
        %s1617 = smul.addr %s1616, 8
        %s1618 = smul.addr %s1617, 4
        %s1619 = scalar_lea.vmem %s25, %s1618
        %p1620 = pneg %p757
        %p1621 = pneg %p754
        %s1622 = sand.u32 %s770, 1
        %s1623 = scalar_lea.sflag [#allocation33], %s1622
        %s1624 = sand.u32 %s770, 1
        %s1625 = scalar_lea.vmem [#allocation32], %s1624
        %p1626 = pneg %p783
        %p1627 = pneg %p780
        %p1628 = pneg %p809
        %p1629 = pneg %p806
        %s1630 = sand.u32 %s796, 1
        %s1631 = scalar_lea.sflag [#allocation4], %s1630
        %s1632 = sand.u32 %s796, 1
        %s1633 = smul.addr %s1632, 8
        %s1634 = scalar_lea.vmem [#allocation34], %s1633
        %p1635 = scmp.lt.s32.totalorder %s78, 1
        %s1636 = scalar_select %p1635, %s78, 1
        %s1637 = smul.addr %s1636, 8
        %s1638 = scalar_lea.vmem %s0, %s1637
        %p1639 = scmp.lt.s32.totalorder %s78, 1
        %s1640 = scalar_select %p1639, %s78, 1
        %s1641 = smul.addr %s1640, 2
        %s1642 = smul.addr %s1641, 4
        %s1643 = scalar_lea.vmem %s1, %s1642
        %p1644 = scmp.lt.s32.totalorder %s78, 1
        %s1645 = scalar_select %p1644, %s78, 1
        %s1646 = scalar_lea.vmem %s2, %s1645
        %p1647 = scmp.lt.s32.totalorder %s79, 1
        %s1648 = scalar_select %p1647, %s79, 1
        %s1649 = smul.addr %s1648, 4
        %s1650 = smul.addr %s1649, 4
        %s1651 = scalar_lea.vmem %s5, %s1650
        %p1652 = scmp.lt.s32.totalorder %s79, 1
        %s1653 = scalar_select %p1652, %s79, 1
        %s1654 = smul.addr %s1653, 4
        %s1655 = smul.addr %s1654, 4
        %s1656 = scalar_lea.vmem %s7, %s1655
        %p1657 = scmp.lt.s32.totalorder %s79, 1
        %s1658 = scalar_select %p1657, %s79, 1
        %s1659 = smul.addr %s1658, 4
        %s1660 = smul.addr %s1659, 4
        %s1661 = scalar_lea.vmem %s9, %s1660
        %p1662 = scmp.lt.s32.totalorder %s79, 1
        %s1663 = scalar_select %p1662, %s79, 1
        %s1664 = smul.addr %s1663, 8
        %s1665 = smul.addr %s1664, 4
        %s1666 = scalar_lea.vmem %s25, %s1665
        %p1668 = scmp.eq.s32.totalorder %s79, 0
        // Predicated region
        $region209: #{tpu_custom_call.1} parent=127 // pred_check
          %p1669 = pneg %p1668
        $region210: #{tpu_custom_call.1} parent=127 // pred_check_branch
          %1671 = sbr.rel (%p1669) target = $region212
        $region211: #{tpu_custom_call.1} parent=127 // pred_region
          %v1672 = vld [vmem:[%s1638] sm:$0xff]
          %vm1673 = vcmask 261120
          %1674 = vst.msk [vmem:[%s1634] sm:$0xff] %vm1673, %v1672
        $region212: #{tpu_custom_call.1} parent=127 // pred_fallthru
          _
        %v1675 = vld [vmem:[%s1634] sm:$0xff]
        %v1676 = vld [vmem:[%s1643] sm:$0xf]
        %v1677 = vld [vmem:[%s1643 + $0x4] sm:$0x1]
        %v1678 = vlaneseq
        %v1679 = vshrl.u32 %v1678, 7
        %v1680 = vlaneseq
        %v1681 = vand.u32 %v1680, 127
        %vm1682 = vcmp.le.s32.totalorder %v1681, %v1679
        %v1683 = vsel %vm1682, 0.0, -1e+30
        %v1684 = vld [vmem:[%s1646] sm:$0x1]
        %v1686 = vperm.slane %v1684, 0
        %v1688 = vadd.f32 %v1683, %v1686
        %v1689 = vld [vmem:[%s1267] sm:$0x1]
        %v1690 = vld [vmem:[%s1277] sm:$0x3]
        %vm1691 = vcmask 261120
        %v1692 = vsel %vm1691, %v1675, 0.0
        %1693 = vadd.xlane.f32.xlu0 %v1692
        %v1694 = vpop.xlane.xlu0 %1693
        %v1695 = vrcp.pop 32.0
        %v1696 = vmul.f32 32.0, %v1695
        %v1697 = vsub.f32 1.0, %v1696
        %v1698 = vmul.f32 %v1695, %v1697
        %v1699 = vadd.f32 %v1695, %v1698
        %vm1700 = vweird.f32 %v1695
        %v1701 = vsel %vm1700, %v1695, %v1699
        %v1702 = vmul.f32 %v1694, %v1701
        %v1703 = vsub.f32 %v1675, %v1702
        %v1704 = vmul.f32 %v1703, %v1703
        %v1705 = vsel %vm1691, %v1704, 0.0
        %1706 = vadd.xlane.f32.xlu0 %v1705
        %v1707 = vpop.xlane.xlu0 %1706
        %v1708 = vmul.f32 %v1707, %v1701
        %v1709 = vadd.f32 %v1708, 1e-06
        %v1710 = vrsqrt.pop %v1709
        %v1711 = vmul.f32 %v1710, %v1709
        %v1712 = vmul.f32 %v1711, %v1710
        %v1713 = vmul.f32 0.5, %v1712
        %v1714 = vsub.f32 1.5, %v1713
        %v1715 = vmul.f32 %v1710, %v1714
        %vm1716 = vweird.f32 %v1709
        %vm1717 = vweird.f32 %v1710
        %vm1718 = vmor %vm1716, %vm1717
        %v1719 = vsel %vm1718, %v1710, %v1715
        %v1720 = vmul.f32 %v1703, %v1719
        %v1721 = vperm.slane %v1690, 0
        %v1722 = vmul.f32 %v1720, %v1721
        %v1723 = vperm.slane %v1690, 1
        %v1724 = vadd.f32 %v1722, %v1723
        %v1725 = vpack.c.bf16 %v1724, %v1724
        %v1726 = vld [vmem:[%s1651] sm:$0xf]
        %v1727 = vld [vmem:[%s1651 + $0x4] sm:$0xf]
        %v1728 = vld [vmem:[%s1651 + $0x8] sm:$0xf]
        %v1729 = vld [vmem:[%s1651 + $0xc] sm:$0xf]
        %v1730 = vld [vmem:[%s1286] sm:$0x1]
        %v1732 = vperm.slane %v1730, 0
        %v1738 = vunpack.c.l.b16 %v1726
        %v1739 = vunpack.c.l.b16 %v1727
        %v1740 = vunpack.c.l.b16 %v1728
        %v1741 = vunpack.c.l.b16 %v1729
        %v1742 = vpack.c.b16 %v1739, %v1738
        %v1743 = vpack.c.b16 %v1741, %v1740
        %v1747 = vsel %vm1691, %v1725, 0
        %1749 = vmatpush.bf16.msra.mxu0 0
        %1750 = vmatpush.bf16.msra.mxu0 0
        %1751 = vmatpush.bf16.msra.mxu0 0
        %1752 = vmatpush.bf16.msra.mxu0 0
        %1753 = vmatpush.bf16.msra.mxu0 0
        %1754 = vmatpush.bf16.msra.mxu0 0
        %1755 = vmatpush.bf16.msra.mxu0 %v1743
        %1756 = vmatpush.bf16.msra.mxu0 %v1742
        %1757 = vmatmul.bf16.gmra.mxu0 %v1747
        %v1758 = vpop.f32.mrf.mxu0
        %v1759 = vadd.f32 %v1732, %v1758
        %v1760 = vpop.f32.mrf.mxu0
        %1761 = vdwg.mxu0
        %v1762 = vld [vmem:[%s1656] sm:$0xf]
        %v1763 = vld [vmem:[%s1656 + $0x4] sm:$0xf]
        %v1764 = vld [vmem:[%s1656 + $0x8] sm:$0xf]
        %v1765 = vld [vmem:[%s1656 + $0xc] sm:$0xf]
        %v1766 = vld [vmem:[%s1295] sm:$0x1]
        %v1768 = vperm.slane %v1766, 0
        %v1774 = vunpack.c.l.b16 %v1762
        %v1775 = vunpack.c.l.b16 %v1763
        %v1776 = vunpack.c.l.b16 %v1764
        %v1777 = vunpack.c.l.b16 %v1765
        %v1778 = vpack.c.b16 %v1775, %v1774
        %v1779 = vpack.c.b16 %v1777, %v1776
        %1782 = vmatpush.bf16.msra.mxu0 0
        %1783 = vmatpush.bf16.msra.mxu0 0
        %1784 = vmatpush.bf16.msra.mxu0 0
        %1785 = vmatpush.bf16.msra.mxu0 0
        %1786 = vmatpush.bf16.msra.mxu0 0
        %1787 = vmatpush.bf16.msra.mxu0 0
        %1788 = vmatpush.bf16.msra.mxu0 %v1779
        %1789 = vmatpush.bf16.msra.mxu0 %v1778
        %1790 = vmatmul.bf16.gmra.mxu0 %v1747
        %v1791 = vpop.f32.mrf.mxu0
        %v1792 = vadd.f32 %v1768, %v1791
        %v1793 = vpop.f32.mrf.mxu0
        %1794 = vdwg.mxu0
        %v1795 = vld [vmem:[%s1661] sm:$0xf]
        %v1796 = vld [vmem:[%s1661 + $0x4] sm:$0xf]
        %v1797 = vld [vmem:[%s1661 + $0x8] sm:$0xf]
        %v1798 = vld [vmem:[%s1661 + $0xc] sm:$0xf]
        %v1799 = vld [vmem:[%s1304] sm:$0x1]
        %v1801 = vperm.slane %v1799, 0
        %v1807 = vunpack.c.l.b16 %v1795
        %v1808 = vunpack.c.l.b16 %v1796
        %v1809 = vunpack.c.l.b16 %v1797
        %v1810 = vunpack.c.l.b16 %v1798
        %v1811 = vpack.c.b16 %v1808, %v1807
        %v1812 = vpack.c.b16 %v1810, %v1809
        %1815 = vmatpush.bf16.msra.mxu0 0
        %1816 = vmatpush.bf16.msra.mxu0 0
        %1817 = vmatpush.bf16.msra.mxu0 0
        %1818 = vmatpush.bf16.msra.mxu0 0
        %1819 = vmatpush.bf16.msra.mxu0 0
        %1820 = vmatpush.bf16.msra.mxu0 0
        %1821 = vmatpush.bf16.msra.mxu0 %v1812
        %1822 = vmatpush.bf16.msra.mxu0 %v1811
        %1823 = vmatmul.bf16.gmra.mxu0 %v1747
        %v1824 = vpop.f32.mrf.mxu0
        %v1825 = vadd.f32 %v1801, %v1824
        %v1826 = vpop.f32.mrf.mxu0
        %1827 = vdwg.mxu0
        %1829 = vrot.lane.b32.xlu0 %v1759, 120
        %v1830 = vpop.permute.xlu0 %1829
        %1832 = vrot.lane.b32.xlu0 %v1759, 112
        %v1833 = vpop.permute.xlu0 %1832
        %1835 = vrot.lane.b32.xlu0 %v1759, 104
        %v1836 = vpop.permute.xlu0 %1835
        %v1838 = vrot.slane %v1833, 4
        %vm1839 = vcmask 1047556
        %v1840 = vsel %vm1839, %v1838, %v1759
        %v1841 = vrot.slane %v1759, 4
        %v1842 = vsel %vm1839, %v1833, %v1841
        %v1844 = vunpack.c.l.s4 1983009808
        %v1845 = vunpack.c.0.s8 %v1844
        %v1846 = vperm.slane %v1840, %v1845
        %v1848 = vunpack.c.l.s4 1983009808
        %v1849 = vunpack.c.0.s8 %v1848
        %v1850 = vperm.slane %v1842, %v1849
        %v1851 = vrot.slane %v1836, 4
        %v1852 = vsel %vm1839, %v1851, %v1830
        %v1853 = vrot.slane %v1830, 4
        %v1854 = vsel %vm1839, %v1836, %v1853
        %v1856 = vunpack.c.l.s4 1983009808
        %v1857 = vunpack.c.0.s8 %v1856
        %v1858 = vperm.slane %v1852, %v1857
        %v1860 = vunpack.c.l.s4 1983009808
        %v1861 = vunpack.c.0.s8 %v1860
        %v1862 = vperm.slane %v1854, %v1861
        %v1863 = vrot.slane %v1858, 4
        %v1864 = vsel %vm1839, %v1863, %v1846
        %v1865 = vrot.slane %v1846, 4
        %v1866 = vsel %vm1839, %v1858, %v1865
        %v1868 = vunpack.c.l.s4 1934713408
        %v1869 = vunpack.c.0.s8 %v1868
        %v1870 = vperm.slane %v1864, %v1869
        %v1872 = vunpack.c.l.s4 1934713408
        %v1873 = vunpack.c.0.s8 %v1872
        %v1874 = vperm.slane %v1866, %v1873
        %v1875 = vrot.slane %v1862, 4
        %v1876 = vsel %vm1839, %v1875, %v1850
        %v1877 = vrot.slane %v1850, 4
        %v1878 = vsel %vm1839, %v1862, %v1877
        %v1880 = vunpack.c.l.s4 1934713408
        %v1881 = vunpack.c.0.s8 %v1880
        %v1882 = vperm.slane %v1876, %v1881
        %v1884 = vunpack.c.l.s4 1934713408
        %v1885 = vunpack.c.0.s8 %v1884
        %v1886 = vperm.slane %v1878, %v1885
        %v1887 = vrot.slane %v1870, 4
        %v1888 = vsel %vm1839, 0.0, %v1887
        %v1889 = vrot.slane %v1874, 4
        %v1890 = vsel %vm1839, 0.0, %v1889
        %v1891 = vrot.slane %v1882, 4
        %v1892 = vsel %vm1839, 0.0, %v1891
        %v1893 = vrot.slane %v1886, 4
        %v1894 = vsel %vm1839, 0.0, %v1893
        %v1895 = vsel %vm1839, %v1889, %v1870
        %v1897 = vunpack.c.l.s4 1983009808
        %v1898 = vunpack.c.0.s8 %v1897
        %v1899 = vperm.slane %v1895, %v1898
        %v1900 = vrot.slane %v1890, 4
        %v1901 = vsel %vm1839, %v1900, %v1888
        %v1903 = vunpack.c.l.s4 1983009808
        %v1904 = vunpack.c.0.s8 %v1903
        %v1905 = vperm.slane %v1901, %v1904
        %v1906 = vsel %vm1839, %v1893, %v1882
        %v1908 = vunpack.c.l.s4 1983009808
        %v1909 = vunpack.c.0.s8 %v1908
        %v1910 = vperm.slane %v1906, %v1909
        %v1911 = vrot.slane %v1894, 4
        %v1912 = vsel %vm1839, %v1911, %v1892
        %v1914 = vunpack.c.l.s4 1983009808
        %v1915 = vunpack.c.0.s8 %v1914
        %v1916 = vperm.slane %v1912, %v1915
        %v1917 = vrot.slane %v1905, 4
        %v1918 = vsel %vm1839, %v1917, %v1899
        %v1919 = vrot.slane %v1899, 4
        %v1920 = vsel %vm1839, %v1905, %v1919
        %v1922 = vunpack.c.l.s4 1934713408
        %v1923 = vunpack.c.0.s8 %v1922
        %v1924 = vperm.slane %v1918, %v1923
        %v1926 = vunpack.c.l.s4 1934713408
        %v1927 = vunpack.c.0.s8 %v1926
        %v1928 = vperm.slane %v1920, %v1927
        %v1929 = vrot.slane %v1916, 4
        %v1930 = vsel %vm1839, %v1929, %v1910
        %v1931 = vrot.slane %v1910, 4
        %v1932 = vsel %vm1839, %v1916, %v1931
        %v1934 = vunpack.c.l.s4 1934713408
        %v1935 = vunpack.c.0.s8 %v1934
        %v1936 = vperm.slane %v1930, %v1935
        %v1938 = vunpack.c.l.s4 1934713408
        %v1939 = vunpack.c.0.s8 %v1938
        %v1940 = vperm.slane %v1932, %v1939
        %v1941 = vrot.slane %v1936, 4
        %v1942 = vsel %vm1839, %v1941, %v1924
        %v1943 = vrot.slane %v1924, 4
        %v1944 = vsel %vm1839, %v1936, %v1943
        %v1945 = vrot.slane %v1940, 4
        %v1946 = vsel %vm1839, %v1945, %v1928
        %v1947 = vrot.slane %v1928, 4
        %v1948 = vsel %vm1839, %v1940, %v1947
        %v1949 = vpack.c.bf16 %v1942, %v1942
        %v1950 = vpack.c.bf16 %v1944, %v1944
        %v1951 = vpack.c.bf16 %v1946, %v1946
        %v1952 = vpack.c.bf16 %v1948, %v1948
        %1954 = vrot.lane.b32.xlu0 %v1792, 120
        %v1955 = vpop.permute.xlu0 %1954
        %1957 = vrot.lane.b32.xlu0 %v1792, 112
        %v1958 = vpop.permute.xlu0 %1957
        %1960 = vrot.lane.b32.xlu0 %v1792, 104
        %v1961 = vpop.permute.xlu0 %1960
        %v1963 = vrot.slane %v1958, 4
        %v1964 = vsel %vm1839, %v1963, %v1792
        %v1965 = vrot.slane %v1792, 4
        %v1966 = vsel %vm1839, %v1958, %v1965
        %v1968 = vunpack.c.l.s4 1983009808
        %v1969 = vunpack.c.0.s8 %v1968
        %v1970 = vperm.slane %v1964, %v1969
        %v1972 = vunpack.c.l.s4 1983009808
        %v1973 = vunpack.c.0.s8 %v1972
        %v1974 = vperm.slane %v1966, %v1973
        %v1975 = vrot.slane %v1961, 4
        %v1976 = vsel %vm1839, %v1975, %v1955
        %v1977 = vrot.slane %v1955, 4
        %v1978 = vsel %vm1839, %v1961, %v1977
        %v1980 = vunpack.c.l.s4 1983009808
        %v1981 = vunpack.c.0.s8 %v1980
        %v1982 = vperm.slane %v1976, %v1981
        %v1984 = vunpack.c.l.s4 1983009808
        %v1985 = vunpack.c.0.s8 %v1984
        %v1986 = vperm.slane %v1978, %v1985
        %v1987 = vrot.slane %v1982, 4
        %v1988 = vsel %vm1839, %v1987, %v1970
        %v1989 = vrot.slane %v1970, 4
        %v1990 = vsel %vm1839, %v1982, %v1989
        %v1992 = vunpack.c.l.s4 1934713408
        %v1993 = vunpack.c.0.s8 %v1992
        %v1994 = vperm.slane %v1988, %v1993
        %v1996 = vunpack.c.l.s4 1934713408
        %v1997 = vunpack.c.0.s8 %v1996
        %v1998 = vperm.slane %v1990, %v1997
        %v1999 = vrot.slane %v1986, 4
        %v2000 = vsel %vm1839, %v1999, %v1974
        %v2001 = vrot.slane %v1974, 4
        %v2002 = vsel %vm1839, %v1986, %v2001
        %v2004 = vunpack.c.l.s4 1934713408
        %v2005 = vunpack.c.0.s8 %v2004
        %v2006 = vperm.slane %v2000, %v2005
        %v2008 = vunpack.c.l.s4 1934713408
        %v2009 = vunpack.c.0.s8 %v2008
        %v2010 = vperm.slane %v2002, %v2009
        %v2011 = vrot.slane %v1994, 4
        %v2012 = vsel %vm1839, 0.0, %v2011
        %v2013 = vrot.slane %v1998, 4
        %v2014 = vsel %vm1839, 0.0, %v2013
        %v2015 = vrot.slane %v2006, 4
        %v2016 = vsel %vm1839, 0.0, %v2015
        %v2017 = vrot.slane %v2010, 4
        %v2018 = vsel %vm1839, 0.0, %v2017
        %v2019 = vsel %vm1839, %v2013, %v1994
        %v2021 = vunpack.c.l.s4 1983009808
        %v2022 = vunpack.c.0.s8 %v2021
        %v2023 = vperm.slane %v2019, %v2022
        %v2024 = vrot.slane %v2014, 4
        %v2025 = vsel %vm1839, %v2024, %v2012
        %v2027 = vunpack.c.l.s4 1983009808
        %v2028 = vunpack.c.0.s8 %v2027
        %v2029 = vperm.slane %v2025, %v2028
        %v2030 = vsel %vm1839, %v2017, %v2006
        %v2032 = vunpack.c.l.s4 1983009808
        %v2033 = vunpack.c.0.s8 %v2032
        %v2034 = vperm.slane %v2030, %v2033
        %v2035 = vrot.slane %v2018, 4
        %v2036 = vsel %vm1839, %v2035, %v2016
        %v2038 = vunpack.c.l.s4 1983009808
        %v2039 = vunpack.c.0.s8 %v2038
        %v2040 = vperm.slane %v2036, %v2039
        %v2041 = vrot.slane %v2029, 4
        %v2042 = vsel %vm1839, %v2041, %v2023
        %v2043 = vrot.slane %v2023, 4
        %v2044 = vsel %vm1839, %v2029, %v2043
        %v2046 = vunpack.c.l.s4 1934713408
        %v2047 = vunpack.c.0.s8 %v2046
        %v2048 = vperm.slane %v2042, %v2047
        %v2050 = vunpack.c.l.s4 1934713408
        %v2051 = vunpack.c.0.s8 %v2050
        %v2052 = vperm.slane %v2044, %v2051
        %v2053 = vrot.slane %v2040, 4
        %v2054 = vsel %vm1839, %v2053, %v2034
        %v2055 = vrot.slane %v2034, 4
        %v2056 = vsel %vm1839, %v2040, %v2055
        %v2058 = vunpack.c.l.s4 1934713408
        %v2059 = vunpack.c.0.s8 %v2058
        %v2060 = vperm.slane %v2054, %v2059
        %v2062 = vunpack.c.l.s4 1934713408
        %v2063 = vunpack.c.0.s8 %v2062
        %v2064 = vperm.slane %v2056, %v2063
        %v2065 = vrot.slane %v2060, 4
        %v2066 = vsel %vm1839, %v2065, %v2048
        %v2067 = vrot.slane %v2048, 4
        %v2068 = vsel %vm1839, %v2060, %v2067
        %v2069 = vrot.slane %v2064, 4
        %v2070 = vsel %vm1839, %v2069, %v2052
        %v2071 = vrot.slane %v2052, 4
        %v2072 = vsel %vm1839, %v2064, %v2071
        %v2073 = vpack.c.bf16 %v2066, %v2066
        %v2074 = vpack.c.bf16 %v2068, %v2068
        %v2075 = vpack.c.bf16 %v2070, %v2070
        %v2076 = vpack.c.bf16 %v2072, %v2072
        %2078 = vrot.lane.b32.xlu0 %v1825, 120
        %v2079 = vpop.permute.xlu0 %2078
        %2081 = vrot.lane.b32.xlu0 %v1825, 112
        %v2082 = vpop.permute.xlu0 %2081
        %2084 = vrot.lane.b32.xlu0 %v1825, 104
        %v2085 = vpop.permute.xlu0 %2084
        %v2087 = vrot.slane %v2082, 4
        %v2088 = vsel %vm1839, %v2087, %v1825
        %v2089 = vrot.slane %v1825, 4
        %v2090 = vsel %vm1839, %v2082, %v2089
        %v2092 = vunpack.c.l.s4 1983009808
        %v2093 = vunpack.c.0.s8 %v2092
        %v2094 = vperm.slane %v2088, %v2093
        %v2096 = vunpack.c.l.s4 1983009808
        %v2097 = vunpack.c.0.s8 %v2096
        %v2098 = vperm.slane %v2090, %v2097
        %v2099 = vrot.slane %v2085, 4
        %v2100 = vsel %vm1839, %v2099, %v2079
        %v2101 = vrot.slane %v2079, 4
        %v2102 = vsel %vm1839, %v2085, %v2101
        %v2104 = vunpack.c.l.s4 1983009808
        %v2105 = vunpack.c.0.s8 %v2104
        %v2106 = vperm.slane %v2100, %v2105
        %v2108 = vunpack.c.l.s4 1983009808
        %v2109 = vunpack.c.0.s8 %v2108
        %v2110 = vperm.slane %v2102, %v2109
        %v2111 = vrot.slane %v2106, 4
        %v2112 = vsel %vm1839, %v2111, %v2094
        %v2113 = vrot.slane %v2094, 4
        %v2114 = vsel %vm1839, %v2106, %v2113
        %v2116 = vunpack.c.l.s4 1934713408
        %v2117 = vunpack.c.0.s8 %v2116
        %v2118 = vperm.slane %v2112, %v2117
        %v2120 = vunpack.c.l.s4 1934713408
        %v2121 = vunpack.c.0.s8 %v2120
        %v2122 = vperm.slane %v2114, %v2121
        %v2123 = vrot.slane %v2110, 4
        %v2124 = vsel %vm1839, %v2123, %v2098
        %v2125 = vrot.slane %v2098, 4
        %v2126 = vsel %vm1839, %v2110, %v2125
        %v2128 = vunpack.c.l.s4 1934713408
        %v2129 = vunpack.c.0.s8 %v2128
        %v2130 = vperm.slane %v2124, %v2129
        %v2132 = vunpack.c.l.s4 1934713408
        %v2133 = vunpack.c.0.s8 %v2132
        %v2134 = vperm.slane %v2126, %v2133
        %v2135 = vrot.slane %v2118, 4
        %v2136 = vsel %vm1839, 0.0, %v2135
        %v2137 = vrot.slane %v2122, 4
        %v2138 = vsel %vm1839, 0.0, %v2137
        %v2139 = vrot.slane %v2130, 4
        %v2140 = vsel %vm1839, 0.0, %v2139
        %v2141 = vrot.slane %v2134, 4
        %v2142 = vsel %vm1839, 0.0, %v2141
        %v2143 = vsel %vm1839, %v2137, %v2118
        %v2145 = vunpack.c.l.s4 1983009808
        %v2146 = vunpack.c.0.s8 %v2145
        %v2147 = vperm.slane %v2143, %v2146
        %v2148 = vrot.slane %v2138, 4
        %v2149 = vsel %vm1839, %v2148, %v2136
        %v2151 = vunpack.c.l.s4 1983009808
        %v2152 = vunpack.c.0.s8 %v2151
        %v2153 = vperm.slane %v2149, %v2152
        %v2154 = vsel %vm1839, %v2141, %v2130
        %v2156 = vunpack.c.l.s4 1983009808
        %v2157 = vunpack.c.0.s8 %v2156
        %v2158 = vperm.slane %v2154, %v2157
        %v2159 = vrot.slane %v2142, 4
        %v2160 = vsel %vm1839, %v2159, %v2140
        %v2162 = vunpack.c.l.s4 1983009808
        %v2163 = vunpack.c.0.s8 %v2162
        %v2164 = vperm.slane %v2160, %v2163
        %v2165 = vrot.slane %v2153, 4
        %v2166 = vsel %vm1839, %v2165, %v2147
        %v2167 = vrot.slane %v2147, 4
        %v2168 = vsel %vm1839, %v2153, %v2167
        %v2170 = vunpack.c.l.s4 1934713408
        %v2171 = vunpack.c.0.s8 %v2170
        %v2172 = vperm.slane %v2166, %v2171
        %v2174 = vunpack.c.l.s4 1934713408
        %v2175 = vunpack.c.0.s8 %v2174
        %v2176 = vperm.slane %v2168, %v2175
        %v2177 = vrot.slane %v2164, 4
        %v2178 = vsel %vm1839, %v2177, %v2158
        %v2179 = vrot.slane %v2158, 4
        %v2180 = vsel %vm1839, %v2164, %v2179
        %v2182 = vunpack.c.l.s4 1934713408
        %v2183 = vunpack.c.0.s8 %v2182
        %v2184 = vperm.slane %v2178, %v2183
        %v2186 = vunpack.c.l.s4 1934713408
        %v2187 = vunpack.c.0.s8 %v2186
        %v2188 = vperm.slane %v2180, %v2187
        %v2189 = vrot.slane %v2184, 4
        %v2190 = vsel %vm1839, %v2189, %v2172
        %v2191 = vrot.slane %v2172, 4
        %v2192 = vsel %vm1839, %v2184, %v2191
        %v2193 = vrot.slane %v2188, 4
        %v2194 = vsel %vm1839, %v2193, %v2176
        %v2195 = vrot.slane %v2176, 4
        %v2196 = vsel %vm1839, %v2188, %v2195
        %v2197 = vpack.c.bf16 %v2190, %v2190
        %v2198 = vpack.c.bf16 %v2192, %v2192
        %v2199 = vpack.c.bf16 %v2194, %v2194
        %v2200 = vpack.c.bf16 %v2196, %v2196
        %vm2201 = vcmask 64512
        %v2203 = vsel %vm2201, %v1949, 0
        %v2206 = vsel %vm2201, %v2073, 0
        %2208 = vmatpush.bf16.xpose.msra.mxu0 0
        %2209 = vmatpush.bf16.xpose.msra.mxu0 0
        %2210 = vmatpush.bf16.xpose.msra.mxu0 0
        %2211 = vmatpush.bf16.xpose.msra.mxu0 0
        %2212 = vmatpush.bf16.xpose.msra.mxu0 0
        %2213 = vmatpush.bf16.xpose.msra.mxu0 0
        %2214 = vmatpush.bf16.xpose.msra.mxu0 0
        %2215 = vmatpush.bf16.xpose.msra.mxu0 %v2206
        %2216 = vmatmul.bf16.gmra.mxu0 %v2203
        %v2217 = vpop.f32.mrf.mxu0
        %v2218 = vadd.f32 %v1688, %v2217
        %v2219 = vpop.f32.mrf.mxu0
        %2220 = vdwg.mxu0
        %v2222 = vsel %vm2201, %v1950, 0
        %v2225 = vsel %vm2201, %v2074, 0
        %2227 = vmatpush.bf16.xpose.msra.mxu0 0
        %2228 = vmatpush.bf16.xpose.msra.mxu0 0
        %2229 = vmatpush.bf16.xpose.msra.mxu0 0
        %2230 = vmatpush.bf16.xpose.msra.mxu0 0
        %2231 = vmatpush.bf16.xpose.msra.mxu0 0
        %2232 = vmatpush.bf16.xpose.msra.mxu0 0
        %2233 = vmatpush.bf16.xpose.msra.mxu0 0
        %2234 = vmatpush.bf16.xpose.msra.mxu0 %v2225
        %2235 = vmatmul.bf16.gmra.mxu0 %v2222
        %v2236 = vpop.f32.mrf.mxu0
        %v2237 = vadd.f32 %v1688, %v2236
        %v2238 = vpop.f32.mrf.mxu0
        %2239 = vdwg.mxu0
        %v2241 = vsel %vm2201, %v1951, 0
        %v2244 = vsel %vm2201, %v2075, 0
        %2246 = vmatpush.bf16.xpose.msra.mxu0 0
        %2247 = vmatpush.bf16.xpose.msra.mxu0 0
        %2248 = vmatpush.bf16.xpose.msra.mxu0 0
        %2249 = vmatpush.bf16.xpose.msra.mxu0 0
        %2250 = vmatpush.bf16.xpose.msra.mxu0 0
        %2251 = vmatpush.bf16.xpose.msra.mxu0 0
        %2252 = vmatpush.bf16.xpose.msra.mxu0 0
        %2253 = vmatpush.bf16.xpose.msra.mxu0 %v2244
        %2254 = vmatmul.bf16.gmra.mxu0 %v2241
        %v2255 = vpop.f32.mrf.mxu0
        %v2256 = vadd.f32 %v1688, %v2255
        %v2257 = vpop.f32.mrf.mxu0
        %2258 = vdwg.mxu0
        %v2260 = vsel %vm2201, %v1952, 0
        %v2263 = vsel %vm2201, %v2076, 0
        %2265 = vmatpush.bf16.xpose.msra.mxu0 0
        %2266 = vmatpush.bf16.xpose.msra.mxu0 0
        %2267 = vmatpush.bf16.xpose.msra.mxu0 0
        %2268 = vmatpush.bf16.xpose.msra.mxu0 0
        %2269 = vmatpush.bf16.xpose.msra.mxu0 0
        %2270 = vmatpush.bf16.xpose.msra.mxu0 0
        %2271 = vmatpush.bf16.xpose.msra.mxu0 0
        %2272 = vmatpush.bf16.xpose.msra.mxu0 %v2263
        %2273 = vmatmul.bf16.gmra.mxu0 %v2260
        %v2274 = vpop.f32.mrf.mxu0
        %v2275 = vadd.f32 %v1688, %v2274
        %v2276 = vpop.f32.mrf.mxu0
        %2277 = vdwg.mxu0
        %v2278 = vsel %vm2201, %v2218, -inf
        %2279 = vmax.xlane.f32.xlu0 %v2278
        %v2280 = vpop.xlane.xlu0 %2279
        %v2281 = vsel %vm2201, %v2237, -inf
        %2282 = vmax.xlane.f32.xlu0 %v2281
        %v2283 = vpop.xlane.xlu0 %2282
        %v2284 = vsel %vm2201, %v2256, -inf
        %2285 = vmax.xlane.f32.xlu0 %v2284
        %v2286 = vpop.xlane.xlu0 %2285
        %v2287 = vsel %vm2201, %v2275, -inf
        %2288 = vmax.xlane.f32.xlu0 %v2287
        %v2289 = vpop.xlane.xlu0 %2288
        %v2290 = vsub.f32 %v2218, %v2280
        %v2291 = vsub.f32 %v2237, %v2283
        %v2292 = vsub.f32 %v2256, %v2286
        %v2293 = vsub.f32 %v2275, %v2289
        %v2294 = vmul.f32 %v2290, 1.442695
        %v2295 = vpow.pop %v2294
        %v2296 = vmul.f32 %v2291, 1.442695
        %v2297 = vpow.pop %v2296
        %v2298 = vmul.f32 %v2292, 1.442695
        %v2299 = vpow.pop %v2298
        %v2300 = vmul.f32 %v2293, 1.442695
        %v2301 = vpow.pop %v2300
        %v2302 = vsel %vm2201, %v2295, 0.0
        %2303 = vadd.xlane.f32.xlu0 %v2302
        %v2304 = vpop.xlane.xlu0 %2303
        %v2305 = vsel %vm2201, %v2297, 0.0
        %2306 = vadd.xlane.f32.xlu0 %v2305
        %v2307 = vpop.xlane.xlu0 %2306
        %v2308 = vsel %vm2201, %v2299, 0.0
        %2309 = vadd.xlane.f32.xlu0 %v2308
        %v2310 = vpop.xlane.xlu0 %2309
        %v2311 = vsel %vm2201, %v2301, 0.0
        %2312 = vadd.xlane.f32.xlu0 %v2311
        %v2313 = vpop.xlane.xlu0 %2312
        %v2314 = vrcp.pop %v2304
        %v2315 = vrcp.pop %v2307
        %v2316 = vrcp.pop %v2310
        %v2317 = vrcp.pop %v2313
        %v2318 = vmul.f32 %v2295, %v2314
        %v2319 = vmul.f32 %v2297, %v2315
        %v2320 = vmul.f32 %v2299, %v2316
        %v2321 = vmul.f32 %v2301, %v2317
        %v2322 = vpack.c.bf16 %v2318, %v2318
        %v2323 = vpack.c.bf16 %v2319, %v2319
        %v2324 = vpack.c.bf16 %v2320, %v2320
        %v2325 = vpack.c.bf16 %v2321, %v2321
        %v2327 = vsel %vm2201, %v2322, 0
        %vm2329 = vcmask 1043456
        %v2331 = vsel %vm2329, %v2197, 0
        %2333 = vmatpush.bf16.msra.mxu0 0
        %2334 = vmatpush.bf16.msra.mxu0 0
        %2335 = vmatpush.bf16.msra.mxu0 0
        %2336 = vmatpush.bf16.msra.mxu0 0
        %2337 = vmatpush.bf16.msra.mxu0 0
        %2338 = vmatpush.bf16.msra.mxu0 0
        %2339 = vmatpush.bf16.msra.mxu0 0
        %2340 = vmatpush.bf16.msra.mxu0 %v2331
        %2341 = vmatmul.bf16.gmra.mxu0 %v2327
        %v2342 = vpop.f32.mrf.mxu0
        %v2343 = vadd.f32 0.0, %v2342
        %v2344 = vpop.f32.mrf.mxu0
        %2345 = vdwg.mxu0
        %v2347 = vsel %vm2201, %v2323, 0
        %v2350 = vsel %vm2329, %v2198, 0
        %2352 = vmatpush.bf16.msra.mxu0 0
        %2353 = vmatpush.bf16.msra.mxu0 0
        %2354 = vmatpush.bf16.msra.mxu0 0
        %2355 = vmatpush.bf16.msra.mxu0 0
        %2356 = vmatpush.bf16.msra.mxu0 0
        %2357 = vmatpush.bf16.msra.mxu0 0
        %2358 = vmatpush.bf16.msra.mxu0 0
        %2359 = vmatpush.bf16.msra.mxu0 %v2350
        %2360 = vmatmul.bf16.gmra.mxu0 %v2347
        %v2361 = vpop.f32.mrf.mxu0
        %v2362 = vadd.f32 0.0, %v2361
        %v2363 = vpop.f32.mrf.mxu0
        %2364 = vdwg.mxu0
        %v2366 = vsel %vm2201, %v2324, 0
        %v2369 = vsel %vm2329, %v2199, 0
        %2371 = vmatpush.bf16.msra.mxu0 0
        %2372 = vmatpush.bf16.msra.mxu0 0
        %2373 = vmatpush.bf16.msra.mxu0 0
        %2374 = vmatpush.bf16.msra.mxu0 0
        %2375 = vmatpush.bf16.msra.mxu0 0
        %2376 = vmatpush.bf16.msra.mxu0 0
        %2377 = vmatpush.bf16.msra.mxu0 0
        %2378 = vmatpush.bf16.msra.mxu0 %v2369
        %2379 = vmatmul.bf16.gmra.mxu0 %v2366
        %v2380 = vpop.f32.mrf.mxu0
        %v2381 = vadd.f32 0.0, %v2380
        %v2382 = vpop.f32.mrf.mxu0
        %2383 = vdwg.mxu0
        %v2385 = vsel %vm2201, %v2325, 0
        %v2388 = vsel %vm2329, %v2200, 0
        %2390 = vmatpush.bf16.msra.mxu0 0
        %2391 = vmatpush.bf16.msra.mxu0 0
        %2392 = vmatpush.bf16.msra.mxu0 0
        %2393 = vmatpush.bf16.msra.mxu0 0
        %2394 = vmatpush.bf16.msra.mxu0 0
        %2395 = vmatpush.bf16.msra.mxu0 0
        %2396 = vmatpush.bf16.msra.mxu0 0
        %2397 = vmatpush.bf16.msra.mxu0 %v2388
        %2398 = vmatmul.bf16.gmra.mxu0 %v2385
        %v2399 = vpop.f32.mrf.mxu0
        %v2400 = vadd.f32 0.0, %v2399
        %v2401 = vpop.f32.mrf.mxu0
        %2402 = vdwg.mxu0
        %v2403 = vrot.slane %v2381, 4
        %v2404 = vsel %vm1839, %v2403, %v2343
        %v2405 = vrot.slane %v2343, 4
        %v2406 = vsel %vm1839, %v2381, %v2405
        %v2408 = vunpack.c.l.s4 1983009808
        %v2409 = vunpack.c.0.s8 %v2408
        %v2410 = vperm.slane %v2404, %v2409
        %v2412 = vunpack.c.l.s4 1983009808
        %v2413 = vunpack.c.0.s8 %v2412
        %v2414 = vperm.slane %v2406, %v2413
        %v2415 = vrot.slane %v2400, 4
        %v2416 = vsel %vm1839, %v2415, %v2362
        %v2417 = vrot.slane %v2362, 4
        %v2418 = vsel %vm1839, %v2400, %v2417
        %v2420 = vunpack.c.l.s4 1983009808
        %v2421 = vunpack.c.0.s8 %v2420
        %v2422 = vperm.slane %v2416, %v2421
        %v2424 = vunpack.c.l.s4 1983009808
        %v2425 = vunpack.c.0.s8 %v2424
        %v2426 = vperm.slane %v2418, %v2425
        %v2427 = vrot.slane %v2422, 4
        %v2428 = vsel %vm1839, %v2427, %v2410
        %v2429 = vrot.slane %v2410, 4
        %v2430 = vsel %vm1839, %v2422, %v2429
        %v2432 = vunpack.c.l.s4 1934713408
        %v2433 = vunpack.c.0.s8 %v2432
        %v2434 = vperm.slane %v2428, %v2433
        %v2436 = vunpack.c.l.s4 1934713408
        %v2437 = vunpack.c.0.s8 %v2436
        %v2438 = vperm.slane %v2430, %v2437
        %v2439 = vrot.slane %v2426, 4
        %v2440 = vsel %vm1839, %v2439, %v2414
        %v2441 = vrot.slane %v2414, 4
        %v2442 = vsel %vm1839, %v2426, %v2441
        %v2444 = vunpack.c.l.s4 1934713408
        %v2445 = vunpack.c.0.s8 %v2444
        %v2446 = vperm.slane %v2440, %v2445
        %v2448 = vunpack.c.l.s4 1934713408
        %v2449 = vunpack.c.0.s8 %v2448
        %v2450 = vperm.slane %v2442, %v2449
        %v2451 = vrot.slane %v2434, 4
        %v2452 = vsel %vm1839, 0.0, %v2451
        %v2453 = vrot.slane %v2438, 4
        %v2454 = vsel %vm1839, 0.0, %v2453
        %v2455 = vrot.slane %v2446, 4
        %v2456 = vsel %vm1839, 0.0, %v2455
        %v2457 = vrot.slane %v2450, 4
        %v2458 = vsel %vm1839, 0.0, %v2457
        %v2459 = vsel %vm1839, %v2453, %v2434
        %v2461 = vunpack.c.l.s4 1983009808
        %v2462 = vunpack.c.0.s8 %v2461
        %v2463 = vperm.slane %v2459, %v2462
        %v2464 = vrot.slane %v2454, 4
        %v2465 = vsel %vm1839, %v2464, %v2452
        %v2467 = vunpack.c.l.s4 1983009808
        %v2468 = vunpack.c.0.s8 %v2467
        %v2469 = vperm.slane %v2465, %v2468
        %v2470 = vsel %vm1839, %v2457, %v2446
        %v2472 = vunpack.c.l.s4 1983009808
        %v2473 = vunpack.c.0.s8 %v2472
        %v2474 = vperm.slane %v2470, %v2473
        %v2475 = vrot.slane %v2458, 4
        %v2476 = vsel %vm1839, %v2475, %v2456
        %v2478 = vunpack.c.l.s4 1983009808
        %v2479 = vunpack.c.0.s8 %v2478
        %v2480 = vperm.slane %v2476, %v2479
        %v2481 = vrot.slane %v2469, 4
        %v2482 = vsel %vm1839, %v2481, %v2463
        %v2483 = vrot.slane %v2463, 4
        %v2484 = vsel %vm1839, %v2469, %v2483
        %v2486 = vunpack.c.l.s4 1934713408
        %v2487 = vunpack.c.0.s8 %v2486
        %v2488 = vperm.slane %v2482, %v2487
        %v2490 = vunpack.c.l.s4 1934713408
        %v2491 = vunpack.c.0.s8 %v2490
        %v2492 = vperm.slane %v2484, %v2491
        %v2493 = vrot.slane %v2480, 4
        %v2494 = vsel %vm1839, %v2493, %v2474
        %v2495 = vrot.slane %v2474, 4
        %v2496 = vsel %vm1839, %v2480, %v2495
        %v2498 = vunpack.c.l.s4 1934713408
        %v2499 = vunpack.c.0.s8 %v2498
        %v2500 = vperm.slane %v2494, %v2499
        %v2502 = vunpack.c.l.s4 1934713408
        %v2503 = vunpack.c.0.s8 %v2502
        %v2504 = vperm.slane %v2496, %v2503
        %v2505 = vrot.slane %v2500, 4
        %v2506 = vsel %vm1839, %v2505, %v2488
        %v2507 = vrot.slane %v2488, 4
        %v2508 = vsel %vm1839, %v2500, %v2507
        %v2509 = vrot.slane %v2504, 4
        %v2510 = vsel %vm1839, %v2509, %v2492
        %v2511 = vrot.slane %v2492, 4
        %v2512 = vsel %vm1839, %v2504, %v2511
        %2514 = vrot.lane.b32.xlu0 %v2508, 8
        %v2515 = vpop.permute.xlu0 %2514
        %2518 = vrot.lane.b32.xlu0 %v2510, 16
        %v2519 = vpop.permute.xlu0 %2518
        %2522 = vrot.lane.b32.xlu0 %v2512, 24
        %v2523 = vpop.permute.xlu0 %2522
        %v2525 = vsel %vm2201, %v2506, %v2515
        %vm2526 = vcmask 130048
        %v2527 = vsel %vm2526, %v2525, %v2519
        %vm2528 = vcmask 195584
        %v2529 = vsel %vm2528, %v2527, %v2523
        %v2530 = vpack.c.bf16 %v2529, %v2529
        %v2531 = vld [vmem:[%s1314] sm:$0xf]
        %v2532 = vld [vmem:[%s1314 + $0x4] sm:$0xf]
        %v2533 = vld [vmem:[%s1314 + $0x8] sm:$0xf]
        %v2534 = vld [vmem:[%s1314 + $0xc] sm:$0xf]
        %v2535 = vld [vmem:[%s1323] sm:$0x1]
        %v2537 = vperm.slane %v2535, 0
        %v2543 = vunpack.c.l.b16 %v2531
        %v2544 = vunpack.c.l.b16 %v2532
        %v2545 = vunpack.c.l.b16 %v2533
        %v2546 = vunpack.c.l.b16 %v2534
        %v2547 = vpack.c.b16 %v2544, %v2543
        %v2548 = vpack.c.b16 %v2546, %v2545
        %v2552 = vsel %vm1691, %v2530, 0
        %2554 = vmatpush.bf16.msra.mxu0 0
        %2555 = vmatpush.bf16.msra.mxu0 0
        %2556 = vmatpush.bf16.msra.mxu0 0
        %2557 = vmatpush.bf16.msra.mxu0 0
        %2558 = vmatpush.bf16.msra.mxu0 0
        %2559 = vmatpush.bf16.msra.mxu0 0
        %2560 = vmatpush.bf16.msra.mxu0 %v2548
        %2561 = vmatpush.bf16.msra.mxu0 %v2547
        %2562 = vmatmul.bf16.gmra.mxu0 %v2552
        %v2563 = vpop.f32.mrf.mxu0
        %v2564 = vadd.f32 %v2537, %v2563
        %v2565 = vpop.f32.mrf.mxu0
        %2566 = vdwg.mxu0
        %v2567 = vadd.f32 %v2564, %v1675
        %v2568 = vld [vmem:[%s1333] sm:$0x3]
        %v2569 = vsel %vm1691, %v2567, 0.0
        %2570 = vadd.xlane.f32.xlu0 %v2569
        %v2571 = vpop.xlane.xlu0 %2570
        %v2572 = vmul.f32 %v2571, %v1701
        %v2573 = vsub.f32 %v2567, %v2572
        %v2574 = vmul.f32 %v2573, %v2573
        %v2575 = vsel %vm1691, %v2574, 0.0
        %2576 = vadd.xlane.f32.xlu0 %v2575
        %v2577 = vpop.xlane.xlu0 %2576
        %v2578 = vmul.f32 %v2577, %v1701
        %v2579 = vadd.f32 %v2578, 1e-06
        %v2580 = vrsqrt.pop %v2579
        %v2581 = vmul.f32 %v2580, %v2579
        %v2582 = vmul.f32 %v2581, %v2580
        %v2583 = vmul.f32 0.5, %v2582
        %v2584 = vsub.f32 1.5, %v2583
        %v2585 = vmul.f32 %v2580, %v2584
        %vm2586 = vweird.f32 %v2579
        %vm2587 = vweird.f32 %v2580
        %vm2588 = vmor %vm2586, %vm2587
        %v2589 = vsel %vm2588, %v2580, %v2585
        %v2590 = vmul.f32 %v2573, %v2589
        %v2591 = vperm.slane %v2568, 0
        %v2592 = vmul.f32 %v2590, %v2591
        %v2593 = vperm.slane %v2568, 1
        %v2594 = vadd.f32 %v2592, %v2593
        %v2595 = vpack.c.bf16 %v2594, %v2594
        %v2596 = vld [vmem:[%s1343] sm:$0xf]
        %v2597 = vld [vmem:[%s1343 + $0x4] sm:$0xf]
        %v2598 = vld [vmem:[%s1343 + $0x8] sm:$0xf]
        %v2599 = vld [vmem:[%s1343 + $0xc] sm:$0xf]
        %v2600 = vld [vmem:[%s1352] sm:$0x1]
        %v2602 = vperm.slane %v2600, 0
        %v2608 = vunpack.c.l.b16 %v2596
        %v2609 = vunpack.c.l.b16 %v2597
        %v2610 = vunpack.c.l.b16 %v2598
        %v2611 = vunpack.c.l.b16 %v2599
        %v2612 = vpack.c.b16 %v2609, %v2608
        %v2613 = vpack.c.b16 %v2611, %v2610
        %v2617 = vsel %vm1691, %v2595, 0
        %2619 = vmatpush.bf16.msra.mxu0 0
        %2620 = vmatpush.bf16.msra.mxu0 0
        %2621 = vmatpush.bf16.msra.mxu0 0
        %2622 = vmatpush.bf16.msra.mxu0 0
        %2623 = vmatpush.bf16.msra.mxu0 0
        %2624 = vmatpush.bf16.msra.mxu0 0
        %2625 = vmatpush.bf16.msra.mxu0 %v2613
        %2626 = vmatpush.bf16.msra.mxu0 %v2612
        %2627 = vmatmul.bf16.gmra.mxu0 %v2617
        %v2628 = vpop.f32.mrf.mxu0
        %v2629 = vadd.f32 %v2602, %v2628
        %v2630 = vpop.f32.mrf.mxu0
        %2631 = vdwg.mxu0
        %v2632 = vld [vmem:[%s1362] sm:$0xf]
        %v2633 = vld [vmem:[%s1362 + $0x4] sm:$0xf]
        %v2634 = vld [vmem:[%s1362 + $0x8] sm:$0xf]
        %v2635 = vld [vmem:[%s1362 + $0xc] sm:$0xf]
        %v2636 = vld [vmem:[%s1371] sm:$0x1]
        %v2638 = vperm.slane %v2636, 0
        %v2642 = vunpack.c.l.b16 %v1676
        %v2643 = vunpack.c.l.b16 %v1677
        %v2644 = vpack.c.b16 %v2643, %v2642
        %v2649 = vunpack.c.l.b16 %v2632
        %v2650 = vunpack.c.l.b16 %v2633
        %v2651 = vunpack.c.l.b16 %v2634
        %v2652 = vunpack.c.l.b16 %v2635
        %v2653 = vpack.c.b16 %v2650, %v2649
        %v2654 = vpack.c.b16 %v2652, %v2651
        %v2658 = vsel %vm1691, %v2644, 0
        %2660 = vmatpush.bf16.msra.mxu0 0
        %2661 = vmatpush.bf16.msra.mxu0 0
        %2662 = vmatpush.bf16.msra.mxu0 0
        %2663 = vmatpush.bf16.msra.mxu0 0
        %2664 = vmatpush.bf16.msra.mxu0 0
        %2665 = vmatpush.bf16.msra.mxu0 0
        %2666 = vmatpush.bf16.msra.mxu0 %v2654
        %2667 = vmatpush.bf16.msra.mxu0 %v2653
        %2668 = vmatmul.bf16.gmra.mxu0 %v2658
        %v2669 = vpop.f32.mrf.mxu0
        %v2670 = vadd.f32 %v2638, %v2669
        %v2671 = vpop.f32.mrf.mxu0
        %v2672 = vadd.f32 %v2638, %v2671
        %2673 = vdwg.mxu0
        %v2674 = vld [vmem:[%s1381] sm:$0xf]
        %v2675 = vld [vmem:[%s1381 + $0x4] sm:$0xf]
        %v2676 = vld [vmem:[%s1381 + $0x8] sm:$0xf]
        %v2677 = vld [vmem:[%s1381 + $0xc] sm:$0xf]
        %v2678 = vld [vmem:[%s1390] sm:$0x1]
        %v2680 = vperm.slane %v2678, 0
        %v2686 = vunpack.c.l.b16 %v2674
        %v2687 = vunpack.c.l.b16 %v2675
        %v2688 = vunpack.c.l.b16 %v2676
        %v2689 = vunpack.c.l.b16 %v2677
        %v2690 = vpack.c.b16 %v2687, %v2686
        %v2691 = vpack.c.b16 %v2689, %v2688
        %2694 = vmatpush.bf16.msra.mxu0 0
        %2695 = vmatpush.bf16.msra.mxu0 0
        %2696 = vmatpush.bf16.msra.mxu0 0
        %2697 = vmatpush.bf16.msra.mxu0 0
        %2698 = vmatpush.bf16.msra.mxu0 0
        %2699 = vmatpush.bf16.msra.mxu0 0
        %2700 = vmatpush.bf16.msra.mxu0 %v2691
        %2701 = vmatpush.bf16.msra.mxu0 %v2690
        %2702 = vmatmul.bf16.gmra.mxu0 %v2658
        %v2703 = vpop.f32.mrf.mxu0
        %v2704 = vadd.f32 %v2680, %v2703
        %v2705 = vpop.f32.mrf.mxu0
        %v2706 = vadd.f32 %v2680, %v2705
        %2707 = vdwg.mxu0
        %2709 = vrot.lane.b32.xlu0 %v2629, 120
        %v2710 = vpop.permute.xlu0 %2709
        %2712 = vrot.lane.b32.xlu0 %v2629, 112
        %v2713 = vpop.permute.xlu0 %2712
        %2715 = vrot.lane.b32.xlu0 %v2629, 104
        %v2716 = vpop.permute.xlu0 %2715
        %v2718 = vrot.slane %v2713, 4
        %v2719 = vsel %vm1839, %v2718, %v2629
        %v2720 = vrot.slane %v2629, 4
        %v2721 = vsel %vm1839, %v2713, %v2720
        %v2723 = vunpack.c.l.s4 1983009808
        %v2724 = vunpack.c.0.s8 %v2723
        %v2725 = vperm.slane %v2719, %v2724
        %v2727 = vunpack.c.l.s4 1983009808
        %v2728 = vunpack.c.0.s8 %v2727
        %v2729 = vperm.slane %v2721, %v2728
        %v2730 = vrot.slane %v2716, 4
        %v2731 = vsel %vm1839, %v2730, %v2710
        %v2732 = vrot.slane %v2710, 4
        %v2733 = vsel %vm1839, %v2716, %v2732
        %v2735 = vunpack.c.l.s4 1983009808
        %v2736 = vunpack.c.0.s8 %v2735
        %v2737 = vperm.slane %v2731, %v2736
        %v2739 = vunpack.c.l.s4 1983009808
        %v2740 = vunpack.c.0.s8 %v2739
        %v2741 = vperm.slane %v2733, %v2740
        %v2742 = vrot.slane %v2737, 4
        %v2743 = vsel %vm1839, %v2742, %v2725
        %v2744 = vrot.slane %v2725, 4
        %v2745 = vsel %vm1839, %v2737, %v2744
        %v2747 = vunpack.c.l.s4 1934713408
        %v2748 = vunpack.c.0.s8 %v2747
        %v2749 = vperm.slane %v2743, %v2748
        %v2751 = vunpack.c.l.s4 1934713408
        %v2752 = vunpack.c.0.s8 %v2751
        %v2753 = vperm.slane %v2745, %v2752
        %v2754 = vrot.slane %v2741, 4
        %v2755 = vsel %vm1839, %v2754, %v2729
        %v2756 = vrot.slane %v2729, 4
        %v2757 = vsel %vm1839, %v2741, %v2756
        %v2759 = vunpack.c.l.s4 1934713408
        %v2760 = vunpack.c.0.s8 %v2759
        %v2761 = vperm.slane %v2755, %v2760
        %v2763 = vunpack.c.l.s4 1934713408
        %v2764 = vunpack.c.0.s8 %v2763
        %v2765 = vperm.slane %v2757, %v2764
        %v2766 = vrot.slane %v2749, 4
        %v2767 = vsel %vm1839, 0.0, %v2766
        %v2768 = vrot.slane %v2753, 4
        %v2769 = vsel %vm1839, 0.0, %v2768
        %v2770 = vrot.slane %v2761, 4
        %v2771 = vsel %vm1839, 0.0, %v2770
        %v2772 = vrot.slane %v2765, 4
        %v2773 = vsel %vm1839, 0.0, %v2772
        %v2774 = vsel %vm1839, %v2768, %v2749
        %v2776 = vunpack.c.l.s4 1983009808
        %v2777 = vunpack.c.0.s8 %v2776
        %v2778 = vperm.slane %v2774, %v2777
        %v2779 = vrot.slane %v2769, 4
        %v2780 = vsel %vm1839, %v2779, %v2767
        %v2782 = vunpack.c.l.s4 1983009808
        %v2783 = vunpack.c.0.s8 %v2782
        %v2784 = vperm.slane %v2780, %v2783
        %v2785 = vsel %vm1839, %v2772, %v2761
        %v2787 = vunpack.c.l.s4 1983009808
        %v2788 = vunpack.c.0.s8 %v2787
        %v2789 = vperm.slane %v2785, %v2788
        %v2790 = vrot.slane %v2773, 4
        %v2791 = vsel %vm1839, %v2790, %v2771
        %v2793 = vunpack.c.l.s4 1983009808
        %v2794 = vunpack.c.0.s8 %v2793
        %v2795 = vperm.slane %v2791, %v2794
        %v2796 = vrot.slane %v2784, 4
        %v2797 = vsel %vm1839, %v2796, %v2778
        %v2798 = vrot.slane %v2778, 4
        %v2799 = vsel %vm1839, %v2784, %v2798
        %v2801 = vunpack.c.l.s4 1934713408
        %v2802 = vunpack.c.0.s8 %v2801
        %v2803 = vperm.slane %v2797, %v2802
        %v2805 = vunpack.c.l.s4 1934713408
        %v2806 = vunpack.c.0.s8 %v2805
        %v2807 = vperm.slane %v2799, %v2806
        %v2808 = vrot.slane %v2795, 4
        %v2809 = vsel %vm1839, %v2808, %v2789
        %v2810 = vrot.slane %v2789, 4
        %v2811 = vsel %vm1839, %v2795, %v2810
        %v2813 = vunpack.c.l.s4 1934713408
        %v2814 = vunpack.c.0.s8 %v2813
        %v2815 = vperm.slane %v2809, %v2814
        %v2817 = vunpack.c.l.s4 1934713408
        %v2818 = vunpack.c.0.s8 %v2817
        %v2819 = vperm.slane %v2811, %v2818
        %v2820 = vrot.slane %v2815, 4
        %v2821 = vsel %vm1839, %v2820, %v2803
        %v2822 = vrot.slane %v2803, 4
        %v2823 = vsel %vm1839, %v2815, %v2822
        %v2824 = vrot.slane %v2819, 4
        %v2825 = vsel %vm1839, %v2824, %v2807
        %v2826 = vrot.slane %v2807, 4
        %v2827 = vsel %vm1839, %v2819, %v2826
        %v2828 = vpack.c.bf16 %v2821, %v2821
        %v2829 = vpack.c.bf16 %v2823, %v2823
        %v2830 = vpack.c.bf16 %v2825, %v2825
        %v2831 = vpack.c.bf16 %v2827, %v2827
        %2834 = vrot.lane.b32.xlu0 %v2670, 120
        %v2835 = vpop.permute.xlu0 %2834
        %2836 = vrot.lane.b32.xlu0 %v2672, 120
        %v2837 = vpop.permute.xlu0 %2836
        %2840 = vrot.lane.b32.xlu0 %v2670, 112
        %v2841 = vpop.permute.xlu0 %2840
        %2842 = vrot.lane.b32.xlu0 %v2672, 112
        %v2843 = vpop.permute.xlu0 %2842
        %2846 = vrot.lane.b32.xlu0 %v2670, 104
        %v2847 = vpop.permute.xlu0 %2846
        %2848 = vrot.lane.b32.xlu0 %v2672, 104
        %v2849 = vpop.permute.xlu0 %2848
        %v2852 = vrot.slane %v2841, 4
        %v2853 = vsel %vm1839, %v2852, %v2670
        %v2854 = vrot.slane %v2670, 4
        %v2855 = vsel %vm1839, %v2841, %v2854
        %v2857 = vunpack.c.l.s4 1983009808
        %v2858 = vunpack.c.0.s8 %v2857
        %v2859 = vperm.slane %v2853, %v2858
        %v2861 = vunpack.c.l.s4 1983009808
        %v2862 = vunpack.c.0.s8 %v2861
        %v2863 = vperm.slane %v2855, %v2862
        %v2864 = vrot.slane %v2847, 4
        %v2865 = vsel %vm1839, %v2864, %v2835
        %v2866 = vrot.slane %v2835, 4
        %v2867 = vsel %vm1839, %v2847, %v2866
        %v2869 = vunpack.c.l.s4 1983009808
        %v2870 = vunpack.c.0.s8 %v2869
        %v2871 = vperm.slane %v2865, %v2870
        %v2873 = vunpack.c.l.s4 1983009808
        %v2874 = vunpack.c.0.s8 %v2873
        %v2875 = vperm.slane %v2867, %v2874
        %v2876 = vrot.slane %v2871, 4
        %v2877 = vsel %vm1839, %v2876, %v2859
        %v2878 = vrot.slane %v2859, 4
        %v2879 = vsel %vm1839, %v2871, %v2878
        %v2881 = vunpack.c.l.s4 1934713408
        %v2882 = vunpack.c.0.s8 %v2881
        %v2883 = vperm.slane %v2877, %v2882
        %v2885 = vunpack.c.l.s4 1934713408
        %v2886 = vunpack.c.0.s8 %v2885
        %v2887 = vperm.slane %v2879, %v2886
        %v2888 = vrot.slane %v2875, 4
        %v2889 = vsel %vm1839, %v2888, %v2863
        %v2890 = vrot.slane %v2863, 4
        %v2891 = vsel %vm1839, %v2875, %v2890
        %v2893 = vunpack.c.l.s4 1934713408
        %v2894 = vunpack.c.0.s8 %v2893
        %v2895 = vperm.slane %v2889, %v2894
        %v2897 = vunpack.c.l.s4 1934713408
        %v2898 = vunpack.c.0.s8 %v2897
        %v2899 = vperm.slane %v2891, %v2898
        %v2900 = vrot.slane %v2883, 4
        %v2901 = vsel %vm1839, 0.0, %v2900
        %v2902 = vrot.slane %v2887, 4
        %v2903 = vsel %vm1839, 0.0, %v2902
        %v2904 = vrot.slane %v2895, 4
        %v2905 = vsel %vm1839, 0.0, %v2904
        %v2906 = vrot.slane %v2899, 4
        %v2907 = vsel %vm1839, 0.0, %v2906
        %v2908 = vrot.slane %v2843, 4
        %v2909 = vsel %vm1839, %v2908, %v2672
        %v2911 = vunpack.c.l.s4 1983009808
        %v2912 = vunpack.c.0.s8 %v2911
        %v2913 = vperm.slane %v2909, %v2912
        %v2914 = vrot.slane %v2849, 4
        %v2915 = vsel %vm1839, %v2914, %v2837
        %v2917 = vunpack.c.l.s4 1983009808
        %v2918 = vunpack.c.0.s8 %v2917
        %v2919 = vperm.slane %v2915, %v2918
        %v2920 = vrot.slane %v2919, 4
        %v2921 = vsel %vm1839, %v2920, %v2913
        %v2923 = vunpack.c.l.s4 1934713408
        %v2924 = vunpack.c.0.s8 %v2923
        %v2925 = vperm.slane %v2921, %v2924
        %v2926 = vsel %vm1839, %v2902, %v2883
        %v2928 = vunpack.c.l.s4 1983009808
        %v2929 = vunpack.c.0.s8 %v2928
        %v2930 = vperm.slane %v2926, %v2929
        %v2931 = vrot.slane %v2903, 4
        %v2932 = vsel %vm1839, %v2931, %v2901
        %v2934 = vunpack.c.l.s4 1983009808
        %v2935 = vunpack.c.0.s8 %v2934
        %v2936 = vperm.slane %v2932, %v2935
        %v2937 = vsel %vm1839, %v2906, %v2895
        %v2939 = vunpack.c.l.s4 1983009808
        %v2940 = vunpack.c.0.s8 %v2939
        %v2941 = vperm.slane %v2937, %v2940
        %v2942 = vrot.slane %v2907, 4
        %v2943 = vsel %vm1839, %v2942, %v2905
        %v2945 = vunpack.c.l.s4 1983009808
        %v2946 = vunpack.c.0.s8 %v2945
        %v2947 = vperm.slane %v2943, %v2946
        %v2948 = vrot.slane %v2936, 4
        %v2949 = vsel %vm1839, %v2948, %v2930
        %v2950 = vrot.slane %v2930, 4
        %v2951 = vsel %vm1839, %v2936, %v2950
        %v2953 = vunpack.c.l.s4 1934713408
        %v2954 = vunpack.c.0.s8 %v2953
        %v2955 = vperm.slane %v2949, %v2954
        %v2957 = vunpack.c.l.s4 1934713408
        %v2958 = vunpack.c.0.s8 %v2957
        %v2959 = vperm.slane %v2951, %v2958
        %v2960 = vrot.slane %v2947, 4
        %v2961 = vsel %vm1839, %v2960, %v2941
        %v2962 = vrot.slane %v2941, 4
        %v2963 = vsel %vm1839, %v2947, %v2962
        %v2965 = vunpack.c.l.s4 1934713408
        %v2966 = vunpack.c.0.s8 %v2965
        %v2967 = vperm.slane %v2961, %v2966
        %v2969 = vunpack.c.l.s4 1934713408
        %v2970 = vunpack.c.0.s8 %v2969
        %v2971 = vperm.slane %v2963, %v2970
        %v2972 = vrot.slane %v2967, 4
        %v2973 = vsel %vm1839, %v2972, %v2955
        %v2974 = vrot.slane %v2955, 4
        %v2975 = vsel %vm1839, %v2967, %v2974
        %v2976 = vrot.slane %v2971, 4
        %v2977 = vsel %vm1839, %v2976, %v2959
        %v2978 = vrot.slane %v2959, 4
        %v2979 = vsel %vm1839, %v2971, %v2978
        %v2981 = vunpack.c.l.s4 1983009808
        %v2982 = vunpack.c.0.s8 %v2981
        %v2983 = vperm.slane %v2925, %v2982
        %v2984 = vrot.slane %v2925, 4
        %v2985 = vsel %vm1839, 0.0, %v2984
        %v2987 = vunpack.c.l.s4 1983009808
        %v2988 = vunpack.c.0.s8 %v2987
        %v2989 = vperm.slane %v2985, %v2988
        %v2990 = vrot.slane %v2989, 4
        %v2991 = vsel %vm1839, %v2990, %v2983
        %v2992 = vrot.slane %v2983, 4
        %v2993 = vsel %vm1839, %v2989, %v2992
        %v2995 = vunpack.c.l.s4 1934713408
        %v2996 = vunpack.c.0.s8 %v2995
        %v2997 = vperm.slane %v2991, %v2996
        %v2999 = vunpack.c.l.s4 1934713408
        %v3000 = vunpack.c.0.s8 %v2999
        %v3001 = vperm.slane %v2993, %v3000
        %v3002 = vrot.slane %v2997, 4
        %v3003 = vsel %vm1839, 0.0, %v3002
        %v3004 = vrot.slane %v3001, 4
        %v3005 = vsel %vm1839, 0.0, %v3004
        %v3006 = vpack.c.bf16 %v2973, %v2973
        %v3007 = vpack.c.bf16 %v2997, %v2997
        %v3008 = vpack.c.bf16 %v2975, %v2975
        %v3009 = vpack.c.bf16 %v3003, %v3003
        %v3010 = vpack.c.bf16 %v2977, %v2977
        %v3011 = vpack.c.bf16 %v3001, %v3001
        %v3012 = vpack.c.bf16 %v2979, %v2979
        %v3013 = vpack.c.bf16 %v3005, %v3005
        %3016 = vrot.lane.b32.xlu0 %v2704, 120
        %v3017 = vpop.permute.xlu0 %3016
        %3018 = vrot.lane.b32.xlu0 %v2706, 120
        %v3019 = vpop.permute.xlu0 %3018
        %3022 = vrot.lane.b32.xlu0 %v2704, 112
        %v3023 = vpop.permute.xlu0 %3022
        %3024 = vrot.lane.b32.xlu0 %v2706, 112
        %v3025 = vpop.permute.xlu0 %3024
        %3028 = vrot.lane.b32.xlu0 %v2704, 104
        %v3029 = vpop.permute.xlu0 %3028
        %3030 = vrot.lane.b32.xlu0 %v2706, 104
        %v3031 = vpop.permute.xlu0 %3030
        %v3034 = vrot.slane %v3023, 4
        %v3035 = vsel %vm1839, %v3034, %v2704
        %v3036 = vrot.slane %v2704, 4
        %v3037 = vsel %vm1839, %v3023, %v3036
        %v3039 = vunpack.c.l.s4 1983009808
        %v3040 = vunpack.c.0.s8 %v3039
        %v3041 = vperm.slane %v3035, %v3040
        %v3043 = vunpack.c.l.s4 1983009808
        %v3044 = vunpack.c.0.s8 %v3043
        %v3045 = vperm.slane %v3037, %v3044
        %v3046 = vrot.slane %v3029, 4
        %v3047 = vsel %vm1839, %v3046, %v3017
        %v3048 = vrot.slane %v3017, 4
        %v3049 = vsel %vm1839, %v3029, %v3048
        %v3051 = vunpack.c.l.s4 1983009808
        %v3052 = vunpack.c.0.s8 %v3051
        %v3053 = vperm.slane %v3047, %v3052
        %v3055 = vunpack.c.l.s4 1983009808
        %v3056 = vunpack.c.0.s8 %v3055
        %v3057 = vperm.slane %v3049, %v3056
        %v3058 = vrot.slane %v3053, 4
        %v3059 = vsel %vm1839, %v3058, %v3041
        %v3060 = vrot.slane %v3041, 4
        %v3061 = vsel %vm1839, %v3053, %v3060
        %v3063 = vunpack.c.l.s4 1934713408
        %v3064 = vunpack.c.0.s8 %v3063
        %v3065 = vperm.slane %v3059, %v3064
        %v3067 = vunpack.c.l.s4 1934713408
        %v3068 = vunpack.c.0.s8 %v3067
        %v3069 = vperm.slane %v3061, %v3068
        %v3070 = vrot.slane %v3057, 4
        %v3071 = vsel %vm1839, %v3070, %v3045
        %v3072 = vrot.slane %v3045, 4
        %v3073 = vsel %vm1839, %v3057, %v3072
        %v3075 = vunpack.c.l.s4 1934713408
        %v3076 = vunpack.c.0.s8 %v3075
        %v3077 = vperm.slane %v3071, %v3076
        %v3079 = vunpack.c.l.s4 1934713408
        %v3080 = vunpack.c.0.s8 %v3079
        %v3081 = vperm.slane %v3073, %v3080
        %v3082 = vrot.slane %v3065, 4
        %v3083 = vsel %vm1839, 0.0, %v3082
        %v3084 = vrot.slane %v3069, 4
        %v3085 = vsel %vm1839, 0.0, %v3084
        %v3086 = vrot.slane %v3077, 4
        %v3087 = vsel %vm1839, 0.0, %v3086
        %v3088 = vrot.slane %v3081, 4
        %v3089 = vsel %vm1839, 0.0, %v3088
        %v3090 = vrot.slane %v3025, 4
        %v3091 = vsel %vm1839, %v3090, %v2706
        %v3093 = vunpack.c.l.s4 1983009808
        %v3094 = vunpack.c.0.s8 %v3093
        %v3095 = vperm.slane %v3091, %v3094
        %v3096 = vrot.slane %v3031, 4
        %v3097 = vsel %vm1839, %v3096, %v3019
        %v3099 = vunpack.c.l.s4 1983009808
        %v3100 = vunpack.c.0.s8 %v3099
        %v3101 = vperm.slane %v3097, %v3100
        %v3102 = vrot.slane %v3101, 4
        %v3103 = vsel %vm1839, %v3102, %v3095
        %v3105 = vunpack.c.l.s4 1934713408
        %v3106 = vunpack.c.0.s8 %v3105
        %v3107 = vperm.slane %v3103, %v3106
        %v3108 = vsel %vm1839, %v3084, %v3065
        %v3110 = vunpack.c.l.s4 1983009808
        %v3111 = vunpack.c.0.s8 %v3110
        %v3112 = vperm.slane %v3108, %v3111
        %v3113 = vrot.slane %v3085, 4
        %v3114 = vsel %vm1839, %v3113, %v3083
        %v3116 = vunpack.c.l.s4 1983009808
        %v3117 = vunpack.c.0.s8 %v3116
        %v3118 = vperm.slane %v3114, %v3117
        %v3119 = vsel %vm1839, %v3088, %v3077
        %v3121 = vunpack.c.l.s4 1983009808
        %v3122 = vunpack.c.0.s8 %v3121
        %v3123 = vperm.slane %v3119, %v3122
        %v3124 = vrot.slane %v3089, 4
        %v3125 = vsel %vm1839, %v3124, %v3087
        %v3127 = vunpack.c.l.s4 1983009808
        %v3128 = vunpack.c.0.s8 %v3127
        %v3129 = vperm.slane %v3125, %v3128
        %v3130 = vrot.slane %v3118, 4
        %v3131 = vsel %vm1839, %v3130, %v3112
        %v3132 = vrot.slane %v3112, 4
        %v3133 = vsel %vm1839, %v3118, %v3132
        %v3135 = vunpack.c.l.s4 1934713408
        %v3136 = vunpack.c.0.s8 %v3135
        %v3137 = vperm.slane %v3131, %v3136
        %v3139 = vunpack.c.l.s4 1934713408
        %v3140 = vunpack.c.0.s8 %v3139
        %v3141 = vperm.slane %v3133, %v3140
        %v3142 = vrot.slane %v3129, 4
        %v3143 = vsel %vm1839, %v3142, %v3123
        %v3144 = vrot.slane %v3123, 4
        %v3145 = vsel %vm1839, %v3129, %v3144
        %v3147 = vunpack.c.l.s4 1934713408
        %v3148 = vunpack.c.0.s8 %v3147
        %v3149 = vperm.slane %v3143, %v3148
        %v3151 = vunpack.c.l.s4 1934713408
        %v3152 = vunpack.c.0.s8 %v3151
        %v3153 = vperm.slane %v3145, %v3152
        %v3154 = vrot.slane %v3149, 4
        %v3155 = vsel %vm1839, %v3154, %v3137
        %v3156 = vrot.slane %v3137, 4
        %v3157 = vsel %vm1839, %v3149, %v3156
        %v3158 = vrot.slane %v3153, 4
        %v3159 = vsel %vm1839, %v3158, %v3141
        %v3160 = vrot.slane %v3141, 4
        %v3161 = vsel %vm1839, %v3153, %v3160
        %v3163 = vunpack.c.l.s4 1983009808
        %v3164 = vunpack.c.0.s8 %v3163
        %v3165 = vperm.slane %v3107, %v3164
        %v3166 = vrot.slane %v3107, 4
        %v3167 = vsel %vm1839, 0.0, %v3166
        %v3169 = vunpack.c.l.s4 1983009808
        %v3170 = vunpack.c.0.s8 %v3169
        %v3171 = vperm.slane %v3167, %v3170
        %v3172 = vrot.slane %v3171, 4
        %v3173 = vsel %vm1839, %v3172, %v3165
        %v3174 = vrot.slane %v3165, 4
        %v3175 = vsel %vm1839, %v3171, %v3174
        %v3177 = vunpack.c.l.s4 1934713408
        %v3178 = vunpack.c.0.s8 %v3177
        %v3179 = vperm.slane %v3173, %v3178
        %v3181 = vunpack.c.l.s4 1934713408
        %v3182 = vunpack.c.0.s8 %v3181
        %v3183 = vperm.slane %v3175, %v3182
        %v3184 = vrot.slane %v3179, 4
        %v3185 = vsel %vm1839, 0.0, %v3184
        %v3186 = vrot.slane %v3183, 4
        %v3187 = vsel %vm1839, 0.0, %v3186
        %v3188 = vpack.c.bf16 %v3155, %v3155
        %v3189 = vpack.c.bf16 %v3179, %v3179
        %v3190 = vpack.c.bf16 %v3157, %v3157
        %v3191 = vpack.c.bf16 %v3185, %v3185
        %v3192 = vpack.c.bf16 %v3159, %v3159
        %v3193 = vpack.c.bf16 %v3183, %v3183
        %v3194 = vpack.c.bf16 %v3161, %v3161
        %v3195 = vpack.c.bf16 %v3187, %v3187
        %v3197 = vperm.slane %v1689, 0
        %v3201 = vunpack.c.l.b16 %v3006
        %v3202 = vunpack.c.l.b16 %v3007
        %v3203 = vpack.c.b16 %v3202, %v3201
        %v3205 = vsel %vm2201, %v2828, 0
        %v3208 = vsel %vm2201, %v3203, 0
        %3210 = vmatpush.bf16.xpose.msra.mxu0 0
        %3211 = vmatpush.bf16.xpose.msra.mxu0 0
        %3212 = vmatpush.bf16.xpose.msra.mxu0 0
        %3213 = vmatpush.bf16.xpose.msra.mxu0 0
        %3214 = vmatpush.bf16.xpose.msra.mxu0 0
        %3215 = vmatpush.bf16.xpose.msra.mxu0 0
        %3216 = vmatpush.bf16.xpose.msra.mxu0 0
        %3217 = vmatpush.bf16.xpose.msra.mxu0 %v3208
        %3218 = vmatmul.bf16.gmra.mxu0 %v3205
        %v3219 = vpop.f32.mrf.mxu0
        %v3220 = vadd.f32 %v3197, %v3219
        %v3221 = vpop.f32.mrf.mxu0
        %3222 = vdwg.mxu0
        %v3225 = vunpack.c.l.b16 %v3008
        %v3226 = vunpack.c.l.b16 %v3009
        %v3227 = vpack.c.b16 %v3226, %v3225
        %v3229 = vsel %vm2201, %v2829, 0
        %v3232 = vsel %vm2201, %v3227, 0
        %3234 = vmatpush.bf16.xpose.msra.mxu0 0
        %3235 = vmatpush.bf16.xpose.msra.mxu0 0
        %3236 = vmatpush.bf16.xpose.msra.mxu0 0
        %3237 = vmatpush.bf16.xpose.msra.mxu0 0
        %3238 = vmatpush.bf16.xpose.msra.mxu0 0
        %3239 = vmatpush.bf16.xpose.msra.mxu0 0
        %3240 = vmatpush.bf16.xpose.msra.mxu0 0
        %3241 = vmatpush.bf16.xpose.msra.mxu0 %v3232
        %3242 = vmatmul.bf16.gmra.mxu0 %v3229
        %v3243 = vpop.f32.mrf.mxu0
        %v3244 = vadd.f32 %v3197, %v3243
        %v3245 = vpop.f32.mrf.mxu0
        %3246 = vdwg.mxu0
        %v3249 = vunpack.c.l.b16 %v3010
        %v3250 = vunpack.c.l.b16 %v3011
        %v3251 = vpack.c.b16 %v3250, %v3249
        %v3253 = vsel %vm2201, %v2830, 0
        %v3256 = vsel %vm2201, %v3251, 0
        %3258 = vmatpush.bf16.xpose.msra.mxu0 0
        %3259 = vmatpush.bf16.xpose.msra.mxu0 0
        %3260 = vmatpush.bf16.xpose.msra.mxu0 0
        %3261 = vmatpush.bf16.xpose.msra.mxu0 0
        %3262 = vmatpush.bf16.xpose.msra.mxu0 0
        %3263 = vmatpush.bf16.xpose.msra.mxu0 0
        %3264 = vmatpush.bf16.xpose.msra.mxu0 0
        %3265 = vmatpush.bf16.xpose.msra.mxu0 %v3256
        %3266 = vmatmul.bf16.gmra.mxu0 %v3253
        %v3267 = vpop.f32.mrf.mxu0
        %v3268 = vadd.f32 %v3197, %v3267
        %v3269 = vpop.f32.mrf.mxu0
        %3270 = vdwg.mxu0
        %v3273 = vunpack.c.l.b16 %v3012
        %v3274 = vunpack.c.l.b16 %v3013
        %v3275 = vpack.c.b16 %v3274, %v3273
        %v3277 = vsel %vm2201, %v2831, 0
        %v3280 = vsel %vm2201, %v3275, 0
        %3282 = vmatpush.bf16.xpose.msra.mxu0 0
        %3283 = vmatpush.bf16.xpose.msra.mxu0 0
        %3284 = vmatpush.bf16.xpose.msra.mxu0 0
        %3285 = vmatpush.bf16.xpose.msra.mxu0 0
        %3286 = vmatpush.bf16.xpose.msra.mxu0 0
        %3287 = vmatpush.bf16.xpose.msra.mxu0 0
        %3288 = vmatpush.bf16.xpose.msra.mxu0 0
        %3289 = vmatpush.bf16.xpose.msra.mxu0 %v3280
        %3290 = vmatmul.bf16.gmra.mxu0 %v3277
        %v3291 = vpop.f32.mrf.mxu0
        %v3292 = vadd.f32 %v3197, %v3291
        %v3293 = vpop.f32.mrf.mxu0
        %3294 = vdwg.mxu0
        %vm3295 = vcmask 80896
        %v3296 = vsel %vm3295, %v3220, -inf
        %3297 = vmax.xlane.f32.xlu0 %v3296
        %v3298 = vpop.xlane.xlu0 %3297
        %v3299 = vsel %vm3295, %v3244, -inf
        %3300 = vmax.xlane.f32.xlu0 %v3299
        %v3301 = vpop.xlane.xlu0 %3300
        %v3302 = vsel %vm3295, %v3268, -inf
        %3303 = vmax.xlane.f32.xlu0 %v3302
        %v3304 = vpop.xlane.xlu0 %3303
        %v3305 = vsel %vm3295, %v3292, -inf
        %3306 = vmax.xlane.f32.xlu0 %v3305
        %v3307 = vpop.xlane.xlu0 %3306
        %v3308 = vsub.f32 %v3220, %v3298
        %v3309 = vsub.f32 %v3244, %v3301
        %v3310 = vsub.f32 %v3268, %v3304
        %v3311 = vsub.f32 %v3292, %v3307
        %v3312 = vmul.f32 %v3308, 1.442695
        %v3313 = vpow.pop %v3312
        %v3314 = vmul.f32 %v3309, 1.442695
        %v3315 = vpow.pop %v3314
        %v3316 = vmul.f32 %v3310, 1.442695
        %v3317 = vpow.pop %v3316
        %v3318 = vmul.f32 %v3311, 1.442695
        %v3319 = vpow.pop %v3318
        %v3320 = vsel %vm3295, %v3313, 0.0
        %3321 = vadd.xlane.f32.xlu0 %v3320
        %v3322 = vpop.xlane.xlu0 %3321
        %v3323 = vsel %vm3295, %v3315, 0.0
        %3324 = vadd.xlane.f32.xlu0 %v3323
        %v3325 = vpop.xlane.xlu0 %3324
        %v3326 = vsel %vm3295, %v3317, 0.0
        %3327 = vadd.xlane.f32.xlu0 %v3326
        %v3328 = vpop.xlane.xlu0 %3327
        %v3329 = vsel %vm3295, %v3319, 0.0
        %3330 = vadd.xlane.f32.xlu0 %v3329
        %v3331 = vpop.xlane.xlu0 %3330
        %v3332 = vrcp.pop %v3322
        %v3333 = vrcp.pop %v3325
        %v3334 = vrcp.pop %v3328
        %v3335 = vrcp.pop %v3331
        %v3336 = vmul.f32 %v3313, %v3332
        %v3337 = vmul.f32 %v3315, %v3333
        %v3338 = vmul.f32 %v3317, %v3334
        %v3339 = vmul.f32 %v3319, %v3335
        %v3340 = vpack.c.bf16 %v3336, %v3336
        %v3341 = vpack.c.bf16 %v3337, %v3337
        %v3342 = vpack.c.bf16 %v3338, %v3338
        %v3343 = vpack.c.bf16 %v3339, %v3339
        %v3346 = vunpack.c.l.b16 %v3188
        %v3347 = vunpack.c.l.b16 %v3189
        %v3348 = vpack.c.b16 %v3347, %v3346
        %v3350 = vsel %vm3295, %v3340, 0
        %vm3352 = vcmask 1044480
        %v3354 = vsel %vm3352, %v3348, 0
        %3356 = vmatpush.bf16.msra.mxu0 0
        %3357 = vmatpush.bf16.msra.mxu0 0
        %3358 = vmatpush.bf16.msra.mxu0 0
        %3359 = vmatpush.bf16.msra.mxu0 0
        %3360 = vmatpush.bf16.msra.mxu0 0
        %3361 = vmatpush.bf16.msra.mxu0 0
        %3362 = vmatpush.bf16.msra.mxu0 0
        %3363 = vmatpush.bf16.msra.mxu0 %v3354
        %3364 = vmatmul.bf16.gmra.mxu0 %v3350
        %v3365 = vpop.f32.mrf.mxu0
        %v3366 = vadd.f32 0.0, %v3365
        %v3367 = vpop.f32.mrf.mxu0
        %3368 = vdwg.mxu0
        %v3371 = vunpack.c.l.b16 %v3190
        %v3372 = vunpack.c.l.b16 %v3191
        %v3373 = vpack.c.b16 %v3372, %v3371
        %v3375 = vsel %vm3295, %v3341, 0
        %v3378 = vsel %vm3352, %v3373, 0
        %3380 = vmatpush.bf16.msra.mxu0 0
        %3381 = vmatpush.bf16.msra.mxu0 0
        %3382 = vmatpush.bf16.msra.mxu0 0
        %3383 = vmatpush.bf16.msra.mxu0 0
        %3384 = vmatpush.bf16.msra.mxu0 0
        %3385 = vmatpush.bf16.msra.mxu0 0
        %3386 = vmatpush.bf16.msra.mxu0 0
        %3387 = vmatpush.bf16.msra.mxu0 %v3378
        %3388 = vmatmul.bf16.gmra.mxu0 %v3375
        %v3389 = vpop.f32.mrf.mxu0
        %v3390 = vadd.f32 0.0, %v3389
        %v3391 = vpop.f32.mrf.mxu0
        %3392 = vdwg.mxu0
        %v3395 = vunpack.c.l.b16 %v3192
        %v3396 = vunpack.c.l.b16 %v3193
        %v3397 = vpack.c.b16 %v3396, %v3395
        %v3399 = vsel %vm3295, %v3342, 0
        %v3402 = vsel %vm3352, %v3397, 0
        %3404 = vmatpush.bf16.msra.mxu0 0
        %3405 = vmatpush.bf16.msra.mxu0 0
        %3406 = vmatpush.bf16.msra.mxu0 0
        %3407 = vmatpush.bf16.msra.mxu0 0
        %3408 = vmatpush.bf16.msra.mxu0 0
        %3409 = vmatpush.bf16.msra.mxu0 0
        %3410 = vmatpush.bf16.msra.mxu0 0
        %3411 = vmatpush.bf16.msra.mxu0 %v3402
        %3412 = vmatmul.bf16.gmra.mxu0 %v3399
        %v3413 = vpop.f32.mrf.mxu0
        %v3414 = vadd.f32 0.0, %v3413
        %v3415 = vpop.f32.mrf.mxu0
        %3416 = vdwg.mxu0
        %v3419 = vunpack.c.l.b16 %v3194
        %v3420 = vunpack.c.l.b16 %v3195
        %v3421 = vpack.c.b16 %v3420, %v3419
        %v3423 = vsel %vm3295, %v3343, 0
        %v3426 = vsel %vm3352, %v3421, 0
        %3428 = vmatpush.bf16.msra.mxu0 0
        %3429 = vmatpush.bf16.msra.mxu0 0
        %3430 = vmatpush.bf16.msra.mxu0 0
        %3431 = vmatpush.bf16.msra.mxu0 0
        %3432 = vmatpush.bf16.msra.mxu0 0
        %3433 = vmatpush.bf16.msra.mxu0 0
        %3434 = vmatpush.bf16.msra.mxu0 0
        %3435 = vmatpush.bf16.msra.mxu0 %v3426
        %3436 = vmatmul.bf16.gmra.mxu0 %v3423
        %v3437 = vpop.f32.mrf.mxu0
        %v3438 = vadd.f32 0.0, %v3437
        %v3439 = vpop.f32.mrf.mxu0
        %3440 = vdwg.mxu0
        %v3441 = vrot.slane %v3414, 4
        %v3442 = vsel %vm1839, %v3441, %v3366
        %v3443 = vrot.slane %v3366, 4
        %v3444 = vsel %vm1839, %v3414, %v3443
        %v3446 = vunpack.c.l.s4 1983009808
        %v3447 = vunpack.c.0.s8 %v3446
        %v3448 = vperm.slane %v3442, %v3447
        %v3450 = vunpack.c.l.s4 1983009808
        %v3451 = vunpack.c.0.s8 %v3450
        %v3452 = vperm.slane %v3444, %v3451
        %v3453 = vrot.slane %v3438, 4
        %v3454 = vsel %vm1839, %v3453, %v3390
        %v3455 = vrot.slane %v3390, 4
        %v3456 = vsel %vm1839, %v3438, %v3455
        %v3458 = vunpack.c.l.s4 1983009808
        %v3459 = vunpack.c.0.s8 %v3458
        %v3460 = vperm.slane %v3454, %v3459
        %v3462 = vunpack.c.l.s4 1983009808
        %v3463 = vunpack.c.0.s8 %v3462
        %v3464 = vperm.slane %v3456, %v3463
        %v3465 = vrot.slane %v3460, 4
        %v3466 = vsel %vm1839, %v3465, %v3448
        %v3467 = vrot.slane %v3448, 4
        %v3468 = vsel %vm1839, %v3460, %v3467
        %v3470 = vunpack.c.l.s4 1934713408
        %v3471 = vunpack.c.0.s8 %v3470
        %v3472 = vperm.slane %v3466, %v3471
        %v3474 = vunpack.c.l.s4 1934713408
        %v3475 = vunpack.c.0.s8 %v3474
        %v3476 = vperm.slane %v3468, %v3475
        %v3477 = vrot.slane %v3464, 4
        %v3478 = vsel %vm1839, %v3477, %v3452
        %v3479 = vrot.slane %v3452, 4
        %v3480 = vsel %vm1839, %v3464, %v3479
        %v3482 = vunpack.c.l.s4 1934713408
        %v3483 = vunpack.c.0.s8 %v3482
        %v3484 = vperm.slane %v3478, %v3483
        %v3486 = vunpack.c.l.s4 1934713408
        %v3487 = vunpack.c.0.s8 %v3486
        %v3488 = vperm.slane %v3480, %v3487
        %v3489 = vrot.slane %v3472, 4
        %v3490 = vsel %vm1839, 0.0, %v3489
        %v3491 = vrot.slane %v3476, 4
        %v3492 = vsel %vm1839, 0.0, %v3491
        %v3493 = vrot.slane %v3484, 4
        %v3494 = vsel %vm1839, 0.0, %v3493
        %v3495 = vrot.slane %v3488, 4
        %v3496 = vsel %vm1839, 0.0, %v3495
        %v3497 = vsel %vm1839, %v3491, %v3472
        %v3499 = vunpack.c.l.s4 1983009808
        %v3500 = vunpack.c.0.s8 %v3499
        %v3501 = vperm.slane %v3497, %v3500
        %v3502 = vrot.slane %v3492, 4
        %v3503 = vsel %vm1839, %v3502, %v3490
        %v3505 = vunpack.c.l.s4 1983009808
        %v3506 = vunpack.c.0.s8 %v3505
        %v3507 = vperm.slane %v3503, %v3506
        %v3508 = vsel %vm1839, %v3495, %v3484
        %v3510 = vunpack.c.l.s4 1983009808
        %v3511 = vunpack.c.0.s8 %v3510
        %v3512 = vperm.slane %v3508, %v3511
        %v3513 = vrot.slane %v3496, 4
        %v3514 = vsel %vm1839, %v3513, %v3494
        %v3516 = vunpack.c.l.s4 1983009808
        %v3517 = vunpack.c.0.s8 %v3516
        %v3518 = vperm.slane %v3514, %v3517
        %v3519 = vrot.slane %v3507, 4
        %v3520 = vsel %vm1839, %v3519, %v3501
        %v3521 = vrot.slane %v3501, 4
        %v3522 = vsel %vm1839, %v3507, %v3521
        %v3524 = vunpack.c.l.s4 1934713408
        %v3525 = vunpack.c.0.s8 %v3524
        %v3526 = vperm.slane %v3520, %v3525
        %v3528 = vunpack.c.l.s4 1934713408
        %v3529 = vunpack.c.0.s8 %v3528
        %v3530 = vperm.slane %v3522, %v3529
        %v3531 = vrot.slane %v3518, 4
        %v3532 = vsel %vm1839, %v3531, %v3512
        %v3533 = vrot.slane %v3512, 4
        %v3534 = vsel %vm1839, %v3518, %v3533
        %v3536 = vunpack.c.l.s4 1934713408
        %v3537 = vunpack.c.0.s8 %v3536
        %v3538 = vperm.slane %v3532, %v3537
        %v3540 = vunpack.c.l.s4 1934713408
        %v3541 = vunpack.c.0.s8 %v3540
        %v3542 = vperm.slane %v3534, %v3541
        %v3543 = vrot.slane %v3538, 4
        %v3544 = vsel %vm1839, %v3543, %v3526
        %v3545 = vrot.slane %v3526, 4
        %v3546 = vsel %vm1839, %v3538, %v3545
        %v3547 = vrot.slane %v3542, 4
        %v3548 = vsel %vm1839, %v3547, %v3530
        %v3549 = vrot.slane %v3530, 4
        %v3550 = vsel %vm1839, %v3542, %v3549
        %3552 = vrot.lane.b32.xlu0 %v3546, 8
        %v3553 = vpop.permute.xlu0 %3552
        %3556 = vrot.lane.b32.xlu0 %v3548, 16
        %v3557 = vpop.permute.xlu0 %3556
        %3560 = vrot.lane.b32.xlu0 %v3550, 24
        %v3561 = vpop.permute.xlu0 %3560
        %v3563 = vsel %vm2201, %v3544, %v3553
        %v3564 = vsel %vm2526, %v3563, %v3557
        %v3565 = vsel %vm2528, %v3564, %v3561
        %v3566 = vpack.c.bf16 %v3565, %v3565
        %v3567 = vld [vmem:[%s1400] sm:$0xf]
        %v3568 = vld [vmem:[%s1400 + $0x4] sm:$0xf]
        %v3569 = vld [vmem:[%s1400 + $0x8] sm:$0xf]
        %v3570 = vld [vmem:[%s1400 + $0xc] sm:$0xf]
        %v3571 = vld [vmem:[%s1409] sm:$0x1]
        %v3573 = vperm.slane %v3571, 0
        %v3579 = vunpack.c.l.b16 %v3567
        %v3580 = vunpack.c.l.b16 %v3568
        %v3581 = vunpack.c.l.b16 %v3569
        %v3582 = vunpack.c.l.b16 %v3570
        %v3583 = vpack.c.b16 %v3580, %v3579
        %v3584 = vpack.c.b16 %v3582, %v3581
        %v3588 = vsel %vm1691, %v3566, 0
        %3590 = vmatpush.bf16.msra.mxu0 0
        %3591 = vmatpush.bf16.msra.mxu0 0
        %3592 = vmatpush.bf16.msra.mxu0 0
        %3593 = vmatpush.bf16.msra.mxu0 0
        %3594 = vmatpush.bf16.msra.mxu0 0
        %3595 = vmatpush.bf16.msra.mxu0 0
        %3596 = vmatpush.bf16.msra.mxu0 %v3584
        %3597 = vmatpush.bf16.msra.mxu0 %v3583
        %3598 = vmatmul.bf16.gmra.mxu0 %v3588
        %v3599 = vpop.f32.mrf.mxu0
        %v3600 = vadd.f32 %v3573, %v3599
        %v3601 = vpop.f32.mrf.mxu0
        %3602 = vdwg.mxu0
        %v3603 = vadd.f32 %v3600, %v2567
        %v3604 = vld [vmem:[%s1419] sm:$0x3]
        %v3605 = vsel %vm1691, %v3603, 0.0
        %3606 = vadd.xlane.f32.xlu0 %v3605
        %v3607 = vpop.xlane.xlu0 %3606
        %v3608 = vmul.f32 %v3607, %v1701
        %v3609 = vsub.f32 %v3603, %v3608
        %v3610 = vmul.f32 %v3609, %v3609
        %v3611 = vsel %vm1691, %v3610, 0.0
        %3612 = vadd.xlane.f32.xlu0 %v3611
        %v3613 = vpop.xlane.xlu0 %3612
        %v3614 = vmul.f32 %v3613, %v1701
        %v3615 = vadd.f32 %v3614, 1e-06
        %v3616 = vrsqrt.pop %v3615
        %v3617 = vmul.f32 %v3616, %v3615
        %v3618 = vmul.f32 %v3617, %v3616
        %v3619 = vmul.f32 0.5, %v3618
        %v3620 = vsub.f32 1.5, %v3619
        %v3621 = vmul.f32 %v3616, %v3620
        %vm3622 = vweird.f32 %v3615
        %vm3623 = vweird.f32 %v3616
        %vm3624 = vmor %vm3622, %vm3623
        %v3625 = vsel %vm3624, %v3616, %v3621
        %v3626 = vmul.f32 %v3609, %v3625
        %v3627 = vperm.slane %v3604, 0
        %v3628 = vmul.f32 %v3626, %v3627
        %v3629 = vperm.slane %v3604, 1
        %v3630 = vadd.f32 %v3628, %v3629
        %v3631 = vpack.c.bf16 %v3630, %v3630
        %v3632 = vld [vmem:[%s1429] sm:$0xf]
        %v3633 = vld [vmem:[%s1429 + $0x4] sm:$0xf]
        %v3634 = vld [vmem:[%s1429 + $0x8] sm:$0xf]
        %v3635 = vld [vmem:[%s1429 + $0xc] sm:$0xf]
        %v3636 = vld [vmem:[%s1438] sm:$0x1]
        %v3638 = vperm.slane %v3636, 0
        %v3644 = vunpack.c.l.b16 %v3632
        %v3645 = vunpack.c.l.b16 %v3633
        %v3646 = vunpack.c.l.b16 %v3634
        %v3647 = vunpack.c.l.b16 %v3635
        %v3648 = vpack.c.b16 %v3645, %v3644
        %v3649 = vpack.c.b16 %v3647, %v3646
        %v3653 = vsel %vm1691, %v3631, 0
        %3655 = vmatpush.bf16.msra.mxu0 0
        %3656 = vmatpush.bf16.msra.mxu0 0
        %3657 = vmatpush.bf16.msra.mxu0 0
        %3658 = vmatpush.bf16.msra.mxu0 0
        %3659 = vmatpush.bf16.msra.mxu0 0
        %3660 = vmatpush.bf16.msra.mxu0 0
        %3661 = vmatpush.bf16.msra.mxu0 %v3649
        %3662 = vmatpush.bf16.msra.mxu0 %v3648
        %3663 = vmatmul.bf16.gmra.mxu0 %v3653
        %v3664 = vpop.f32.mrf.mxu0
        %v3665 = vadd.f32 %v3638, %v3664
        %v3666 = vpop.f32.mrf.mxu0
        %3667 = vdwg.mxu0
        %v3668 = vmax.f32 %v3665, 0.0
        %v3669 = vpack.c.bf16 %v3668, %v3668
        %v3670 = vld [vmem:[%s1666] sm:$0xf]
        %v3671 = vld [vmem:[%s1666 + $0x4] sm:$0xf]
        %v3672 = vld [vmem:[%s1666 + $0x8] sm:$0xf]
        %v3673 = vld [vmem:[%s1666 + $0xc] sm:$0xf]
        %v3674 = vld [vmem:[%s1666 + $0x10] sm:$0xf]
        %v3675 = vld [vmem:[%s1666 + $0x14] sm:$0xf]
        %v3676 = vld [vmem:[%s1666 + $0x18] sm:$0xf]
        %v3677 = vld [vmem:[%s1666 + $0x1c] sm:$0xf]
        %v3678 = vld [vmem:[%s1447] sm:$0x1]
        %v3680 = vperm.slane %v3678, 0
        %v3690 = vunpack.c.l.b16 %v3670
        %v3691 = vunpack.c.l.b16 %v3671
        %v3692 = vunpack.c.l.b16 %v3672
        %v3693 = vunpack.c.l.b16 %v3673
        %v3694 = vunpack.c.l.b16 %v3674
        %v3695 = vunpack.c.l.b16 %v3675
        %v3696 = vunpack.c.l.b16 %v3676
        %v3697 = vunpack.c.l.b16 %v3677
        %v3698 = vpack.c.b16 %v3691, %v3690
        %v3699 = vpack.c.b16 %v3693, %v3692
        %v3700 = vpack.c.b16 %v3695, %v3694
        %v3701 = vpack.c.b16 %v3697, %v3696
        %vm3706 = vcmask 523264
        %v3708 = vsel %vm3706, %v3669, 0
        %3710 = vmatpush.bf16.msra.mxu0 0
        %3711 = vmatpush.bf16.msra.mxu0 0
        %3712 = vmatpush.bf16.msra.mxu0 0
        %3713 = vmatpush.bf16.msra.mxu0 0
        %3714 = vmatpush.bf16.msra.mxu0 %v3701
        %3715 = vmatpush.bf16.msra.mxu0 %v3700
        %3716 = vmatpush.bf16.msra.mxu0 %v3699
        %3717 = vmatpush.bf16.msra.mxu0 %v3698
        %3718 = vmatmul.bf16.gmra.mxu0 %v3708
        %v3719 = vpop.f32.mrf.mxu0
        %v3720 = vadd.f32 %v3680, %v3719
        %v3721 = vpop.f32.mrf.mxu0
        %3722 = vdwg.mxu0
        %v3723 = vadd.f32 %v3720, %v3603
        %3724 = vst.msk [vmem:[%s1634] sm:$0xff] %vm1691, %v3723
        %s3725 = sand.u32 %s796, 1
        %s3726 = scalar_lea.sflag [#allocation4], %s3725
        %s3727 = sand.u32 %s796, 1
        %s3728 = smul.addr %s3727, 8
        %s3729 = scalar_lea.vmem [#allocation34], %s3728
        // Predicated region
        $region213: #{tpu_custom_call.1} parent=127 // pred_check
          %p3730 = pneg %p806
        $region214: #{tpu_custom_call.1} parent=127 // pred_check_branch
          %3732 = sbr.rel (%p3730) target = $region216
        $region215: #{tpu_custom_call.1} parent=127 // pred_region
          %3734 = vsyncadd %s3726, 0
          %s3735 = smul.addr %s78, 8
          %s3736 = scalar_lea.hbm %s27, %s3735
          %s3738 = sshll.u32 %s3729, 4
          %s3739 = int_to_ptr.vmem [resolvable:$true] %s3738
          %s3740 = sshll.u32 %s3736, 4
          %s3741 = int_to_ptr.hbm [resolvable:$true] %s3740
          %3743 = dma.vmem_to_hbm [thread:$0]  %s3739, 128, %s3741, %s3726
        $region216: #{tpu_custom_call.1} parent=127 // pred_fallthru
          _
      $region128: #{tpu_custom_call.1} parent=5 // pred_fallthru
        _
      %p3744 = scmp.le.s32.totalorder 2, %s69
      // Predicated region
      $region217: #{tpu_custom_call.1} parent=5 // pred_check
        %p3745 = pneg %p3744
      $region218: #{tpu_custom_call.1} parent=5 // pred_check_branch
        %3747 = sbr.rel (%p3745) target = $region220
      $region219: #{tpu_custom_call.1} parent=5 // pred_region
        %s3748 = ssub.s32 %s69, 2
        // Predicated region
        $region221: #{tpu_custom_call.1} parent=219 // pred_check
          %p3749 = pneg %p812
        $region222: #{tpu_custom_call.1} parent=219 // pred_check_branch
          %3751 = sbr.rel (%p3749) target = $region224
        $region223: #{tpu_custom_call.1} parent=219 // pred_region
          %s3752 = sand.u32 %s797, 1
          %s3753 = scalar_lea.sflag [#allocation4], %s3752
          %s3754 = sand.u32 %s797, 1
          %s3755 = smul.addr %s3754, 8
          %s3756 = scalar_lea.vmem [#allocation34], %s3755
          %3758 = dma.done %s3753, 128
        $region224: #{tpu_custom_call.1} parent=219 // pred_fallthru
          _
      $region220: #{tpu_custom_call.1} parent=5 // pred_fallthru
        _
    $region6: #{tpu_custom_call.1} parent=1 // loop_footer
      %s73 = sadd.s32 1, %s69
    $region7: #{tpu_custom_call.1} parent=1 // loop_footer_branch
      %68 = sbr.rel target = $region3
    $region8: #{tpu_custom_call.1} parent=1 // loop_exit
      _
    %3759 = vsyncpa [#allocation3], 1
    %s3760 = scalar_lea.sflag [#allocation3], 1
    %3761 = vsyncpa %s3760, 1
    %3762 = vsyncpa [#allocation6], 1
    %s3763 = scalar_lea.sflag [#allocation6], 1
    %3764 = vsyncpa %s3763, 1
    %3765 = vsyncpa [#allocation9], 1
    %s3766 = scalar_lea.sflag [#allocation9], 1
    %3767 = vsyncpa %s3766, 1
    %3768 = vsyncpa [#allocation12], 1
    %s3769 = scalar_lea.sflag [#allocation12], 1
    %3770 = vsyncpa %s3769, 1
    %3771 = vsyncpa [#allocation15], 1
    %s3772 = scalar_lea.sflag [#allocation15], 1
    %3773 = vsyncpa %s3772, 1
    %3774 = vsyncpa [#allocation18], 1
    %s3775 = scalar_lea.sflag [#allocation18], 1
    %3776 = vsyncpa %s3775, 1
    %3777 = vsyncpa [#allocation21], 1
    %s3778 = scalar_lea.sflag [#allocation21], 1
    %3779 = vsyncpa %s3778, 1
    %3780 = vsyncpa [#allocation24], 1
    %s3781 = scalar_lea.sflag [#allocation24], 1
    %3782 = vsyncpa %s3781, 1
    %3783 = vsyncpa [#allocation27], 1
    %s3784 = scalar_lea.sflag [#allocation27], 1
    %3785 = vsyncpa %s3784, 1
    %3786 = vsyncpa [#allocation30], 1
    %s3787 = scalar_lea.sflag [#allocation30], 1
    %3788 = vsyncpa %s3787, 1
    %3789 = vsyncpa [#allocation33], 1
    %s3790 = scalar_lea.sflag [#allocation33], 1
    %3791 = vsyncpa %s3790, 1
    %3792 = vsyncpa [#allocation4], 1
    %s3793 = scalar_lea.sflag [#allocation4], 1
    %3794 = vsyncpa %s3793, 1

</llo_original>
